<compile_context>
chip_gen: v7x
topology: tpu7x:2x2x1
jax: 0.10.0
libtpu: 0.0.40
codegen_flags: <defaults>
</compile_context>

<pallas_src>
import functools

import jax
import jax.numpy as jnp
import numpy as np
from jax import lax
from jax.experimental import pallas as pl
from jax.experimental.pallas import tpu as pltpu


def _td_cell_kernel(H, W, k,
                    lower_ref, higher_ref, winh_ref, wexc_ref,
                    r0w_ref, r1w_ref, u1w_ref, u2w_ref,
                    up_ref, pvec_ref, r0b_ref,
                    o_ref):
    """One batch element.

    lower_ref: (Cf, H*W) f32, higher_ref: (Ctd, Hh*Wh) bf16 — channels on sublanes,
    flattened spatial on lanes.  Output block is (Cf, H*W) f32 (lane-dense, 128-aligned).
    """
    p = k // 2
    HW = H * W
    sp = jax.nn.softplus

    # packed per-channel params: [remap1_b, u1_b, u2_b, alpha, mu, w, kappa, pad]
    pv = pvec_ref[...]                                    # (Cf, 8) f32
    r1b, u1b, u2b = pv[:, 0:1], pv[:, 1:2], pv[:, 2:3]
    alpha, mu, wpar, kappa = pv[:, 3:4], pv[:, 4:5], pv[:, 5:6], pv[:, 6:7]

    lw = lower_ref[...]                                   # (Cf, HW) f32
    hw = higher_ref[...]                                  # (Ctd, HhWh) bf16

    def mm(w_ref, act):                                   # bf16 MXU, f32 accumulation
        return jnp.dot(w_ref[...], act.astype(jnp.bfloat16),
                       preferred_element_type=jnp.float32)

    # ---- low-resolution branch: 1x1 convs + pointwise ops commute with nearest-up ----
    p1 = sp(mm(r0w_ref, hw) + r0b_ref[...])               # (Cd, HhWh)
    p2 = sp(mm(r1w_ref, p1) + r1b)                        # prev_state2 @ low res (Cf, HhWh)
    g1 = jax.nn.sigmoid(mm(u1w_ref, p2) + u1b)
    hg_low = p2 * g1
    m_low = alpha * p2 + mu

    # exact nearest-neighbour upsample via a 0/1 f32 matmul (one f32 term per output)
    up = up_ref[...]                                      # (HhWh, HW) f32
    hg = jnp.dot(hg_low, up, preferred_element_type=jnp.float32)      # (Cf, HW)
    mfac = jnp.dot(m_low, up, preferred_element_type=jnp.float32)     # alpha*p2+mu full res

    # ---- full-resolution branch ----
    col = lax.broadcasted_iota(jnp.int32, (1, HW), 1) % W
    # source-column keep-masks per horizontal tap offset (built once, shared by both convs)
    keep = {}
    for dx in range(-p, p + 1):
        if dx > 0:
            keep[dx] = col >= dx
        elif dx < 0:
            keep[dx] = col < (W + dx)

    def shift_flat(x, s):
        # tap[i] = x[i + s], zero-filled outside [0, HW)
        if s == 0:
            return x
        z = jnp.zeros((x.shape[0], abs(s)), x.dtype)
        if s > 0:
            return jnp.concatenate([x[:, s:], z], axis=1)
        return jnp.concatenate([z, x[:, :s]], axis=1)

    def conv_same(x, w2d_ref):
        # kxk SAME conv as one im2col matmul.  Zero-fill + per-dx source masks exactly
        # reproduce SAME zero padding.  Shifts/selects stay in f32; one bf16 cast.
        mx = {dx: (jnp.where(keep[dx], x, 0.0) if dx != 0 else x)
              for dx in range(-p, p + 1)}
        taps = [shift_flat(mx[kw - p], (kh - p) * W + (kw - p))
                for kh in range(k) for kw in range(k)]
        patch = jnp.concatenate(taps, axis=0).astype(jnp.bfloat16)    # (k*k*Cf, HW)
        return jnp.dot(w2d_ref[...], patch, preferred_element_type=jnp.float32)

    c1 = conv_same(hg, winh_ref)                          # inhibition conv
    inh = sp(c1 * mfac)
    supp = sp(lw - inh)
    exc = conv_same(supp, wexc_ref)                       # excitation conv
    g2 = jax.nn.sigmoid(mm(u2w_ref, supp) + u2b)
    h2 = sp(kappa * (supp + exc) + wpar * supp * exc)
    o_ref[...] = ((1.0 - g2) * lw + g2 * h2).astype(o_ref.dtype)


def td_conv_gru_cell(lower_, higher_, params, *, kernel_size=3):
    """lower_: (N, fan_in, H, W), higher_: (N, td_fan_in, Hh, Wh) — NCHW (PyTorch layout)."""
    N, Cf, H, W = lower_.shape
    _, Ctd, Hh, Wh = higher_.shape
    Cd = params["remap0_w"].shape[0]
    k = kernel_size
    HW, HhWh = H * W, Hh * Wh

    lower_f = lower_.reshape(N, Cf, HW).astype(jnp.float32)
    higher_f = higher_.reshape(N, Ctd, HhWh).astype(jnp.bfloat16)   # bf16, low res

    # F.interpolate(mode='nearest') as an exact 0/1 upsample matrix, applied in-kernel
    # AFTER the 1x1-conv/pointwise chain (which commutes with nearest upsampling).
    yi = (np.arange(H) * Hh) // H
    xi = (np.arange(W) * Wh) // W
    src = (yi[:, None] * Wh + xi[None, :]).reshape(-1)
    up = np.zeros((HhWh, HW), np.float32)
    up[src, np.arange(HW)] = 1.0
    up = jnp.asarray(up)

    # im2col conv weights: (Cf, Cf, k, k) -> (Cf, k*k*Cf), tap-major, bf16 for the MXU.
    def conv_w2d(wc):
        return jnp.transpose(wc, (0, 2, 3, 1)).reshape(Cf, k * k * Cf).astype(jnp.bfloat16)

    w_inh2d = conv_w2d(params["w_gate_inh"])
    w_exc2d = conv_w2d(params["w_gate_exc"])
    bf = lambda a: a.astype(jnp.bfloat16)

    # pack the (Cf,) per-channel parameters into one lane-aligned (Cf, 8) block
    pvec = jnp.stack(
        [params["remap1_b"], params["u1_b"], params["u2_b"], params["alpha"],
         params["mu"], params["w"], params["kappa"],
         jnp.zeros((Cf,), jnp.float32)], axis=1).astype(jnp.float32)
    r0b = params["remap0_b"].reshape(Cd, 1).astype(jnp.float32)

    kern = functools.partial(_td_cell_kernel, H, W, k)

    flops = 2 * N * (Cd * Ctd * HhWh + Cf * Cd * HhWh + Cf * Cf * HhWh
                     + 2 * Cf * HhWh * HW + 2 * k * k * Cf * Cf * HW + Cf * Cf * HW)
    transc = N * (3 * Cf * HhWh + 4 * Cf * HW)
    nbytes = (4 * N * Cf * HW * 2 + 2 * N * Ctd * HhWh + 4 * HhWh * HW
              + 2 * (2 * k * k * Cf * Cf + Cd * Ctd + Cf * Cd + 2 * Cf * Cf)
              + 4 * (8 * Cf + Cd))

    grid_spec = pltpu.PrefetchScalarGridSpec(
        num_scalar_prefetch=0,
        grid=(N,),
        in_specs=[
            pl.BlockSpec((None, Cf, HW), lambda b: (b, 0, 0)),        # lower (f32, full res)
            pl.BlockSpec((None, Ctd, HhWh), lambda b: (b, 0, 0)),     # higher (bf16, low res)
            pl.BlockSpec((Cf, k * k * Cf), lambda b: (0, 0)),         # w_gate_inh (im2col)
            pl.BlockSpec((Cf, k * k * Cf), lambda b: (0, 0)),         # w_gate_exc (im2col)
            pl.BlockSpec((Cd, Ctd), lambda b: (0, 0)),                # remap_0 weight
            pl.BlockSpec((Cf, Cd), lambda b: (0, 0)),                 # remap_1 weight
            pl.BlockSpec((Cf, Cf), lambda b: (0, 0)),                 # u1_gate weight
            pl.BlockSpec((Cf, Cf), lambda b: (0, 0)),                 # u2_gate weight
            pl.BlockSpec((HhWh, HW), lambda b: (0, 0)),               # nearest-upsample matrix
            pl.BlockSpec((Cf, 8), lambda b: (0, 0)),                  # packed per-channel params
            pl.BlockSpec((Cd, 1), lambda b: (0, 0)),                  # remap_0 bias
        ],
        out_specs=pl.BlockSpec((None, Cf, HW), lambda b: (b, 0, 0)),
    )

    out_flat = pl.pallas_call(
        kern,
        out_shape=jax.ShapeDtypeStruct((N, Cf, HW), jnp.float32),
        grid_spec=grid_spec,
        compiler_params=pltpu.CompilerParams(
            dimension_semantics=("parallel",),
            vmem_limit_bytes=32 * 1024 * 1024),
        cost_estimate=pl.CostEstimate(flops=flops, transcendentals=transc,
                                      bytes_accessed=nbytes),
    )(lower_f, higher_f, w_inh2d, w_exc2d,
      bf(params["remap0_w"]), bf(params["remap1_w"]),
      bf(params["u1_w"]), bf(params["u2_w"]),
      up, pvec, r0b)

    return out_flat.reshape(N, Cf, H, W)


def init_params(key, fan_in, td_fan_in, diff_fan_in, k, timesteps=8):
    """Deterministic synthetic parameters matching the module's shapes/constants."""
    Cf, Ctd, Cd = fan_in, td_fan_in, diff_fan_in
    ks = jax.random.split(key, 9)

    def w_conv(kk, co, ci):
        return jax.random.normal(kk, (co, ci, k, k), jnp.float32) / (k * np.sqrt(ci))

    def w_1x1(kk, co, ci):
        return jax.random.normal(kk, (co, ci), jnp.float32) / np.sqrt(ci)

    u1_b = jnp.log(jax.random.uniform(ks[6], (Cf,), jnp.float32,
                                      minval=1.0, maxval=float(timesteps - 1)))
    return dict(
        w_gate_inh=w_conv(ks[0], Cf, Cf),
        w_gate_exc=w_conv(ks[1], Cf, Cf),
        remap0_w=w_1x1(ks[2], Cd, Ctd),
        remap0_b=0.1 * jax.random.normal(ks[7], (Cd,), jnp.float32),
        remap1_w=w_1x1(ks[3], Cf, Cd),
        remap1_b=0.1 * jax.random.normal(ks[8], (Cf,), jnp.float32),
        u1_w=w_1x1(ks[4], Cf, Cf), u1_b=u1_b,
        u2_w=w_1x1(ks[5], Cf, Cf), u2_b=-u1_b,
        alpha=jnp.full((Cf,), 0.1, jnp.float32),
        mu=jnp.full((Cf,), 1.0, jnp.float32),
        w=jnp.full((Cf,), 0.5, jnp.float32),
        kappa=jnp.full((Cf,), 0.5, jnp.float32),
    )


def ref_forward(lower_, higher_, params):
    """Pure-JAX NCHW reference mirroring tdConvGRUCell_err.forward (batchnorm=False)."""
    N, Cf, H, W = lower_.shape
    Hh, Wh = higher_.shape[2:]
    yi = (jnp.arange(H) * Hh) // H
    xi = (jnp.arange(W) * Wh) // W
    prev = higher_[:, :, yi][:, :, :, xi]

    sp = jax.nn.softplus
    hp = lax.Precision.HIGHEST

    def conv1x1(x, w, b):
        return jnp.einsum("nchw,dc->ndhw", x, w, precision=hp) + b[None, :, None, None]

    def conv_same(x, w):
        return lax.conv_general_dilated(
            x, w, (1, 1), "SAME",
            dimension_numbers=("NCHW", "OIHW", "NCHW"), precision=hp)

    prev = sp(conv1x1(prev, params["remap0_w"], params["remap0_b"]))
    prev = sp(conv1x1(prev, params["remap1_w"], params["remap1_b"]))
    g1 = jax.nn.sigmoid(conv1x1(prev, params["u1_w"], params["u1_b"]))
    c1 = conv_same(prev * g1, params["w_gate_inh"])
    alpha = params["alpha"][None, :, None, None]
    mu = params["mu"][None, :, None, None]
    w_ = params["w"][None, :, None, None]
    kappa = params["kappa"][None, :, None, None]
    inh = sp(c1 * (alpha * prev + mu))
    supp = sp(lower_ - inh)
    g2 = jax.nn.sigmoid(conv1x1(supp, params["u2_w"], params["u2_b"]))
    exc = conv_same(supp, params["w_gate_exc"])
    h2 = sp(kappa * (supp + exc) + w_ * supp * exc)
    return (1.0 - g2) * lower_ + g2 * h2


if __name__ == "__main__":
    N = 2
    fan_in, td_fan_in, diff_fan_in = 32, 64, 32
    H = W = 16
    k = 3

    key = jax.random.PRNGKey(0)
    k1, k2, k3 = jax.random.split(key, 3)
    lower_ = jax.random.normal(k1, (N, fan_in, H, W), jnp.float32)            # NCHW
    higher_ = jax.random.normal(k2, (N, td_fan_in, H // 2, W // 2), jnp.float32)
    params = init_params(k3, fan_in, td_fan_in, diff_fan_in, k, timesteps=8)

    out = jax.block_until_ready(
        td_conv_gru_cell(lower_, higher_, params, kernel_size=k))
    ref = ref_forward(lower_, higher_, params)

    # bf16 MXU operands in the kernel vs f32 HIGHEST-precision reference -> ~1e-2 level.
    np.testing.assert_allclose(np.asarray(out), np.asarray(ref), rtol=3e-2, atol=3e-2)
    print("KERNEL_OK")
</pallas_src>

<mosaic_0001>
module attributes {stable_mosaic.version = 11 : i64} {
  func.func @_td_cell_kernel(%arg0: i32, %arg1: memref<1x32x256xf32, #tpu.memory_space<vmem>>, %arg2: memref<1x64x64xbf16, #tpu.memory_space<vmem>>, %arg3: memref<32x288xbf16, #tpu.memory_space<vmem>>, %arg4: memref<32x288xbf16, #tpu.memory_space<vmem>>, %arg5: memref<32x64xbf16, #tpu.memory_space<vmem>>, %arg6: memref<32x32xbf16, #tpu.memory_space<vmem>>, %arg7: memref<32x32xbf16, #tpu.memory_space<vmem>>, %arg8: memref<32x32xbf16, #tpu.memory_space<vmem>>, %arg9: memref<64x256xf32, #tpu.memory_space<vmem>>, %arg10: memref<32x8xf32, #tpu.memory_space<vmem>>, %arg11: memref<32x1xf32, #tpu.memory_space<vmem>>, %arg12: memref<1x32x256xf32, #tpu.memory_space<vmem>>) attributes {dimension_semantics = [#tpu.dimension_semantics<parallel>], iteration_bounds = array<i64: 2>, scalar_prefetch = 0 : i64, scratch_operands = 0 : i64, tpu.core_type = #tpu.core_type<tc>, window_params = [{transform_indices = @transform_0, window_bounds = array<i64: 1, 32, 256>}, {transform_indices = @transform_1, window_bounds = array<i64: 1, 64, 64>}, {pipeline_mode = #tpu.pipeline_mode<synchronous>, transform_indices = @transform_2, window_bounds = array<i64: 32, 288>}, {pipeline_mode = #tpu.pipeline_mode<synchronous>, transform_indices = @transform_3, window_bounds = array<i64: 32, 288>}, {pipeline_mode = #tpu.pipeline_mode<synchronous>, transform_indices = @transform_4, window_bounds = array<i64: 32, 64>}, {pipeline_mode = #tpu.pipeline_mode<synchronous>, transform_indices = @transform_5, window_bounds = array<i64: 32, 32>}, {pipeline_mode = #tpu.pipeline_mode<synchronous>, transform_indices = @transform_6, window_bounds = array<i64: 32, 32>}, {pipeline_mode = #tpu.pipeline_mode<synchronous>, transform_indices = @transform_7, window_bounds = array<i64: 32, 32>}, {pipeline_mode = #tpu.pipeline_mode<synchronous>, transform_indices = @transform_8, window_bounds = array<i64: 64, 256>}, {pipeline_mode = #tpu.pipeline_mode<synchronous>, transform_indices = @transform_9, window_bounds = array<i64: 32, 8>}, {pipeline_mode = #tpu.pipeline_mode<synchronous>, transform_indices = @transform_10, window_bounds = array<i64: 32, 1>}, {transform_indices = @transform_11, window_bounds = array<i64: 1, 32, 256>}]} {
    %c0 = arith.constant 0 : index
    %c0_0 = arith.constant 0 : index
    %0 = vector.load %arg10[%c0, %c0_0] : memref<32x8xf32, #tpu.memory_space<vmem>>, vector<32x8xf32>
    %1 = vector.extract_strided_slice %0 {offsets = [0, 0], sizes = [32, 1], strides = [1, 1]} : vector<32x8xf32> to vector<32x1xf32>
    %2 = vector.extract_strided_slice %0 {offsets = [0, 1], sizes = [32, 1], strides = [1, 1]} : vector<32x8xf32> to vector<32x1xf32>
    %3 = vector.extract_strided_slice %0 {offsets = [0, 2], sizes = [32, 1], strides = [1, 1]} : vector<32x8xf32> to vector<32x1xf32>
    %4 = vector.extract_strided_slice %0 {offsets = [0, 3], sizes = [32, 1], strides = [1, 1]} : vector<32x8xf32> to vector<32x1xf32>
    %5 = vector.extract_strided_slice %0 {offsets = [0, 4], sizes = [32, 1], strides = [1, 1]} : vector<32x8xf32> to vector<32x1xf32>
    %6 = vector.extract_strided_slice %0 {offsets = [0, 5], sizes = [32, 1], strides = [1, 1]} : vector<32x8xf32> to vector<32x1xf32>
    %7 = vector.extract_strided_slice %0 {offsets = [0, 6], sizes = [32, 1], strides = [1, 1]} : vector<32x8xf32> to vector<32x1xf32>
    %c0_1 = arith.constant 0 : index
    %c0_2 = arith.constant 0 : index
    %c0_3 = arith.constant 0 : index
    %8 = vector.load %arg1[%c0_1, %c0_2, %c0_3] : memref<1x32x256xf32, #tpu.memory_space<vmem>>, vector<1x32x256xf32>
    %9 = vector.shape_cast %8 : vector<1x32x256xf32> to vector<32x256xf32>
    %c0_4 = arith.constant 0 : index
    %c0_5 = arith.constant 0 : index
    %c0_6 = arith.constant 0 : index
    %10 = vector.load %arg2[%c0_4, %c0_5, %c0_6] : memref<1x64x64xbf16, #tpu.memory_space<vmem>>, vector<1x64x64xbf16>
    %11 = vector.shape_cast %10 : vector<1x64x64xbf16> to vector<64x64xbf16>
    %c0_7 = arith.constant 0 : index
    %c0_8 = arith.constant 0 : index
    %12 = vector.load %arg5[%c0_7, %c0_8] : memref<32x64xbf16, #tpu.memory_space<vmem>>, vector<32x64xbf16>
    %cst = arith.constant dense<0.000000e+00> : vector<32x64xf32>
    %13 = tpu.matmul %12, %11, %cst {dimension_numbers = #tpu.dot_dimension_numbers<[1], [0], [0], [1], [0, 0, 1, 1], [], []>} : vector<32x64xbf16>, vector<64x64xbf16>, vector<32x64xf32> -> vector<32x64xf32>
    %c0_9 = arith.constant 0 : index
    %c0_10 = arith.constant 0 : index
    %14 = vector.load %arg11[%c0_9, %c0_10] : memref<32x1xf32, #tpu.memory_space<vmem>>, vector<32x1xf32>
    %15 = vector.broadcast %14 : vector<32x1xf32> to vector<32x64xf32>
    %16 = arith.addf %13, %15 : vector<32x64xf32>
    %cst_11 = arith.constant 0.000000e+00 : f32
    %17 = vector.broadcast %cst_11 : f32 to vector<32x64xf32>
    %18 = arith.maximumf %16, %17 : vector<32x64xf32>
    %19 = vector.broadcast %cst_11 : f32 to vector<32x64xf32>
    %20 = arith.subf %16, %19 : vector<32x64xf32>
    %21 = arith.cmpf one, %20, %20 : vector<32x64xf32>
    %22 = vector.broadcast %cst_11 : f32 to vector<32x64xf32>
    %23 = arith.addf %16, %22 : vector<32x64xf32>
    %24 = math.absf %20 : vector<32x64xf32>
    %cst_12 = arith.constant 0.000000e+00 : f32
    %25 = vector.broadcast %cst_12 : f32 to vector<32x64xf32>
    %26 = arith.subf %25, %24 : vector<32x64xf32>
    %27 = math.exp %26 : vector<32x64xf32>
    %28 = math.log1p %27 : vector<32x64xf32>
    %29 = arith.addf %18, %28 : vector<32x64xf32>
    %30 = arith.select %21, %23, %29 : vector<32x64xi1>, vector<32x64xf32>
    %c0_13 = arith.constant 0 : index
    %c0_14 = arith.constant 0 : index
    %31 = vector.load %arg6[%c0_13, %c0_14] : memref<32x32xbf16, #tpu.memory_space<vmem>>, vector<32x32xbf16>
    %32 = arith.truncf %30 : vector<32x64xf32> to vector<32x64xbf16>
    %cst_15 = arith.constant dense<0.000000e+00> : vector<32x64xf32>
    %33 = tpu.matmul %31, %32, %cst_15 {dimension_numbers = #tpu.dot_dimension_numbers<[1], [0], [0], [1], [0, 0, 1, 1], [], []>} : vector<32x32xbf16>, vector<32x64xbf16>, vector<32x64xf32> -> vector<32x64xf32>
    %34 = vector.broadcast %1 : vector<32x1xf32> to vector<32x64xf32>
    %35 = arith.addf %33, %34 : vector<32x64xf32>
    %cst_16 = arith.constant 0.000000e+00 : f32
    %36 = vector.broadcast %cst_16 : f32 to vector<32x64xf32>
    %37 = arith.maximumf %35, %36 : vector<32x64xf32>
    %38 = vector.broadcast %cst_16 : f32 to vector<32x64xf32>
    %39 = arith.subf %35, %38 : vector<32x64xf32>
    %40 = arith.cmpf one, %39, %39 : vector<32x64xf32>
    %41 = vector.broadcast %cst_16 : f32 to vector<32x64xf32>
    %42 = arith.addf %35, %41 : vector<32x64xf32>
    %43 = math.absf %39 : vector<32x64xf32>
    %cst_17 = arith.constant 0.000000e+00 : f32
    %44 = vector.broadcast %cst_17 : f32 to vector<32x64xf32>
    %45 = arith.subf %44, %43 : vector<32x64xf32>
    %46 = math.exp %45 : vector<32x64xf32>
    %47 = math.log1p %46 : vector<32x64xf32>
    %48 = arith.addf %37, %47 : vector<32x64xf32>
    %49 = arith.select %40, %42, %48 : vector<32x64xi1>, vector<32x64xf32>
    %c0_18 = arith.constant 0 : index
    %c0_19 = arith.constant 0 : index
    %50 = vector.load %arg7[%c0_18, %c0_19] : memref<32x32xbf16, #tpu.memory_space<vmem>>, vector<32x32xbf16>
    %51 = arith.truncf %49 : vector<32x64xf32> to vector<32x64xbf16>
    %cst_20 = arith.constant dense<0.000000e+00> : vector<32x64xf32>
    %52 = tpu.matmul %50, %51, %cst_20 {dimension_numbers = #tpu.dot_dimension_numbers<[1], [0], [0], [1], [0, 0, 1, 1], [], []>} : vector<32x32xbf16>, vector<32x64xbf16>, vector<32x64xf32> -> vector<32x64xf32>
    %53 = vector.broadcast %2 : vector<32x1xf32> to vector<32x64xf32>
    %54 = arith.addf %52, %53 : vector<32x64xf32>
    %55 = arith.negf %54 : vector<32x64xf32>
    %56 = math.exp %55 : vector<32x64xf32>
    %cst_21 = arith.constant 1.000000e+00 : f32
    %57 = vector.broadcast %cst_21 : f32 to vector<32x64xf32>
    %58 = arith.addf %57, %56 : vector<32x64xf32>
    %59 = arith.divf %57, %58 : vector<32x64xf32>
    %60 = arith.mulf %49, %59 : vector<32x64xf32>
    %61 = vector.broadcast %4 : vector<32x1xf32> to vector<32x64xf32>
    %62 = arith.mulf %61, %49 : vector<32x64xf32>
    %63 = vector.broadcast %5 : vector<32x1xf32> to vector<32x64xf32>
    %64 = arith.addf %62, %63 : vector<32x64xf32>
    %c0_22 = arith.constant 0 : index
    %c0_23 = arith.constant 0 : index
    %65 = vector.load %arg9[%c0_22, %c0_23] : memref<64x256xf32, #tpu.memory_space<vmem>>, vector<64x256xf32>
    %cst_24 = arith.constant dense<0.000000e+00> : vector<32x256xf32>
    %66 = tpu.matmul %60, %65, %cst_24 {dimension_numbers = #tpu.dot_dimension_numbers<[1], [0], [0], [1], [0, 0, 1, 1], [], []>} : vector<32x64xf32>, vector<64x256xf32>, vector<32x256xf32> -> vector<32x256xf32>
    %cst_25 = arith.constant dense<0.000000e+00> : vector<32x256xf32>
    %67 = tpu.matmul %64, %65, %cst_25 {dimension_numbers = #tpu.dot_dimension_numbers<[1], [0], [0], [1], [0, 0, 1, 1], [], []>} : vector<32x64xf32>, vector<64x256xf32>, vector<32x256xf32> -> vector<32x256xf32>
    %68 = tpu.iota {dimensions = array<i32: 1>} : vector<1x256xi32>
    %c16_i32 = arith.constant 16 : i32
    %c0_i32 = arith.constant 0 : i32
    %69 = arith.cmpi eq, %c16_i32, %c0_i32 : i32
    %c1_i32 = arith.constant 1 : i32
    %70 = arith.select %69, %c1_i32, %c16_i32 : i32
    %71 = vector.broadcast %70 : i32 to vector<1x256xi32>
    %72 = arith.remsi %68, %71 : vector<1x256xi32>
    %c0_i32_26 = arith.constant 0 : i32
    %73 = vector.broadcast %c0_i32_26 : i32 to vector<1x256xi32>
    %74 = arith.cmpi ne, %72, %73 : vector<1x256xi32>
    %c0_i32_27 = arith.constant 0 : i32
    %75 = vector.broadcast %c0_i32_27 : i32 to vector<1x256xi32>
    %76 = arith.cmpi slt, %72, %75 : vector<1x256xi32>
    %c0_i32_28 = arith.constant 0 : i32
    %77 = arith.cmpi slt, %70, %c0_i32_28 : i32
    %78 = vector.broadcast %77 : i1 to vector<1x256xi1>
    %79 = vector.broadcast %78 : vector<1x256xi1> to vector<1x256xi1>
    %80 = arith.xori %76, %79 : vector<1x256xi1>
    %81 = arith.andi %80, %74 : vector<1x256xi1>
    %82 = vector.broadcast %70 : i32 to vector<1x256xi32>
    %83 = arith.addi %72, %82 : vector<1x256xi32>
    %84 = arith.select %81, %83, %72 : vector<1x256xi1>, vector<1x256xi32>
    %c15_i32 = arith.constant 15 : i32
    %85 = vector.broadcast %c15_i32 : i32 to vector<1x256xi32>
    %86 = arith.cmpi slt, %84, %85 : vector<1x256xi32>
    %c1_i32_29 = arith.constant 1 : i32
    %87 = vector.broadcast %c1_i32_29 : i32 to vector<1x256xi32>
    %88 = arith.cmpi sge, %84, %87 : vector<1x256xi32>
    %cst_30 = arith.constant 0.000000e+00 : f32
    %89 = vector.shape_cast %86 : vector<1x256xi1> to vector<1x256xi1>
    %90 = vector.broadcast %89 : vector<1x256xi1> to vector<32x256xi1>
    %91 = vector.broadcast %cst_30 : f32 to vector<32x256xf32>
    %92 = arith.select %90, %66, %91 : vector<32x256xi1>, vector<32x256xf32>
    %cst_31 = arith.constant 0.000000e+00 : f32
    %93 = vector.shape_cast %88 : vector<1x256xi1> to vector<1x256xi1>
    %94 = vector.broadcast %93 : vector<1x256xi1> to vector<32x256xi1>
    %95 = vector.broadcast %cst_31 : f32 to vector<32x256xf32>
    %96 = arith.select %94, %66, %95 : vector<32x256xi1>, vector<32x256xf32>
    %cst_32 = arith.constant 0.000000e+00 : f32
    %97 = vector.broadcast %cst_32 : f32 to vector<32x17xf32>
    %98 = vector.extract_strided_slice %92 {offsets = [0, 0], sizes = [32, 239], strides = [1, 1]} : vector<32x256xf32> to vector<32x239xf32>
    %99 = tpu.concatenate %97, %98 in 1 : vector<32x17xf32>, vector<32x239xf32> -> vector<32x256xf32>
    %cst_33 = arith.constant 0.000000e+00 : f32
    %100 = vector.broadcast %cst_33 : f32 to vector<32x16xf32>
    %101 = vector.extract_strided_slice %66 {offsets = [0, 0], sizes = [32, 240], strides = [1, 1]} : vector<32x256xf32> to vector<32x240xf32>
    %102 = tpu.concatenate %100, %101 in 1 : vector<32x16xf32>, vector<32x240xf32> -> vector<32x256xf32>
    %cst_34 = arith.constant 0.000000e+00 : f32
    %103 = vector.broadcast %cst_34 : f32 to vector<32x15xf32>
    %104 = vector.extract_strided_slice %96 {offsets = [0, 0], sizes = [32, 241], strides = [1, 1]} : vector<32x256xf32> to vector<32x241xf32>
    %105 = tpu.concatenate %103, %104 in 1 : vector<32x15xf32>, vector<32x241xf32> -> vector<32x256xf32>
    %cst_35 = arith.constant 0.000000e+00 : f32
    %106 = vector.broadcast %cst_35 : f32 to vector<32x1xf32>
    %107 = vector.extract_strided_slice %92 {offsets = [0, 0], sizes = [32, 255], strides = [1, 1]} : vector<32x256xf32> to vector<32x255xf32>
    %108 = tpu.concatenate %106, %107 in 1 : vector<32x1xf32>, vector<32x255xf32> -> vector<32x256xf32>
    %cst_36 = arith.constant 0.000000e+00 : f32
    %109 = vector.broadcast %cst_36 : f32 to vector<32x1xf32>
    %110 = vector.extract_strided_slice %96 {offsets = [0, 1], sizes = [32, 255], strides = [1, 1]} : vector<32x256xf32> to vector<32x255xf32>
    %111 = tpu.concatenate %110, %109 in 1 : vector<32x255xf32>, vector<32x1xf32> -> vector<32x256xf32>
    %cst_37 = arith.constant 0.000000e+00 : f32
    %112 = vector.broadcast %cst_37 : f32 to vector<32x15xf32>
    %113 = vector.extract_strided_slice %92 {offsets = [0, 15], sizes = [32, 241], strides = [1, 1]} : vector<32x256xf32> to vector<32x241xf32>
    %114 = tpu.concatenate %113, %112 in 1 : vector<32x241xf32>, vector<32x15xf32> -> vector<32x256xf32>
    %cst_38 = arith.constant 0.000000e+00 : f32
    %115 = vector.broadcast %cst_38 : f32 to vector<32x16xf32>
    %116 = vector.extract_strided_slice %66 {offsets = [0, 16], sizes = [32, 240], strides = [1, 1]} : vector<32x256xf32> to vector<32x240xf32>
    %117 = tpu.concatenate %116, %115 in 1 : vector<32x240xf32>, vector<32x16xf32> -> vector<32x256xf32>
    %cst_39 = arith.constant 0.000000e+00 : f32
    %118 = vector.broadcast %cst_39 : f32 to vector<32x17xf32>
    %119 = vector.extract_strided_slice %96 {offsets = [0, 17], sizes = [32, 239], strides = [1, 1]} : vector<32x256xf32> to vector<32x239xf32>
    %120 = tpu.concatenate %119, %118 in 1 : vector<32x239xf32>, vector<32x17xf32> -> vector<32x256xf32>
    %121 = tpu.concatenate %99, %102, %105, %108, %66, %111, %114, %117, %120 in 0 : vector<32x256xf32>, vector<32x256xf32>, vector<32x256xf32>, vector<32x256xf32>, vector<32x256xf32>, vector<32x256xf32>, vector<32x256xf32>, vector<32x256xf32>, vector<32x256xf32> -> vector<288x256xf32>
    %122 = arith.truncf %121 : vector<288x256xf32> to vector<288x256xbf16>
    %c0_40 = arith.constant 0 : index
    %c0_41 = arith.constant 0 : index
    %123 = vector.load %arg3[%c0_40, %c0_41] : memref<32x288xbf16, #tpu.memory_space<vmem>>, vector<32x288xbf16>
    %cst_42 = arith.constant dense<0.000000e+00> : vector<32x256xf32>
    %124 = tpu.matmul %123, %122, %cst_42 {dimension_numbers = #tpu.dot_dimension_numbers<[1], [0], [0], [1], [0, 0, 1, 1], [], []>} : vector<32x288xbf16>, vector<288x256xbf16>, vector<32x256xf32> -> vector<32x256xf32>
    %125 = arith.mulf %124, %67 : vector<32x256xf32>
    %cst_43 = arith.constant 0.000000e+00 : f32
    %126 = vector.broadcast %cst_43 : f32 to vector<32x256xf32>
    %127 = arith.maximumf %125, %126 : vector<32x256xf32>
    %128 = vector.broadcast %cst_43 : f32 to vector<32x256xf32>
    %129 = arith.subf %125, %128 : vector<32x256xf32>
    %130 = arith.cmpf one, %129, %129 : vector<32x256xf32>
    %131 = vector.broadcast %cst_43 : f32 to vector<32x256xf32>
    %132 = arith.addf %125, %131 : vector<32x256xf32>
    %133 = math.absf %129 : vector<32x256xf32>
    %cst_44 = arith.constant 0.000000e+00 : f32
    %134 = vector.broadcast %cst_44 : f32 to vector<32x256xf32>
    %135 = arith.subf %134, %133 : vector<32x256xf32>
    %136 = math.exp %135 : vector<32x256xf32>
    %137 = math.log1p %136 : vector<32x256xf32>
    %138 = arith.addf %127, %137 : vector<32x256xf32>
    %139 = arith.select %130, %132, %138 : vector<32x256xi1>, vector<32x256xf32>
    %140 = arith.subf %9, %139 : vector<32x256xf32>
    %cst_45 = arith.constant 0.000000e+00 : f32
    %141 = vector.broadcast %cst_45 : f32 to vector<32x256xf32>
    %142 = arith.maximumf %140, %141 : vector<32x256xf32>
    %143 = vector.broadcast %cst_45 : f32 to vector<32x256xf32>
    %144 = arith.subf %140, %143 : vector<32x256xf32>
    %145 = arith.cmpf one, %144, %144 : vector<32x256xf32>
    %146 = vector.broadcast %cst_45 : f32 to vector<32x256xf32>
    %147 = arith.addf %140, %146 : vector<32x256xf32>
    %148 = math.absf %144 : vector<32x256xf32>
    %cst_46 = arith.constant 0.000000e+00 : f32
    %149 = vector.broadcast %cst_46 : f32 to vector<32x256xf32>
    %150 = arith.subf %149, %148 : vector<32x256xf32>
    %151 = math.exp %150 : vector<32x256xf32>
    %152 = math.log1p %151 : vector<32x256xf32>
    %153 = arith.addf %142, %152 : vector<32x256xf32>
    %154 = arith.select %145, %147, %153 : vector<32x256xi1>, vector<32x256xf32>
    %cst_47 = arith.constant 0.000000e+00 : f32
    %155 = vector.shape_cast %86 : vector<1x256xi1> to vector<1x256xi1>
    %156 = vector.broadcast %155 : vector<1x256xi1> to vector<32x256xi1>
    %157 = vector.broadcast %cst_47 : f32 to vector<32x256xf32>
    %158 = arith.select %156, %154, %157 : vector<32x256xi1>, vector<32x256xf32>
    %cst_48 = arith.constant 0.000000e+00 : f32
    %159 = vector.shape_cast %88 : vector<1x256xi1> to vector<1x256xi1>
    %160 = vector.broadcast %159 : vector<1x256xi1> to vector<32x256xi1>
    %161 = vector.broadcast %cst_48 : f32 to vector<32x256xf32>
    %162 = arith.select %160, %154, %161 : vector<32x256xi1>, vector<32x256xf32>
    %cst_49 = arith.constant 0.000000e+00 : f32
    %163 = vector.broadcast %cst_49 : f32 to vector<32x17xf32>
    %164 = vector.extract_strided_slice %158 {offsets = [0, 0], sizes = [32, 239], strides = [1, 1]} : vector<32x256xf32> to vector<32x239xf32>
    %165 = tpu.concatenate %163, %164 in 1 : vector<32x17xf32>, vector<32x239xf32> -> vector<32x256xf32>
    %cst_50 = arith.constant 0.000000e+00 : f32
    %166 = vector.broadcast %cst_50 : f32 to vector<32x16xf32>
    %167 = vector.extract_strided_slice %154 {offsets = [0, 0], sizes = [32, 240], strides = [1, 1]} : vector<32x256xf32> to vector<32x240xf32>
    %168 = tpu.concatenate %166, %167 in 1 : vector<32x16xf32>, vector<32x240xf32> -> vector<32x256xf32>
    %cst_51 = arith.constant 0.000000e+00 : f32
    %169 = vector.broadcast %cst_51 : f32 to vector<32x15xf32>
    %170 = vector.extract_strided_slice %162 {offsets = [0, 0], sizes = [32, 241], strides = [1, 1]} : vector<32x256xf32> to vector<32x241xf32>
    %171 = tpu.concatenate %169, %170 in 1 : vector<32x15xf32>, vector<32x241xf32> -> vector<32x256xf32>
    %cst_52 = arith.constant 0.000000e+00 : f32
    %172 = vector.broadcast %cst_52 : f32 to vector<32x1xf32>
    %173 = vector.extract_strided_slice %158 {offsets = [0, 0], sizes = [32, 255], strides = [1, 1]} : vector<32x256xf32> to vector<32x255xf32>
    %174 = tpu.concatenate %172, %173 in 1 : vector<32x1xf32>, vector<32x255xf32> -> vector<32x256xf32>
    %cst_53 = arith.constant 0.000000e+00 : f32
    %175 = vector.broadcast %cst_53 : f32 to vector<32x1xf32>
    %176 = vector.extract_strided_slice %162 {offsets = [0, 1], sizes = [32, 255], strides = [1, 1]} : vector<32x256xf32> to vector<32x255xf32>
    %177 = tpu.concatenate %176, %175 in 1 : vector<32x255xf32>, vector<32x1xf32> -> vector<32x256xf32>
    %cst_54 = arith.constant 0.000000e+00 : f32
    %178 = vector.broadcast %cst_54 : f32 to vector<32x15xf32>
    %179 = vector.extract_strided_slice %158 {offsets = [0, 15], sizes = [32, 241], strides = [1, 1]} : vector<32x256xf32> to vector<32x241xf32>
    %180 = tpu.concatenate %179, %178 in 1 : vector<32x241xf32>, vector<32x15xf32> -> vector<32x256xf32>
    %cst_55 = arith.constant 0.000000e+00 : f32
    %181 = vector.broadcast %cst_55 : f32 to vector<32x16xf32>
    %182 = vector.extract_strided_slice %154 {offsets = [0, 16], sizes = [32, 240], strides = [1, 1]} : vector<32x256xf32> to vector<32x240xf32>
    %183 = tpu.concatenate %182, %181 in 1 : vector<32x240xf32>, vector<32x16xf32> -> vector<32x256xf32>
    %cst_56 = arith.constant 0.000000e+00 : f32
    %184 = vector.broadcast %cst_56 : f32 to vector<32x17xf32>
    %185 = vector.extract_strided_slice %162 {offsets = [0, 17], sizes = [32, 239], strides = [1, 1]} : vector<32x256xf32> to vector<32x239xf32>
    %186 = tpu.concatenate %185, %184 in 1 : vector<32x239xf32>, vector<32x17xf32> -> vector<32x256xf32>
    %187 = tpu.concatenate %165, %168, %171, %174, %154, %177, %180, %183, %186 in 0 : vector<32x256xf32>, vector<32x256xf32>, vector<32x256xf32>, vector<32x256xf32>, vector<32x256xf32>, vector<32x256xf32>, vector<32x256xf32>, vector<32x256xf32>, vector<32x256xf32> -> vector<288x256xf32>
    %188 = arith.truncf %187 : vector<288x256xf32> to vector<288x256xbf16>
    %c0_57 = arith.constant 0 : index
    %c0_58 = arith.constant 0 : index
    %189 = vector.load %arg4[%c0_57, %c0_58] : memref<32x288xbf16, #tpu.memory_space<vmem>>, vector<32x288xbf16>
    %cst_59 = arith.constant dense<0.000000e+00> : vector<32x256xf32>
    %190 = tpu.matmul %189, %188, %cst_59 {dimension_numbers = #tpu.dot_dimension_numbers<[1], [0], [0], [1], [0, 0, 1, 1], [], []>} : vector<32x288xbf16>, vector<288x256xbf16>, vector<32x256xf32> -> vector<32x256xf32>
    %c0_60 = arith.constant 0 : index
    %c0_61 = arith.constant 0 : index
    %191 = vector.load %arg8[%c0_60, %c0_61] : memref<32x32xbf16, #tpu.memory_space<vmem>>, vector<32x32xbf16>
    %192 = arith.truncf %154 : vector<32x256xf32> to vector<32x256xbf16>
    %cst_62 = arith.constant dense<0.000000e+00> : vector<32x256xf32>
    %193 = tpu.matmul %191, %192, %cst_62 {dimension_numbers = #tpu.dot_dimension_numbers<[1], [0], [0], [1], [0, 0, 1, 1], [], []>} : vector<32x32xbf16>, vector<32x256xbf16>, vector<32x256xf32> -> vector<32x256xf32>
    %194 = vector.broadcast %3 : vector<32x1xf32> to vector<32x256xf32>
    %195 = arith.addf %193, %194 : vector<32x256xf32>
    %196 = arith.negf %195 : vector<32x256xf32>
    %197 = math.exp %196 : vector<32x256xf32>
    %cst_63 = arith.constant 1.000000e+00 : f32
    %198 = vector.broadcast %cst_63 : f32 to vector<32x256xf32>
    %199 = arith.addf %198, %197 : vector<32x256xf32>
    %200 = arith.divf %198, %199 : vector<32x256xf32>
    %201 = arith.addf %154, %190 : vector<32x256xf32>
    %202 = vector.broadcast %7 : vector<32x1xf32> to vector<32x256xf32>
    %203 = arith.mulf %202, %201 : vector<32x256xf32>
    %204 = vector.broadcast %6 : vector<32x1xf32> to vector<32x256xf32>
    %205 = arith.mulf %204, %154 : vector<32x256xf32>
    %206 = arith.mulf %205, %190 : vector<32x256xf32>
    %207 = arith.addf %203, %206 : vector<32x256xf32>
    %cst_64 = arith.constant 0.000000e+00 : f32
    %208 = vector.broadcast %cst_64 : f32 to vector<32x256xf32>
    %209 = arith.maximumf %207, %208 : vector<32x256xf32>
    %210 = vector.broadcast %cst_64 : f32 to vector<32x256xf32>
    %211 = arith.subf %207, %210 : vector<32x256xf32>
    %212 = arith.cmpf one, %211, %211 : vector<32x256xf32>
    %213 = vector.broadcast %cst_64 : f32 to vector<32x256xf32>
    %214 = arith.addf %207, %213 : vector<32x256xf32>
    %215 = math.absf %211 : vector<32x256xf32>
    %cst_65 = arith.constant 0.000000e+00 : f32
    %216 = vector.broadcast %cst_65 : f32 to vector<32x256xf32>
    %217 = arith.subf %216, %215 : vector<32x256xf32>
    %218 = math.exp %217 : vector<32x256xf32>
    %219 = math.log1p %218 : vector<32x256xf32>
    %220 = arith.addf %209, %219 : vector<32x256xf32>
    %221 = arith.select %212, %214, %220 : vector<32x256xi1>, vector<32x256xf32>
    %cst_66 = arith.constant 1.000000e+00 : f32
    %222 = vector.broadcast %cst_66 : f32 to vector<32x256xf32>
    %223 = arith.subf %222, %200 : vector<32x256xf32>
    %224 = arith.mulf %223, %9 : vector<32x256xf32>
    %225 = arith.mulf %200, %221 : vector<32x256xf32>
    %226 = arith.addf %224, %225 : vector<32x256xf32>
    %c0_67 = arith.constant 0 : index
    %c0_68 = arith.constant 0 : index
    %c0_69 = arith.constant 0 : index
    %227 = vector.load %arg12[%c0_67, %c0_68, %c0_69] : memref<1x32x256xf32, #tpu.memory_space<vmem>>, vector<1x32x256xf32>
    %228 = vector.shape_cast %227 : vector<1x32x256xf32> to vector<32x256xf32>
    %229 = vector.shape_cast %226 : vector<32x256xf32> to vector<1x32x256xf32>
    tpu.vector_store %arg12[%c0_67, %c0_68, %c0_69], %229 {strides = array<i32>} : memref<1x32x256xf32, #tpu.memory_space<vmem>>, vector<1x32x256xf32>,
    return
  }
  func.func @transform_0(%arg0: i32) -> (i32, i32, i32) {
    %c0_i32 = arith.constant 0 : i32
    %c0_i32_0 = arith.constant 0 : i32
    %c0_i32_1 = arith.constant 0 : i32
    return %arg0, %c0_i32, %c0_i32_0 : i32, i32, i32
  }
  func.func @transform_1(%arg0: i32) -> (i32, i32, i32) {
    %c0_i32 = arith.constant 0 : i32
    %c0_i32_0 = arith.constant 0 : i32
    %c0_i32_1 = arith.constant 0 : i32
    return %arg0, %c0_i32, %c0_i32_0 : i32, i32, i32
  }
  func.func @transform_2(%arg0: i32) -> (i32, i32) {
    %c0_i32 = arith.constant 0 : i32
    %c0_i32_0 = arith.constant 0 : i32
    %c0_i32_1 = arith.constant 0 : i32
    return %c0_i32, %c0_i32_0 : i32, i32
  }
  func.func @transform_3(%arg0: i32) -> (i32, i32) {
    %c0_i32 = arith.constant 0 : i32
    %c0_i32_0 = arith.constant 0 : i32
    %c0_i32_1 = arith.constant 0 : i32
    return %c0_i32, %c0_i32_0 : i32, i32
  }
  func.func @transform_4(%arg0: i32) -> (i32, i32) {
    %c0_i32 = arith.constant 0 : i32
    %c0_i32_0 = arith.constant 0 : i32
    %c0_i32_1 = arith.constant 0 : i32
    return %c0_i32, %c0_i32_0 : i32, i32
  }
  func.func @transform_5(%arg0: i32) -> (i32, i32) {
    %c0_i32 = arith.constant 0 : i32
    %c0_i32_0 = arith.constant 0 : i32
    %c0_i32_1 = arith.constant 0 : i32
    return %c0_i32, %c0_i32_0 : i32, i32
  }
  func.func @transform_6(%arg0: i32) -> (i32, i32) {
    %c0_i32 = arith.constant 0 : i32
    %c0_i32_0 = arith.constant 0 : i32
    %c0_i32_1 = arith.constant 0 : i32
    return %c0_i32, %c0_i32_0 : i32, i32
  }
  func.func @transform_7(%arg0: i32) -> (i32, i32) {
    %c0_i32 = arith.constant 0 : i32
    %c0_i32_0 = arith.constant 0 : i32
    %c0_i32_1 = arith.constant 0 : i32
    return %c0_i32, %c0_i32_0 : i32, i32
  }
  func.func @transform_8(%arg0: i32) -> (i32, i32) {
    %c0_i32 = arith.constant 0 : i32
    %c0_i32_0 = arith.constant 0 : i32
    %c0_i32_1 = arith.constant 0 : i32
    return %c0_i32, %c0_i32_0 : i32, i32
  }
  func.func @transform_9(%arg0: i32) -> (i32, i32) {
    %c0_i32 = arith.constant 0 : i32
    %c0_i32_0 = arith.constant 0 : i32
    %c0_i32_1 = arith.constant 0 : i32
    return %c0_i32, %c0_i32_0 : i32, i32
  }
  func.func @transform_10(%arg0: i32) -> (i32, i32) {
    %c0_i32 = arith.constant 0 : i32
    %c0_i32_0 = arith.constant 0 : i32
    %c0_i32_1 = arith.constant 0 : i32
    return %c0_i32, %c0_i32_0 : i32, i32
  }
  func.func @transform_11(%arg0: i32) -> (i32, i32, i32) {
    %c0_i32 = arith.constant 0 : i32
    %c0_i32_0 = arith.constant 0 : i32
    %c0_i32_1 = arith.constant 0 : i32
    return %arg0, %c0_i32, %c0_i32_0 : i32, i32, i32
  }
}

</mosaic_0001>

<llo_original>
// kernel: tpu_custom_call.1
$region0: #{tpu_custom_call.1}
  #allocation0 [shape = 'u32[]', space=smem, size = 0x4, offset = 0x4, fixed_abs, tag = 'smem constant byte address 0x4 - core index']
  #allocation1 [shape = 'u32[144,128]{1,0:T(1,128)}', space=vmem, size = 0x12000, scoped, tag = 'internal scratch']
  %s0 = inlined_call_operand.hbm [shape: f32[2,32,256], index: 0, kind: input, shape index: {}]
  %s1 = inlined_call_operand.vmem [shape: bf16[2,64,64], index: 1, kind: input, shape index: {}]
  %s2 = inlined_call_operand.hbm [shape: bf16[32,288], index: 2, kind: input, shape index: {}]
  %s3 = inlined_call_operand.hbm [shape: bf16[32,288], index: 3, kind: input, shape index: {}]
  %s4 = inlined_call_operand.vmem [shape: bf16[32,64], index: 4, kind: input, shape index: {}]
  %s5 = inlined_call_operand.hbm [shape: bf16[32,32], index: 5, kind: input, shape index: {}]
  %s6 = inlined_call_operand.hbm [shape: bf16[32,32], index: 6, kind: input, shape index: {}]
  %s7 = inlined_call_operand.vmem [shape: bf16[32,32], index: 7, kind: input, shape index: {}]
  %s8 = inlined_call_operand.hbm [shape: f32[64,256], index: 8, kind: input, shape index: {}]
  %s9 = inlined_call_operand.vmem [shape: f32[32,8], index: 9, kind: input, shape index: {}]
  %s10 = inlined_call_operand.vmem [shape: f32[32,1], index: 10, kind: input, shape index: {}]
  %s11 = inlined_call_operand.hbm [shape: f32[2,32,256], index: 11, kind: output, shape index: {}]
  %s12 = sld [smem:[#allocation0]]
  $region101: #{tpu_custom_call.1} parent=0
    _
  %s14 = ssub.s32 1, %s12
  %s15 = scalar_select 0, %s14, %s12
  $region1: #{tpu_custom_call.1} parent=0
    #allocation2 [shape = 'u8[65536]{0}', space=vmem, size = 0x10000, scoped, tag = 'input window, operand 0']
    #allocation3 [shape = 's32[2]{0}', space=sflag, size = 0x8, scoped, tag = 'scoped memory for tpu_custom_call.1']
    #allocation4 [shape = 's32[2]{0}', space=sflag, size = 0x8, scoped, tag = 'scoped memory for tpu_custom_call.1']
    #allocation5 [shape = 'u8[24576]{0}', space=vmem, size = 0x6000, scoped, tag = 'input window, operand 2, single buffered']
    #allocation6 [shape = 's32[1]{0}', space=sflag, size = 0x4, scoped, tag = 'scoped memory for tpu_custom_call.1']
    #allocation7 [shape = 'u8[24576]{0}', space=vmem, size = 0x6000, scoped, tag = 'input window, operand 3, single buffered']
    #allocation8 [shape = 'u8[8192]{0}', space=vmem, size = 0x2000, scoped, tag = 'input window, operand 5, single buffered']
    #allocation9 [shape = 's32[1]{0}', space=sflag, size = 0x4, scoped, tag = 'scoped memory for tpu_custom_call.1']
    #allocation10 [shape = 'u8[8192]{0}', space=vmem, size = 0x2000, scoped, tag = 'input window, operand 6, single buffered']
    #allocation11 [shape = 'u8[65536]{0}', space=vmem, size = 0x10000, scoped, tag = 'input window, operand 8, single buffered']
    #allocation12 [shape = 's32[1]{0}', space=sflag, size = 0x4, scoped, tag = 'scoped memory for tpu_custom_call.1']
    #allocation13 [shape = 'u8[65536]{0}', space=vmem, size = 0x10000, scoped, tag = 'output window, operand 0']
    %16 = vsyncpa [#allocation3], 0
    %s17 = scalar_lea.sflag [#allocation3], 1
    %18 = vsyncpa %s17, 0
    %19 = vsyncpa [#allocation6], 0
    %20 = vsyncpa [#allocation9], 0
    %21 = vsyncpa [#allocation12], 0
    %22 = vsyncpa [#allocation4], 0
    %s23 = scalar_lea.sflag [#allocation4], 1
    %24 = vsyncpa %s23, 0
    loop: start=0, step=1, limit=4
    $region2: #{tpu_custom_call.1} parent=1 // loop_pre_header
      _
    $region3: #{tpu_custom_call.1} parent=1 // loop_header
      %s26 = sphi 0, %s30
      %p27 = scmp.ge.s32.totalorder %s26, 4
      %s36 = sphi 0, %s38
      %s39 = sphi 0, %s36
      %s40 = sphi 0, %s39
      %s56 = sphi 0, %s40
      %s62 = sphi 0, %s64
      %s65 = sphi 0, %s62
      %s66 = sphi 0, %s65
      %s82 = sphi 0, %s66
      %s86 = sphi 0, %s86
      %s88 = sphi 0, %s86
      %s89 = sphi 0, %s88
      %s103 = sphi 0, %s89
      %s107 = sphi 0, %s107
      %s109 = sphi 0, %s107
      %s110 = sphi 0, %s109
      %s124 = sphi 0, %s110
      %s128 = sphi 0, %s128
      %s130 = sphi 0, %s128
      %s131 = sphi 0, %s130
      %s145 = sphi 0, %s131
      %s149 = sphi 0, %s149
      %s151 = sphi 0, %s149
      %s152 = sphi 0, %s151
      %s166 = sphi 0, %s152
      %s170 = sphi 0, %s170
      %s172 = sphi 0, %s170
      %s173 = sphi 0, %s172
      %s187 = sphi 0, %s173
      %s191 = sphi 0, %s191
      %s193 = sphi 0, %s191
      %s194 = sphi 0, %s193
      %s208 = sphi 0, %s194
      %s212 = sphi 0, %s212
      %s214 = sphi 0, %s212
      %s215 = sphi 0, %s214
      %s229 = sphi 0, %s215
      %s233 = sphi 0, %s233
      %s235 = sphi 0, %s233
      %s236 = sphi 0, %s235
      %s250 = sphi 0, %s236
      %s254 = sphi 0, %s254
      %s256 = sphi 0, %s254
      %s257 = sphi 0, %s256
      %s271 = sphi 0, %s257
      %s277 = sphi 0, %s279
      %s280 = sphi 0, %s277
      %s281 = sphi 0, %s280
      %s297 = sphi 0, %s281
    $region4: #{tpu_custom_call.1} parent=1 // loop_header_branch
      %29 = sbr.rel (%p27) target = $region8
    $region5: #{tpu_custom_call.1} parent=1 // loop_body
      %s31 = ssub.s32 %s26, 1
      %s32 = ssub.s32 %s26, 2
      %s33 = sadd.s32 %s26, 1
      %s34 = ssub.s32 %s26, %s33
      %p35 = scmp.eq.s32.totalorder %s34, 0
      %s37 = sadd.s32 %s36, 1
      %s38 = scalar_select %p35, %s36, %s37
      %p41 = pneg %p35
      %p42 = scmp.eq.s32.totalorder %s26, 1
      %p43 = por %p41, %p42
      %p44 = scmp.ne.s32.totalorder %s36, %s39
      %p45 = scmp.eq.s32.totalorder %s26, 0
      %p46 = por %p44, %p45
      %p47 = scmp.ne.s32.totalorder %s36, %s39
      %p48 = scmp.eq.s32.totalorder %s31, 1
      %p49 = por %p47, %p48
      %p50 = scmp.ne.s32.totalorder %s39, %s40
      %p51 = scmp.eq.s32.totalorder %s31, 0
      %p52 = por %p50, %p51
      %p53 = scmp.ne.s32.totalorder %s39, %s40
      %p54 = scmp.eq.s32.totalorder %s32, 1
      %p55 = por %p53, %p54
      %p57 = scmp.ne.s32.totalorder %s40, %s56
      %p58 = scmp.eq.s32.totalorder %s32, 0
      %p59 = por %p57, %p58
      %s60 = ssub.s32 %s26, %s33
      %p61 = scmp.eq.s32.totalorder %s60, 0
      %s63 = sadd.s32 %s62, 1
      %s64 = scalar_select %p61, %s62, %s63
      %p67 = pneg %p61
      %p68 = scmp.eq.s32.totalorder %s26, 1
      %p69 = por %p67, %p68
      %p70 = scmp.ne.s32.totalorder %s62, %s65
      %p71 = scmp.eq.s32.totalorder %s26, 0
      %p72 = por %p70, %p71
      %p73 = scmp.ne.s32.totalorder %s62, %s65
      %p74 = scmp.eq.s32.totalorder %s31, 1
      %p75 = por %p73, %p74
      %p76 = scmp.ne.s32.totalorder %s65, %s66
      %p77 = scmp.eq.s32.totalorder %s31, 0
      %p78 = por %p76, %p77
      %p79 = scmp.ne.s32.totalorder %s65, %s66
      %p80 = scmp.eq.s32.totalorder %s32, 1
      %p81 = por %p79, %p80
      %p83 = scmp.ne.s32.totalorder %s66, %s82
      %p84 = scmp.eq.s32.totalorder %s32, 0
      %p85 = por %p83, %p84
      %s87 = sadd.s32 %s86, 1
      %p90 = scmp.eq.s32.totalorder %s26, 1
      %p91 = scmp.ne.s32.totalorder %s86, %s88
      %p92 = scmp.eq.s32.totalorder %s26, 0
      %p93 = por %p91, %p92
      %p94 = scmp.ne.s32.totalorder %s86, %s88
      %p95 = scmp.eq.s32.totalorder %s31, 1
      %p96 = por %p94, %p95
      %p97 = scmp.ne.s32.totalorder %s88, %s89
      %p98 = scmp.eq.s32.totalorder %s31, 0
      %p99 = por %p97, %p98
      %p100 = scmp.ne.s32.totalorder %s88, %s89
      %p101 = scmp.eq.s32.totalorder %s32, 1
      %p102 = por %p100, %p101
      %p104 = scmp.ne.s32.totalorder %s89, %s103
      %p105 = scmp.eq.s32.totalorder %s32, 0
      %p106 = por %p104, %p105
      %s108 = sadd.s32 %s107, 1
      %p111 = scmp.eq.s32.totalorder %s26, 1
      %p112 = scmp.ne.s32.totalorder %s107, %s109
      %p113 = scmp.eq.s32.totalorder %s26, 0
      %p114 = por %p112, %p113
      %p115 = scmp.ne.s32.totalorder %s107, %s109
      %p116 = scmp.eq.s32.totalorder %s31, 1
      %p117 = por %p115, %p116
      %p118 = scmp.ne.s32.totalorder %s109, %s110
      %p119 = scmp.eq.s32.totalorder %s31, 0
      %p120 = por %p118, %p119
      %p121 = scmp.ne.s32.totalorder %s109, %s110
      %p122 = scmp.eq.s32.totalorder %s32, 1
      %p123 = por %p121, %p122
      %p125 = scmp.ne.s32.totalorder %s110, %s124
      %p126 = scmp.eq.s32.totalorder %s32, 0
      %p127 = por %p125, %p126
      %s129 = sadd.s32 %s128, 1
      %p132 = scmp.eq.s32.totalorder %s26, 1
      %p133 = scmp.ne.s32.totalorder %s128, %s130
      %p134 = scmp.eq.s32.totalorder %s26, 0
      %p135 = por %p133, %p134
      %p136 = scmp.ne.s32.totalorder %s128, %s130
      %p137 = scmp.eq.s32.totalorder %s31, 1
      %p138 = por %p136, %p137
      %p139 = scmp.ne.s32.totalorder %s130, %s131
      %p140 = scmp.eq.s32.totalorder %s31, 0
      %p141 = por %p139, %p140
      %p142 = scmp.ne.s32.totalorder %s130, %s131
      %p143 = scmp.eq.s32.totalorder %s32, 1
      %p144 = por %p142, %p143
      %p146 = scmp.ne.s32.totalorder %s131, %s145
      %p147 = scmp.eq.s32.totalorder %s32, 0
      %p148 = por %p146, %p147
      %s150 = sadd.s32 %s149, 1
      %p153 = scmp.eq.s32.totalorder %s26, 1
      %p154 = scmp.ne.s32.totalorder %s149, %s151
      %p155 = scmp.eq.s32.totalorder %s26, 0
      %p156 = por %p154, %p155
      %p157 = scmp.ne.s32.totalorder %s149, %s151
      %p158 = scmp.eq.s32.totalorder %s31, 1
      %p159 = por %p157, %p158
      %p160 = scmp.ne.s32.totalorder %s151, %s152
      %p161 = scmp.eq.s32.totalorder %s31, 0
      %p162 = por %p160, %p161
      %p163 = scmp.ne.s32.totalorder %s151, %s152
      %p164 = scmp.eq.s32.totalorder %s32, 1
      %p165 = por %p163, %p164
      %p167 = scmp.ne.s32.totalorder %s152, %s166
      %p168 = scmp.eq.s32.totalorder %s32, 0
      %p169 = por %p167, %p168
      %s171 = sadd.s32 %s170, 1
      %p174 = scmp.eq.s32.totalorder %s26, 1
      %p175 = scmp.ne.s32.totalorder %s170, %s172
      %p176 = scmp.eq.s32.totalorder %s26, 0
      %p177 = por %p175, %p176
      %p178 = scmp.ne.s32.totalorder %s170, %s172
      %p179 = scmp.eq.s32.totalorder %s31, 1
      %p180 = por %p178, %p179
      %p181 = scmp.ne.s32.totalorder %s172, %s173
      %p182 = scmp.eq.s32.totalorder %s31, 0
      %p183 = por %p181, %p182
      %p184 = scmp.ne.s32.totalorder %s172, %s173
      %p185 = scmp.eq.s32.totalorder %s32, 1
      %p186 = por %p184, %p185
      %p188 = scmp.ne.s32.totalorder %s173, %s187
      %p189 = scmp.eq.s32.totalorder %s32, 0
      %p190 = por %p188, %p189
      %s192 = sadd.s32 %s191, 1
      %p195 = scmp.eq.s32.totalorder %s26, 1
      %p196 = scmp.ne.s32.totalorder %s191, %s193
      %p197 = scmp.eq.s32.totalorder %s26, 0
      %p198 = por %p196, %p197
      %p199 = scmp.ne.s32.totalorder %s191, %s193
      %p200 = scmp.eq.s32.totalorder %s31, 1
      %p201 = por %p199, %p200
      %p202 = scmp.ne.s32.totalorder %s193, %s194
      %p203 = scmp.eq.s32.totalorder %s31, 0
      %p204 = por %p202, %p203
      %p205 = scmp.ne.s32.totalorder %s193, %s194
      %p206 = scmp.eq.s32.totalorder %s32, 1
      %p207 = por %p205, %p206
      %p209 = scmp.ne.s32.totalorder %s194, %s208
      %p210 = scmp.eq.s32.totalorder %s32, 0
      %p211 = por %p209, %p210
      %s213 = sadd.s32 %s212, 1
      %p216 = scmp.eq.s32.totalorder %s26, 1
      %p217 = scmp.ne.s32.totalorder %s212, %s214
      %p218 = scmp.eq.s32.totalorder %s26, 0
      %p219 = por %p217, %p218
      %p220 = scmp.ne.s32.totalorder %s212, %s214
      %p221 = scmp.eq.s32.totalorder %s31, 1
      %p222 = por %p220, %p221
      %p223 = scmp.ne.s32.totalorder %s214, %s215
      %p224 = scmp.eq.s32.totalorder %s31, 0
      %p225 = por %p223, %p224
      %p226 = scmp.ne.s32.totalorder %s214, %s215
      %p227 = scmp.eq.s32.totalorder %s32, 1
      %p228 = por %p226, %p227
      %p230 = scmp.ne.s32.totalorder %s215, %s229
      %p231 = scmp.eq.s32.totalorder %s32, 0
      %p232 = por %p230, %p231
      %s234 = sadd.s32 %s233, 1
      %p237 = scmp.eq.s32.totalorder %s26, 1
      %p238 = scmp.ne.s32.totalorder %s233, %s235
      %p239 = scmp.eq.s32.totalorder %s26, 0
      %p240 = por %p238, %p239
      %p241 = scmp.ne.s32.totalorder %s233, %s235
      %p242 = scmp.eq.s32.totalorder %s31, 1
      %p243 = por %p241, %p242
      %p244 = scmp.ne.s32.totalorder %s235, %s236
      %p245 = scmp.eq.s32.totalorder %s31, 0
      %p246 = por %p244, %p245
      %p247 = scmp.ne.s32.totalorder %s235, %s236
      %p248 = scmp.eq.s32.totalorder %s32, 1
      %p249 = por %p247, %p248
      %p251 = scmp.ne.s32.totalorder %s236, %s250
      %p252 = scmp.eq.s32.totalorder %s32, 0
      %p253 = por %p251, %p252
      %s255 = sadd.s32 %s254, 1
      %p258 = scmp.eq.s32.totalorder %s26, 1
      %p259 = scmp.ne.s32.totalorder %s254, %s256
      %p260 = scmp.eq.s32.totalorder %s26, 0
      %p261 = por %p259, %p260
      %p262 = scmp.ne.s32.totalorder %s254, %s256
      %p263 = scmp.eq.s32.totalorder %s31, 1
      %p264 = por %p262, %p263
      %p265 = scmp.ne.s32.totalorder %s256, %s257
      %p266 = scmp.eq.s32.totalorder %s31, 0
      %p267 = por %p265, %p266
      %p268 = scmp.ne.s32.totalorder %s256, %s257
      %p269 = scmp.eq.s32.totalorder %s32, 1
      %p270 = por %p268, %p269
      %p272 = scmp.ne.s32.totalorder %s257, %s271
      %p273 = scmp.eq.s32.totalorder %s32, 0
      %p274 = por %p272, %p273
      %s275 = ssub.s32 %s26, %s33
      %p276 = scmp.eq.s32.totalorder %s275, 0
      %s278 = sadd.s32 %s277, 1
      %s279 = scalar_select %p276, %s277, %s278
      %p282 = pneg %p276
      %p283 = scmp.eq.s32.totalorder %s26, 1
      %p284 = por %p282, %p283
      %p285 = scmp.ne.s32.totalorder %s277, %s280
      %p286 = scmp.eq.s32.totalorder %s26, 0
      %p287 = por %p285, %p286
      %p288 = scmp.ne.s32.totalorder %s277, %s280
      %p289 = scmp.eq.s32.totalorder %s31, 1
      %p290 = por %p288, %p289
      %p291 = scmp.ne.s32.totalorder %s280, %s281
      %p292 = scmp.eq.s32.totalorder %s31, 0
      %p293 = por %p291, %p292
      %p294 = scmp.ne.s32.totalorder %s280, %s281
      %p295 = scmp.eq.s32.totalorder %s32, 1
      %p296 = por %p294, %p295
      %p298 = scmp.ne.s32.totalorder %s281, %s297
      %p299 = scmp.eq.s32.totalorder %s32, 0
      %p300 = por %p298, %p299
      %p301 = scmp.le.s32.totalorder 1, %s26
      %p302 = scmp.lt.s32.totalorder %s26, 3
      %p303 = pnand %p301, %p302
      %p304 = pneg %p303
      // Predicated region
      $region9: #{tpu_custom_call.1} parent=5 // pred_check
        _
      $region10: #{tpu_custom_call.1} parent=5 // pred_check_branch
        %306 = sbr.rel (%p303) target = $region12
      $region11: #{tpu_custom_call.1} parent=5 // pred_region
        %s307 = ssub.s32 %s26, 1
        // Predicated region
        $region13: #{tpu_custom_call.1} parent=11 // pred_check
          %p308 = pneg %p99
        $region14: #{tpu_custom_call.1} parent=11 // pred_check_branch
          %310 = sbr.rel (%p308) target = $region16
        $region15: #{tpu_custom_call.1} parent=11 // pred_region
          %s312 = ssub.s32 768, 768
          %313 = vsyncadd [#allocation6], %s312
          %s314 = sshll.u32 [#allocation5], 4
          %s315 = int_to_ptr.vmem [resolvable:$true] %s314
          %320 = dma.hbm_to_vmem [thread:$0]  %s2, 768, %s315, [#allocation6], 192, 192, 12
        $region16: #{tpu_custom_call.1} parent=11 // pred_fallthru
          _
        // Predicated region
        $region17: #{tpu_custom_call.1} parent=11 // pred_check
          %p321 = pneg %p120
        $region18: #{tpu_custom_call.1} parent=11 // pred_check_branch
          %323 = sbr.rel (%p321) target = $region20
        $region19: #{tpu_custom_call.1} parent=11 // pred_region
          %s325 = ssub.s32 768, 768
          %326 = vsyncadd [#allocation6], %s325
          %s327 = sshll.u32 [#allocation7], 4
          %s328 = int_to_ptr.vmem [resolvable:$true] %s327
          %333 = dma.hbm_to_vmem [thread:$0]  %s3, 768, %s328, [#allocation6], 192, 192, 12
        $region20: #{tpu_custom_call.1} parent=11 // pred_fallthru
          _
        // Predicated region
        $region21: #{tpu_custom_call.1} parent=11 // pred_check
          %p334 = pneg %p141
        $region22: #{tpu_custom_call.1} parent=11 // pred_check_branch
          %336 = sbr.rel (%p334) target = $region24
        $region23: #{tpu_custom_call.1} parent=11 // pred_region
          _
        $region24: #{tpu_custom_call.1} parent=11 // pred_fallthru
          _
        // Predicated region
        $region25: #{tpu_custom_call.1} parent=11 // pred_check
          %p337 = pneg %p162
        $region26: #{tpu_custom_call.1} parent=11 // pred_check_branch
          %339 = sbr.rel (%p337) target = $region28
        $region27: #{tpu_custom_call.1} parent=11 // pred_region
          %s341 = ssub.s32 256, 256
          %342 = vsyncadd [#allocation9], %s341
          %s343 = sshll.u32 [#allocation8], 4
          %s344 = int_to_ptr.vmem [resolvable:$true] %s343
          %349 = dma.hbm_to_vmem [thread:$0]  %s5, 256, %s344, [#allocation9], 64, 64, 4
        $region28: #{tpu_custom_call.1} parent=11 // pred_fallthru
          _
        // Predicated region
        $region29: #{tpu_custom_call.1} parent=11 // pred_check
          %p350 = pneg %p183
        $region30: #{tpu_custom_call.1} parent=11 // pred_check_branch
          %352 = sbr.rel (%p350) target = $region32
        $region31: #{tpu_custom_call.1} parent=11 // pred_region
          %s354 = ssub.s32 256, 256
          %355 = vsyncadd [#allocation9], %s354
          %s356 = sshll.u32 [#allocation10], 4
          %s357 = int_to_ptr.vmem [resolvable:$true] %s356
          %362 = dma.hbm_to_vmem [thread:$0]  %s6, 256, %s357, [#allocation9], 64, 64, 4
        $region32: #{tpu_custom_call.1} parent=11 // pred_fallthru
          _
        // Predicated region
        $region33: #{tpu_custom_call.1} parent=11 // pred_check
          %p363 = pneg %p204
        $region34: #{tpu_custom_call.1} parent=11 // pred_check_branch
          %365 = sbr.rel (%p363) target = $region36
        $region35: #{tpu_custom_call.1} parent=11 // pred_region
          _
        $region36: #{tpu_custom_call.1} parent=11 // pred_fallthru
          _
        // Predicated region
        $region37: #{tpu_custom_call.1} parent=11 // pred_check
          %p366 = pneg %p225
        $region38: #{tpu_custom_call.1} parent=11 // pred_check_branch
          %368 = sbr.rel (%p366) target = $region40
        $region39: #{tpu_custom_call.1} parent=11 // pred_region
          %s370 = ssub.s32 2048, 2048
          %371 = vsyncadd [#allocation12], %s370
          %s372 = sshll.u32 [#allocation11], 4
          %s373 = int_to_ptr.vmem [resolvable:$true] %s372
          %378 = dma.hbm_to_vmem [thread:$0]  %s8, 2048, %s373, [#allocation12], 256, 256, 16
        $region40: #{tpu_custom_call.1} parent=11 // pred_fallthru
          _
        // Predicated region
        $region41: #{tpu_custom_call.1} parent=11 // pred_check
          %p379 = pneg %p246
        $region42: #{tpu_custom_call.1} parent=11 // pred_check_branch
          %381 = sbr.rel (%p379) target = $region44
        $region43: #{tpu_custom_call.1} parent=11 // pred_region
          _
        $region44: #{tpu_custom_call.1} parent=11 // pred_fallthru
          _
        // Predicated region
        $region45: #{tpu_custom_call.1} parent=11 // pred_check
          %p382 = pneg %p267
        $region46: #{tpu_custom_call.1} parent=11 // pred_check_branch
          %384 = sbr.rel (%p382) target = $region48
        $region47: #{tpu_custom_call.1} parent=11 // pred_region
          _
        $region48: #{tpu_custom_call.1} parent=11 // pred_fallthru
          _
      $region12: #{tpu_custom_call.1} parent=5 // pred_fallthru
        _
      %p385 = scmp.lt.s32.totalorder %s26, 2
      // Predicated region
      $region49: #{tpu_custom_call.1} parent=5 // pred_check
        %p386 = pneg %p385
      $region50: #{tpu_custom_call.1} parent=5 // pred_check_branch
        %388 = sbr.rel (%p386) target = $region52
      $region51: #{tpu_custom_call.1} parent=5 // pred_region
        // Predicated region
        $region53: #{tpu_custom_call.1} parent=51 // pred_check
          %p389 = pneg %p46
        $region54: #{tpu_custom_call.1} parent=51 // pred_check_branch
          %391 = sbr.rel (%p389) target = $region56
        $region55: #{tpu_custom_call.1} parent=51 // pred_region
          %s392 = sand.u32 %s36, 1
          %s393 = scalar_lea.sflag [#allocation3], %s392
          %s394 = sand.u32 %s36, 1
          %s395 = smul.addr %s394, 64
          %s396 = scalar_lea.vmem [#allocation2], %s395
          %s398 = ssub.s32 1024, 1024
          %399 = vsyncadd %s393, %s398
          %s400 = smul.addr %s26, 8
          %s401 = smul.addr %s400, 128
          %s402 = scalar_lea.hbm %s0, %s401
          %s403 = sshll.u32 %s396, 4
          %s404 = int_to_ptr.vmem [resolvable:$true] %s403
          %409 = dma.hbm_to_vmem [thread:$0]  %s402, 1024, %s404, %s393, 256, 256, 16
        $region56: #{tpu_custom_call.1} parent=51 // pred_fallthru
          _
        // Predicated region
        $region57: #{tpu_custom_call.1} parent=51 // pred_check
          %p410 = pneg %p72
        $region58: #{tpu_custom_call.1} parent=51 // pred_check_branch
          %412 = sbr.rel (%p410) target = $region60
        $region59: #{tpu_custom_call.1} parent=51 // pred_region
          %p413 = scmp.lt.s32.totalorder %s26, 1
          %s414 = scalar_select %p413, %s26, 1
          %s415 = smul.addr %s414, 8
          %s416 = smul.addr %s415, 4
          %s417 = scalar_lea.vmem %s1, %s416
        $region60: #{tpu_custom_call.1} parent=51 // pred_fallthru
          _
      $region52: #{tpu_custom_call.1} parent=5 // pred_fallthru
        _
      %p418 = scmp.le.s32.totalorder 1, %s26
      %p419 = scmp.lt.s32.totalorder %s26, 3
      %p420 = pnand %p418, %p419
      %p421 = pneg %p420
      // Predicated region
      $region61: #{tpu_custom_call.1} parent=5 // pred_check
        _
      $region62: #{tpu_custom_call.1} parent=5 // pred_check_branch
        %423 = sbr.rel (%p420) target = $region64
      $region63: #{tpu_custom_call.1} parent=5 // pred_region
        %s424 = ssub.s32 %s26, 1
        %s425 = sand.u32 %s39, 1
        %s426 = scalar_lea.sflag [#allocation3], %s425
        %s427 = sand.u32 %s39, 1
        %s428 = smul.addr %s427, 64
        %s429 = scalar_lea.vmem [#allocation2], %s428
        // Predicated region
        $region65: #{tpu_custom_call.1} parent=63 // pred_check
          %p430 = pneg %p52
        $region66: #{tpu_custom_call.1} parent=63 // pred_check_branch
          %432 = sbr.rel (%p430) target = $region68
        $region67: #{tpu_custom_call.1} parent=63 // pred_region
          %433 = dma.done %s426, 1024
        $region68: #{tpu_custom_call.1} parent=63 // pred_fallthru
          _
        // Predicated region
        $region69: #{tpu_custom_call.1} parent=63 // pred_check
          %p434 = pneg %p99
        $region70: #{tpu_custom_call.1} parent=63 // pred_check_branch
          %436 = sbr.rel (%p434) target = $region72
        $region71: #{tpu_custom_call.1} parent=63 // pred_region
          %437 = dma.done [#allocation6], 768
        $region72: #{tpu_custom_call.1} parent=63 // pred_fallthru
          _
        // Predicated region
        $region73: #{tpu_custom_call.1} parent=63 // pred_check
          %p438 = pneg %p120
        $region74: #{tpu_custom_call.1} parent=63 // pred_check_branch
          %440 = sbr.rel (%p438) target = $region76
        $region75: #{tpu_custom_call.1} parent=63 // pred_region
          %441 = dma.done [#allocation6], 768
        $region76: #{tpu_custom_call.1} parent=63 // pred_fallthru
          _
        // Predicated region
        $region77: #{tpu_custom_call.1} parent=63 // pred_check
          %p442 = pneg %p162
        $region78: #{tpu_custom_call.1} parent=63 // pred_check_branch
          %444 = sbr.rel (%p442) target = $region80
        $region79: #{tpu_custom_call.1} parent=63 // pred_region
          %445 = dma.done [#allocation9], 256
        $region80: #{tpu_custom_call.1} parent=63 // pred_fallthru
          _
        // Predicated region
        $region81: #{tpu_custom_call.1} parent=63 // pred_check
          %p446 = pneg %p183
        $region82: #{tpu_custom_call.1} parent=63 // pred_check_branch
          %448 = sbr.rel (%p446) target = $region84
        $region83: #{tpu_custom_call.1} parent=63 // pred_region
          %449 = dma.done [#allocation9], 256
        $region84: #{tpu_custom_call.1} parent=63 // pred_fallthru
          _
        // Predicated region
        $region85: #{tpu_custom_call.1} parent=63 // pred_check
          %p450 = pneg %p225
        $region86: #{tpu_custom_call.1} parent=63 // pred_check_branch
          %452 = sbr.rel (%p450) target = $region88
        $region87: #{tpu_custom_call.1} parent=63 // pred_region
          %453 = dma.done [#allocation12], 2048
        $region88: #{tpu_custom_call.1} parent=63 // pred_fallthru
          _
        %s454 = sand.u32 %s39, 1
        %s455 = scalar_lea.sflag [#allocation3], %s454
        %s456 = sand.u32 %s39, 1
        %s457 = smul.addr %s456, 64
        %s458 = scalar_lea.vmem [#allocation2], %s457
        %p459 = pneg %p52
        %p460 = pneg %p49
        %p461 = scmp.lt.s32.totalorder %s31, 1
        %s462 = scalar_select %p461, %s31, 1
        %s463 = smul.addr %s462, 8
        %s464 = smul.addr %s463, 4
        %s465 = scalar_lea.vmem %s1, %s464
        %p466 = pneg %p78
        %p467 = pneg %p75
        %p468 = pneg %p99
        %p469 = pneg %p96
        %p470 = pneg %p120
        %p471 = pneg %p117
        %p472 = pneg %p141
        %p473 = pneg %p138
        %p474 = pneg %p162
        %p475 = pneg %p159
        %p476 = pneg %p183
        %p477 = pneg %p180
        %p478 = pneg %p204
        %p479 = pneg %p201
        %p480 = pneg %p225
        %p481 = pneg %p222
        %p482 = pneg %p246
        %p483 = pneg %p243
        %p484 = pneg %p267
        %p485 = pneg %p264
        %p486 = pneg %p293
        %p487 = pneg %p290
        %s488 = sand.u32 %s280, 1
        %s489 = scalar_lea.sflag [#allocation4], %s488
        %s490 = sand.u32 %s280, 1
        %s491 = smul.addr %s490, 64
        %s492 = scalar_lea.vmem [#allocation13], %s491
        %p493 = scmp.lt.s32.totalorder %s31, 1
        %s494 = scalar_select %p493, %s31, 1
        %s495 = smul.addr %s494, 8
        %s496 = smul.addr %s495, 4
        %s497 = scalar_lea.vmem %s1, %s496
        %v499 = vld [vmem:[%s9] sm:$0xff]
        %v500 = vld [vmem:[%s9 + $0x8] sm:$0xff]
        %v501 = vld [vmem:[%s9 + $0x10] sm:$0xff]
        %v502 = vld [vmem:[%s9 + $0x18] sm:$0xff]
        %v503 = vld [vmem:[%s429] sm:$0xff]
        %v504 = vld [vmem:[%s429 + $0x8] sm:$0xff]
        %v505 = vld [vmem:[%s429 + $0x10] sm:$0xff]
        %v506 = vld [vmem:[%s429 + $0x18] sm:$0xff]
        %v507 = vld [vmem:[%s429 + $0x20] sm:$0xff]
        %v508 = vld [vmem:[%s429 + $0x28] sm:$0xff]
        %v509 = vld [vmem:[%s429 + $0x30] sm:$0xff]
        %v510 = vld [vmem:[%s429 + $0x38] sm:$0xff]
        %v511 = vld [vmem:[%s497] sm:$0xf]
        %v512 = vld [vmem:[%s497 + $0x4] sm:$0xf]
        %v513 = vld [vmem:[%s497 + $0x8] sm:$0xf]
        %v514 = vld [vmem:[%s497 + $0xc] sm:$0xf]
        %v515 = vld [vmem:[%s497 + $0x10] sm:$0xf]
        %v516 = vld [vmem:[%s497 + $0x14] sm:$0xf]
        %v517 = vld [vmem:[%s497 + $0x18] sm:$0xf]
        %v518 = vld [vmem:[%s497 + $0x1c] sm:$0xf]
        %v519 = vld [vmem:[%s4] sm:$0xf]
        %v520 = vld [vmem:[%s4 + $0x4] sm:$0xf]
        %v521 = vld [vmem:[%s4 + $0x8] sm:$0xf]
        %v522 = vld [vmem:[%s4 + $0xc] sm:$0xf]
        %v523 = vld [vmem:[%s10] sm:$0xff]
        %v524 = vld [vmem:[%s10 + $0x8] sm:$0xff]
        %v525 = vld [vmem:[%s10 + $0x10] sm:$0xff]
        %v526 = vld [vmem:[%s10 + $0x18] sm:$0xff]
        %528 = vset.pattern.permute.xlu0 0
        %529 = vperm.xlu0 %528, %v523
        %v530 = vpop.permute.xlu0 %529
        %533 = vset.pattern.permute.xlu0 0
        %534 = vperm.xlu0 %533, %v524
        %v535 = vpop.permute.xlu0 %534
        %538 = vset.pattern.permute.xlu0 0
        %539 = vperm.xlu0 %538, %v525
        %v540 = vpop.permute.xlu0 %539
        %543 = vset.pattern.permute.xlu0 0
        %544 = vperm.xlu0 %543, %v526
        %v545 = vpop.permute.xlu0 %544
        %v551 = vunpack.c.l.b16 %v519
        %v552 = vunpack.c.l.b16 %v520
        %v553 = vunpack.c.l.b16 %v521
        %v554 = vunpack.c.l.b16 %v522
        %v555 = vpack.c.b16 %v552, %v551
        %v556 = vpack.c.b16 %v554, %v553
        %v565 = vunpack.c.l.b16 %v511
        %v566 = vunpack.c.l.b16 %v512
        %v567 = vunpack.c.l.b16 %v513
        %v568 = vunpack.c.l.b16 %v514
        %v569 = vunpack.c.l.b16 %v515
        %v570 = vunpack.c.l.b16 %v516
        %v571 = vunpack.c.l.b16 %v517
        %v572 = vunpack.c.l.b16 %v518
        %v573 = vpack.c.b16 %v566, %v565
        %v574 = vpack.c.b16 %v568, %v567
        %v575 = vpack.c.b16 %v570, %v569
        %v576 = vpack.c.b16 %v572, %v571
        %vm581 = vcmask 523264
        %v583 = vsel %vm581, %v555, 0
        %v586 = vsel %vm581, %v556, 0
        %588 = vmatprep.subr.bf16.mxu0 0
        %589 = vmatpush1.bf16.msra.mxu0 %v573
        %590 = vmatprep.subr.bf16.mxu0 0
        %591 = vmatpush1.bf16.msra.mxu0 %v574
        %592 = vmatprep.subr.bf16.mxu0 0
        %593 = vmatpush1.bf16.msra.mxu0 %v575
        %594 = vmatprep.subr.bf16.mxu0 0
        %595 = vmatpush1.bf16.msra.mxu0 %v576
        %596 = vmatprep.subr.bf16.mxu0 0
        %597 = vmatpush1.bf16.msra.mxu0 0
        %598 = vmatprep.subr.bf16.mxu0 0
        %599 = vmatpush1.bf16.msra.mxu0 0
        %600 = vmatprep.subr.bf16.mxu0 0
        %601 = vmatpush1.bf16.msra.mxu0 0
        %602 = vmatprep.subr.bf16.mxu0 0
        %603 = vmatpush1.bf16.msra.mxu0 0
        %604 = vmatprep.subr.bf16.mxu0 0
        %605 = vmatpush1.bf16.msra.mxu0 0
        %606 = vmatprep.subr.bf16.mxu0 0
        %607 = vmatpush1.bf16.msra.mxu0 0
        %608 = vmatprep.subr.bf16.mxu0 0
        %609 = vmatpush1.bf16.msra.mxu0 0
        %610 = vmatprep.subr.bf16.mxu0 0
        %611 = vmatpush1.bf16.msra.mxu0 0
        %612 = vmatprep.subr.bf16.mxu0 0
        %613 = vmatpush1.bf16.msra.mxu0 0
        %614 = vmatprep.subr.bf16.mxu0 0
        %615 = vmatpush1.bf16.msra.mxu0 0
        %616 = vmatprep.subr.bf16.mxu0 0
        %617 = vmatpush1.bf16.msra.mxu0 0
        %618 = vmatprep.subr.bf16.mxu0 0
        %619 = vmatpush1.bf16.msra.mxu0 0
        %620 = vmatprep.mubr.bf16.mxu0 0
        %621 = vmatmul.mubr.bf16.gmra.mrb[0].mxu0 %v583
        %v622 = vpop.f32.mrb[0].mxu0
        %v623 = vadd.f32 %v530, %v622
        %v624 = vpop.f32.mrb[0].mxu0
        %v625 = vpop.f32.mrb[0].mxu0
        %v626 = vadd.f32 %v535, %v625
        %v627 = vpop.f32.mrb[0].mxu0
        %628 = vmatprep.mubr.bf16.mxu0 0
        %629 = vmatmul.mubr.bf16.gmra.mrb[0].mxu0 %v586
        %v630 = vpop.f32.mrb[0].mxu0
        %v631 = vadd.f32 %v540, %v630
        %v632 = vpop.f32.mrb[0].mxu0
        %v633 = vpop.f32.mrb[0].mxu0
        %v634 = vadd.f32 %v545, %v633
        %v635 = vpop.f32.mrb[0].mxu0
        %636 = vdwg.mxu0
        %v637 = vmax.f32 %v623, 0.0
        %v638 = vmax.f32 %v626, 0.0
        %v639 = vmax.f32 %v631, 0.0
        %v640 = vmax.f32 %v634, 0.0
        %vm641 = vcmp.ne.f32.partialorder %v623, %v623
        %vm642 = vcmp.ne.f32.partialorder %v626, %v626
        %vm643 = vcmp.ne.f32.partialorder %v631, %v631
        %vm644 = vcmp.ne.f32.partialorder %v634, %v634
        %v645 = vadd.f32 %v623, 0.0
        %v646 = vadd.f32 %v626, 0.0
        %v647 = vadd.f32 %v631, 0.0
        %v648 = vadd.f32 %v634, 0.0
        %v649 = vand.u32 2147483647, %v623
        %v650 = vand.u32 2147483647, %v626
        %v651 = vand.u32 2147483647, %v631
        %v652 = vand.u32 2147483647, %v634
        %v653 = vsub.f32 0.0, %v649
        %v654 = vsub.f32 0.0, %v650
        %v655 = vsub.f32 0.0, %v651
        %v656 = vsub.f32 0.0, %v652
        %v657 = vmul.f32 %v653, 1.442695
        %v658 = vpow.pop %v657
        %v659 = vmul.f32 %v654, 1.442695
        %v660 = vpow.pop %v659
        %v661 = vmul.f32 %v655, 1.442695
        %v662 = vpow.pop %v661
        %v663 = vmul.f32 %v656, 1.442695
        %v664 = vpow.pop %v663
        %v665 = vadd.f32 %v658, 1.0
        %v666 = vlog2.pop %v665
        %v667 = vmul.f32 %v666, 0.6931472
        %v668 = vmul.f32 -0.5, %v658
        %v669 = vadd.f32 %v668, 1.0
        %v670 = vmul.f32 %v669, %v658
        %v671 = vand.u32 2147483647, %v658
        %vm672 = vcmp.lt.f32.partialorder %v671, 0.0004427343
        %v673 = vsel %vm672, %v670, %v667
        %v674 = vadd.f32 %v660, 1.0
        %v675 = vlog2.pop %v674
        %v676 = vmul.f32 %v675, 0.6931472
        %v677 = vmul.f32 -0.5, %v660
        %v678 = vadd.f32 %v677, 1.0
        %v679 = vmul.f32 %v678, %v660
        %v680 = vand.u32 2147483647, %v660
        %vm681 = vcmp.lt.f32.partialorder %v680, 0.0004427343
        %v682 = vsel %vm681, %v679, %v676
        %v683 = vadd.f32 %v662, 1.0
        %v684 = vlog2.pop %v683
        %v685 = vmul.f32 %v684, 0.6931472
        %v686 = vmul.f32 -0.5, %v662
        %v687 = vadd.f32 %v686, 1.0
        %v688 = vmul.f32 %v687, %v662
        %v689 = vand.u32 2147483647, %v662
        %vm690 = vcmp.lt.f32.partialorder %v689, 0.0004427343
        %v691 = vsel %vm690, %v688, %v685
        %v692 = vadd.f32 %v664, 1.0
        %v693 = vlog2.pop %v692
        %v694 = vmul.f32 %v693, 0.6931472
        %v695 = vmul.f32 -0.5, %v664
        %v696 = vadd.f32 %v695, 1.0
        %v697 = vmul.f32 %v696, %v664
        %v698 = vand.u32 2147483647, %v664
        %vm699 = vcmp.lt.f32.partialorder %v698, 0.0004427343
        %v700 = vsel %vm699, %v697, %v694
        %v701 = vadd.f32 %v637, %v673
        %v702 = vadd.f32 %v638, %v682
        %v703 = vadd.f32 %v639, %v691
        %v704 = vadd.f32 %v640, %v700
        %v705 = vsel %vm641, %v645, %v701
        %v706 = vsel %vm642, %v646, %v702
        %v707 = vsel %vm643, %v647, %v703
        %v708 = vsel %vm644, %v648, %v704
        %v709 = vld [vmem:[#allocation8] sm:$0xf]
        %v710 = vld [vmem:[#allocation8 + $0x4] sm:$0xf]
        %v711 = vld [vmem:[#allocation8 + $0x8] sm:$0xf]
        %v712 = vld [vmem:[#allocation8 + $0xc] sm:$0xf]
        %v713 = vpack.c.bf16 %v706, %v705
        %v714 = vpack.c.bf16 %v708, %v707
        %716 = vset.pattern.permute.xlu0 0
        %717 = vperm.xlu0 %716, %v499
        %v718 = vpop.permute.xlu0 %717
        %721 = vset.pattern.permute.xlu0 0
        %722 = vperm.xlu0 %721, %v500
        %v723 = vpop.permute.xlu0 %722
        %726 = vset.pattern.permute.xlu0 0
        %727 = vperm.xlu0 %726, %v501
        %v728 = vpop.permute.xlu0 %727
        %731 = vset.pattern.permute.xlu0 0
        %732 = vperm.xlu0 %731, %v502
        %v733 = vpop.permute.xlu0 %732
        %v739 = vunpack.c.l.b16 %v709
        %v740 = vunpack.c.l.b16 %v710
        %v741 = vunpack.c.l.b16 %v711
        %v742 = vunpack.c.l.b16 %v712
        %v743 = vpack.c.b16 %v740, %v739
        %v744 = vpack.c.b16 %v742, %v741
        %vm745 = vcmask 261120
        %v747 = vsel %vm745, %v743, 0
        %v750 = vsel %vm745, %v744, 0
        %752 = vmatprep.subr.bf16.mxu0 0
        %753 = vmatpush1.bf16.msra.mxu0 %v713
        %754 = vmatprep.subr.bf16.mxu0 0
        %755 = vmatpush1.bf16.msra.mxu0 %v714
        %756 = vmatprep.subr.bf16.mxu0 0
        %757 = vmatpush1.bf16.msra.mxu0 0
        %758 = vmatprep.subr.bf16.mxu0 0
        %759 = vmatpush1.bf16.msra.mxu0 0
        %760 = vmatprep.subr.bf16.mxu0 0
        %761 = vmatpush1.bf16.msra.mxu0 0
        %762 = vmatprep.subr.bf16.mxu0 0
        %763 = vmatpush1.bf16.msra.mxu0 0
        %764 = vmatprep.subr.bf16.mxu0 0
        %765 = vmatpush1.bf16.msra.mxu0 0
        %766 = vmatprep.subr.bf16.mxu0 0
        %767 = vmatpush1.bf16.msra.mxu0 0
        %768 = vmatprep.subr.bf16.mxu0 0
        %769 = vmatpush1.bf16.msra.mxu0 0
        %770 = vmatprep.subr.bf16.mxu0 0
        %771 = vmatpush1.bf16.msra.mxu0 0
        %772 = vmatprep.subr.bf16.mxu0 0
        %773 = vmatpush1.bf16.msra.mxu0 0
        %774 = vmatprep.subr.bf16.mxu0 0
        %775 = vmatpush1.bf16.msra.mxu0 0
        %776 = vmatprep.subr.bf16.mxu0 0
        %777 = vmatpush1.bf16.msra.mxu0 0
        %778 = vmatprep.subr.bf16.mxu0 0
        %779 = vmatpush1.bf16.msra.mxu0 0
        %780 = vmatprep.subr.bf16.mxu0 0
        %781 = vmatpush1.bf16.msra.mxu0 0
        %782 = vmatprep.subr.bf16.mxu0 0
        %783 = vmatpush1.bf16.msra.mxu0 0
        %784 = vmatprep.mubr.bf16.mxu0 0
        %785 = vmatmul.mubr.bf16.gmra.mrb[0].mxu0 %v747
        %v786 = vpop.f32.mrb[0].mxu0
        %v787 = vadd.f32 %v718, %v786
        %v788 = vpop.f32.mrb[0].mxu0
        %v789 = vpop.f32.mrb[0].mxu0
        %v790 = vadd.f32 %v723, %v789
        %v791 = vpop.f32.mrb[0].mxu0
        %792 = vmatprep.mubr.bf16.mxu0 0
        %793 = vmatmul.mubr.bf16.gmra.mrb[0].mxu0 %v750
        %v794 = vpop.f32.mrb[0].mxu0
        %v795 = vadd.f32 %v728, %v794
        %v796 = vpop.f32.mrb[0].mxu0
        %v797 = vpop.f32.mrb[0].mxu0
        %v798 = vadd.f32 %v733, %v797
        %v799 = vpop.f32.mrb[0].mxu0
        %800 = vdwg.mxu0
        %v801 = vmax.f32 %v787, 0.0
        %v802 = vmax.f32 %v790, 0.0
        %v803 = vmax.f32 %v795, 0.0
        %v804 = vmax.f32 %v798, 0.0
        %vm805 = vcmp.ne.f32.partialorder %v787, %v787
        %vm806 = vcmp.ne.f32.partialorder %v790, %v790
        %vm807 = vcmp.ne.f32.partialorder %v795, %v795
        %vm808 = vcmp.ne.f32.partialorder %v798, %v798
        %v809 = vadd.f32 %v787, 0.0
        %v810 = vadd.f32 %v790, 0.0
        %v811 = vadd.f32 %v795, 0.0
        %v812 = vadd.f32 %v798, 0.0
        %v813 = vand.u32 2147483647, %v787
        %v814 = vand.u32 2147483647, %v790
        %v815 = vand.u32 2147483647, %v795
        %v816 = vand.u32 2147483647, %v798
        %v817 = vsub.f32 0.0, %v813
        %v818 = vsub.f32 0.0, %v814
        %v819 = vsub.f32 0.0, %v815
        %v820 = vsub.f32 0.0, %v816
        %v821 = vmul.f32 %v817, 1.442695
        %v822 = vpow.pop %v821
        %v823 = vmul.f32 %v818, 1.442695
        %v824 = vpow.pop %v823
        %v825 = vmul.f32 %v819, 1.442695
        %v826 = vpow.pop %v825
        %v827 = vmul.f32 %v820, 1.442695
        %v828 = vpow.pop %v827
        %v829 = vadd.f32 %v822, 1.0
        %v830 = vlog2.pop %v829
        %v831 = vmul.f32 %v830, 0.6931472
        %v832 = vmul.f32 -0.5, %v822
        %v833 = vadd.f32 %v832, 1.0
        %v834 = vmul.f32 %v833, %v822
        %v835 = vand.u32 2147483647, %v822
        %vm836 = vcmp.lt.f32.partialorder %v835, 0.0004427343
        %v837 = vsel %vm836, %v834, %v831
        %v838 = vadd.f32 %v824, 1.0
        %v839 = vlog2.pop %v838
        %v840 = vmul.f32 %v839, 0.6931472
        %v841 = vmul.f32 -0.5, %v824
        %v842 = vadd.f32 %v841, 1.0
        %v843 = vmul.f32 %v842, %v824
        %v844 = vand.u32 2147483647, %v824
        %vm845 = vcmp.lt.f32.partialorder %v844, 0.0004427343
        %v846 = vsel %vm845, %v843, %v840
        %v847 = vadd.f32 %v826, 1.0
        %v848 = vlog2.pop %v847
        %v849 = vmul.f32 %v848, 0.6931472
        %v850 = vmul.f32 -0.5, %v826
        %v851 = vadd.f32 %v850, 1.0
        %v852 = vmul.f32 %v851, %v826
        %v853 = vand.u32 2147483647, %v826
        %vm854 = vcmp.lt.f32.partialorder %v853, 0.0004427343
        %v855 = vsel %vm854, %v852, %v849
        %v856 = vadd.f32 %v828, 1.0
        %v857 = vlog2.pop %v856
        %v858 = vmul.f32 %v857, 0.6931472
        %v859 = vmul.f32 -0.5, %v828
        %v860 = vadd.f32 %v859, 1.0
        %v861 = vmul.f32 %v860, %v828
        %v862 = vand.u32 2147483647, %v828
        %vm863 = vcmp.lt.f32.partialorder %v862, 0.0004427343
        %v864 = vsel %vm863, %v861, %v858
        %v865 = vadd.f32 %v801, %v837
        %v866 = vadd.f32 %v802, %v846
        %v867 = vadd.f32 %v803, %v855
        %v868 = vadd.f32 %v804, %v864
        %v869 = vsel %vm805, %v809, %v865
        %v870 = vsel %vm806, %v810, %v866
        %v871 = vsel %vm807, %v811, %v867
        %v872 = vsel %vm808, %v812, %v868
        %v873 = vld [vmem:[#allocation10] sm:$0xf]
        %v874 = vld [vmem:[#allocation10 + $0x4] sm:$0xf]
        %v875 = vld [vmem:[#allocation10 + $0x8] sm:$0xf]
        %v876 = vld [vmem:[#allocation10 + $0xc] sm:$0xf]
        %v877 = vpack.c.bf16 %v870, %v869
        %v878 = vpack.c.bf16 %v872, %v871
        %879 = vset.pattern.permute.xlu0 1
        %880 = vperm.xlu0 %879, %v499
        %v881 = vpop.permute.xlu0 %880
        %883 = vset.pattern.permute.xlu0 1
        %884 = vperm.xlu0 %883, %v500
        %v885 = vpop.permute.xlu0 %884
        %887 = vset.pattern.permute.xlu0 1
        %888 = vperm.xlu0 %887, %v501
        %v889 = vpop.permute.xlu0 %888
        %891 = vset.pattern.permute.xlu0 1
        %892 = vperm.xlu0 %891, %v502
        %v893 = vpop.permute.xlu0 %892
        %v899 = vunpack.c.l.b16 %v873
        %v900 = vunpack.c.l.b16 %v874
        %v901 = vunpack.c.l.b16 %v875
        %v902 = vunpack.c.l.b16 %v876
        %v903 = vpack.c.b16 %v900, %v899
        %v904 = vpack.c.b16 %v902, %v901
        %v906 = vsel %vm745, %v903, 0
        %v909 = vsel %vm745, %v904, 0
        %911 = vmatprep.subr.bf16.mxu0 0
        %912 = vmatpush1.bf16.msra.mxu0 %v877
        %913 = vmatprep.subr.bf16.mxu0 0
        %914 = vmatpush1.bf16.msra.mxu0 %v878
        %915 = vmatprep.subr.bf16.mxu0 0
        %916 = vmatpush1.bf16.msra.mxu0 0
        %917 = vmatprep.subr.bf16.mxu0 0
        %918 = vmatpush1.bf16.msra.mxu0 0
        %919 = vmatprep.subr.bf16.mxu0 0
        %920 = vmatpush1.bf16.msra.mxu0 0
        %921 = vmatprep.subr.bf16.mxu0 0
        %922 = vmatpush1.bf16.msra.mxu0 0
        %923 = vmatprep.subr.bf16.mxu0 0
        %924 = vmatpush1.bf16.msra.mxu0 0
        %925 = vmatprep.subr.bf16.mxu0 0
        %926 = vmatpush1.bf16.msra.mxu0 0
        %927 = vmatprep.subr.bf16.mxu0 0
        %928 = vmatpush1.bf16.msra.mxu0 0
        %929 = vmatprep.subr.bf16.mxu0 0
        %930 = vmatpush1.bf16.msra.mxu0 0
        %931 = vmatprep.subr.bf16.mxu0 0
        %932 = vmatpush1.bf16.msra.mxu0 0
        %933 = vmatprep.subr.bf16.mxu0 0
        %934 = vmatpush1.bf16.msra.mxu0 0
        %935 = vmatprep.subr.bf16.mxu0 0
        %936 = vmatpush1.bf16.msra.mxu0 0
        %937 = vmatprep.subr.bf16.mxu0 0
        %938 = vmatpush1.bf16.msra.mxu0 0
        %939 = vmatprep.subr.bf16.mxu0 0
        %940 = vmatpush1.bf16.msra.mxu0 0
        %941 = vmatprep.subr.bf16.mxu0 0
        %942 = vmatpush1.bf16.msra.mxu0 0
        %943 = vmatprep.mubr.bf16.mxu0 0
        %944 = vmatmul.mubr.bf16.gmra.mrb[0].mxu0 %v906
        %v945 = vpop.f32.mrb[0].mxu0
        %v946 = vadd.f32 %v881, %v945
        %v947 = vpop.f32.mrb[0].mxu0
        %v948 = vpop.f32.mrb[0].mxu0
        %v949 = vadd.f32 %v885, %v948
        %v950 = vpop.f32.mrb[0].mxu0
        %951 = vmatprep.mubr.bf16.mxu0 0
        %952 = vmatmul.mubr.bf16.gmra.mrb[0].mxu0 %v909
        %v953 = vpop.f32.mrb[0].mxu0
        %v954 = vadd.f32 %v889, %v953
        %v955 = vpop.f32.mrb[0].mxu0
        %v956 = vpop.f32.mrb[0].mxu0
        %v957 = vadd.f32 %v893, %v956
        %v958 = vpop.f32.mrb[0].mxu0
        %959 = vdwg.mxu0
        %v960 = vxor.u32 %v946, 2147483648
        %v961 = vxor.u32 %v949, 2147483648
        %v962 = vxor.u32 %v954, 2147483648
        %v963 = vxor.u32 %v957, 2147483648
        %v964 = vmul.f32 %v960, 1.442695
        %v965 = vpow.pop %v964
        %v966 = vmul.f32 %v961, 1.442695
        %v967 = vpow.pop %v966
        %v968 = vmul.f32 %v962, 1.442695
        %v969 = vpow.pop %v968
        %v970 = vmul.f32 %v963, 1.442695
        %v971 = vpow.pop %v970
        %v972 = vadd.f32 %v965, 1.0
        %v973 = vadd.f32 %v967, 1.0
        %v974 = vadd.f32 %v969, 1.0
        %v975 = vadd.f32 %v971, 1.0
        %v976 = vrcp.pop %v972
        %v977 = vmul.f32 1.0, %v976
        %v978 = vrcp.pop %v973
        %v979 = vmul.f32 1.0, %v978
        %v980 = vrcp.pop %v974
        %v981 = vmul.f32 1.0, %v980
        %v982 = vrcp.pop %v975
        %v983 = vmul.f32 1.0, %v982
        %v984 = vmul.f32 %v869, %v977
        %v985 = vmul.f32 %v870, %v979
        %v986 = vmul.f32 %v871, %v981
        %v987 = vmul.f32 %v872, %v983
        %988 = vset.pattern.permute.xlu0 3
        %989 = vperm.xlu0 %988, %v499
        %v990 = vpop.permute.xlu0 %989
        %992 = vset.pattern.permute.xlu0 3
        %993 = vperm.xlu0 %992, %v500
        %v994 = vpop.permute.xlu0 %993
        %996 = vset.pattern.permute.xlu0 3
        %997 = vperm.xlu0 %996, %v501
        %v998 = vpop.permute.xlu0 %997
        %1000 = vset.pattern.permute.xlu0 3
        %1001 = vperm.xlu0 %1000, %v502
        %v1002 = vpop.permute.xlu0 %1001
        %v1004 = vmul.f32 %v990, %v869
        %v1005 = vmul.f32 %v994, %v870
        %v1006 = vmul.f32 %v998, %v871
        %v1007 = vmul.f32 %v1002, %v872
        %1008 = vset.pattern.permute.xlu0 4
        %1009 = vperm.xlu0 %1008, %v499
        %v1010 = vpop.permute.xlu0 %1009
        %1012 = vset.pattern.permute.xlu0 4
        %1013 = vperm.xlu0 %1012, %v500
        %v1014 = vpop.permute.xlu0 %1013
        %1016 = vset.pattern.permute.xlu0 4
        %1017 = vperm.xlu0 %1016, %v501
        %v1018 = vpop.permute.xlu0 %1017
        %1020 = vset.pattern.permute.xlu0 4
        %1021 = vperm.xlu0 %1020, %v502
        %v1022 = vpop.permute.xlu0 %1021
        %v1024 = vadd.f32 %v1004, %v1010
        %v1025 = vadd.f32 %v1005, %v1014
        %v1026 = vadd.f32 %v1006, %v1018
        %v1027 = vadd.f32 %v1007, %v1022
        %v1028 = vld [vmem:[#allocation11] sm:$0xff]
        %v1029 = vld [vmem:[#allocation11 + $0x8] sm:$0xff]
        %v1030 = vld [vmem:[#allocation11 + $0x10] sm:$0xff]
        %v1031 = vld [vmem:[#allocation11 + $0x18] sm:$0xff]
        %v1032 = vld [vmem:[#allocation11 + $0x20] sm:$0xff]
        %v1033 = vld [vmem:[#allocation11 + $0x28] sm:$0xff]
        %v1034 = vld [vmem:[#allocation11 + $0x30] sm:$0xff]
        %v1035 = vld [vmem:[#allocation11 + $0x38] sm:$0xff]
        %v1036 = vld [vmem:[#allocation11 + $0x40] sm:$0xff]
        %v1037 = vld [vmem:[#allocation11 + $0x48] sm:$0xff]
        %v1038 = vld [vmem:[#allocation11 + $0x50] sm:$0xff]
        %v1039 = vld [vmem:[#allocation11 + $0x58] sm:$0xff]
        %v1040 = vld [vmem:[#allocation11 + $0x60] sm:$0xff]
        %v1041 = vld [vmem:[#allocation11 + $0x68] sm:$0xff]
        %v1042 = vld [vmem:[#allocation11 + $0x70] sm:$0xff]
        %v1043 = vld [vmem:[#allocation11 + $0x78] sm:$0xff]
        %v1045 = vsel %vm581, %v984, 0
        %v1048 = vsel %vm581, %v985, 0
        %v1051 = vsel %vm581, %v986, 0
        %v1054 = vsel %vm581, %v987, 0
        %1056 = vmatprep.subr.mxu0 %v1029
        %1057 = vmatpush1.msra.mxu0 %v1028
        %1058 = vmatprep.subr.mxu0 %v1031
        %1059 = vmatpush1.msra.mxu0 %v1030
        %1060 = vmatprep.subr.mxu0 %v1033
        %1061 = vmatpush1.msra.mxu0 %v1032
        %1062 = vmatprep.subr.mxu0 %v1035
        %1063 = vmatpush1.msra.mxu0 %v1034
        %1064 = vmatprep.subr.mxu0 %v1037
        %1065 = vmatpush1.msra.mxu0 %v1036
        %1066 = vmatprep.subr.mxu0 %v1039
        %1067 = vmatpush1.msra.mxu0 %v1038
        %1068 = vmatprep.subr.mxu0 %v1041
        %1069 = vmatpush1.msra.mxu0 %v1040
        %1070 = vmatprep.subr.mxu0 %v1043
        %1071 = vmatpush1.msra.mxu0 %v1042
        %1072 = vmatprep.subr.mxu0 0.0
        %1073 = vmatpush1.msra.mxu0 0.0
        %1074 = vmatprep.subr.mxu0 0.0
        %1075 = vmatpush1.msra.mxu0 0.0
        %1076 = vmatprep.subr.mxu0 0.0
        %1077 = vmatpush1.msra.mxu0 0.0
        %1078 = vmatprep.subr.mxu0 0.0
        %1079 = vmatpush1.msra.mxu0 0.0
        %1080 = vmatprep.subr.mxu0 0.0
        %1081 = vmatpush1.msra.mxu0 0.0
        %1082 = vmatprep.subr.mxu0 0.0
        %1083 = vmatpush1.msra.mxu0 0.0
        %1084 = vmatprep.subr.mxu0 0.0
        %1085 = vmatpush1.msra.mxu0 0.0
        %1086 = vmatprep.subr.mxu0 0.0
        %1087 = vmatpush1.msra.mxu0 0.0
        %1088 = vmatprep.subr.mxu0 0.0
        %1089 = vmatpush1.msra.mxu0 0.0
        %1090 = vmatprep.subr.mxu0 0.0
        %1091 = vmatpush1.msra.mxu0 0.0
        %1092 = vmatprep.subr.mxu0 0.0
        %1093 = vmatpush1.msra.mxu0 0.0
        %1094 = vmatprep.subr.mxu0 0.0
        %1095 = vmatpush1.msra.mxu0 0.0
        %1096 = vmatprep.subr.mxu0 0.0
        %1097 = vmatpush1.msra.mxu0 0.0
        %1098 = vmatprep.subr.mxu0 0.0
        %1099 = vmatpush1.msra.mxu0 0.0
        %1100 = vmatprep.subr.mxu0 0.0
        %1101 = vmatpush1.msra.mxu0 0.0
        %1102 = vmatprep.subr.mxu0 0.0
        %1103 = vmatpush1.msra.mxu0 0.0
        %1104 = vmatprep.subr.mxu0 0.0
        %1105 = vmatpush1.msra.mxu0 0.0
        %1106 = vmatprep.subr.mxu0 0.0
        %1107 = vmatpush1.msra.mxu0 0.0
        %1108 = vmatprep.subr.mxu0 0.0
        %1109 = vmatpush1.msra.mxu0 0.0
        %1110 = vmatprep.subr.mxu0 0.0
        %1111 = vmatpush1.msra.mxu0 0.0
        %1112 = vmatprep.subr.mxu0 0.0
        %1113 = vmatpush1.msra.mxu0 0.0
        %1114 = vmatprep.subr.mxu0 0.0
        %1115 = vmatpush1.msra.mxu0 0.0
        %1116 = vmatprep.subr.mxu0 0.0
        %1117 = vmatpush1.msra.mxu0 0.0
        %1118 = vmatprep.subr.mxu0 0.0
        %1119 = vmatpush1.msra.mxu0 0.0
        %1120 = vmatprep.mubr.f32.mxu0 0.0
        %1121 = vmatmul.mubr.f32.gmra.mrb[0].mxu0 %v1045
        %v1122 = vpop.f32.mrb[0].mxu0
        %v1123 = vadd.f32 0.0, %v1122
        %v1124 = vpop.f32.mrb[0].mxu0
        %v1125 = vadd.f32 0.0, %v1124
        %1126 = vmatprep.mubr.f32.mxu0 0.0
        %1127 = vmatmul.mubr.f32.gmra.mrb[0].mxu0 %v1048
        %v1128 = vpop.f32.mrb[0].mxu0
        %v1129 = vadd.f32 0.0, %v1128
        %v1130 = vpop.f32.mrb[0].mxu0
        %v1131 = vadd.f32 0.0, %v1130
        %1132 = vmatprep.mubr.f32.mxu0 0.0
        %1133 = vmatmul.mubr.f32.gmra.mrb[0].mxu0 %v1051
        %v1134 = vpop.f32.mrb[0].mxu0
        %v1135 = vadd.f32 0.0, %v1134
        %v1136 = vpop.f32.mrb[0].mxu0
        %v1137 = vadd.f32 0.0, %v1136
        %1138 = vmatprep.mubr.f32.mxu0 0.0
        %1139 = vmatmul.mubr.f32.gmra.mrb[0].mxu0 %v1054
        %v1140 = vpop.f32.mrb[0].mxu0
        %v1141 = vadd.f32 0.0, %v1140
        %v1142 = vpop.f32.mrb[0].mxu0
        %v1143 = vadd.f32 0.0, %v1142
        %1144 = vdwg.mxu0
        %v1146 = vsel %vm581, %v1024, 0
        %v1149 = vsel %vm581, %v1025, 0
        %v1152 = vsel %vm581, %v1026, 0
        %v1155 = vsel %vm581, %v1027, 0
        %1157 = vmatprep.subr.mxu0 %v1029
        %1158 = vmatpush1.msra.mxu0 %v1028
        %1159 = vmatprep.subr.mxu0 %v1031
        %1160 = vmatpush1.msra.mxu0 %v1030
        %1161 = vmatprep.subr.mxu0 %v1033
        %1162 = vmatpush1.msra.mxu0 %v1032
        %1163 = vmatprep.subr.mxu0 %v1035
        %1164 = vmatpush1.msra.mxu0 %v1034
        %1165 = vmatprep.subr.mxu0 %v1037
        %1166 = vmatpush1.msra.mxu0 %v1036
        %1167 = vmatprep.subr.mxu0 %v1039
        %1168 = vmatpush1.msra.mxu0 %v1038
        %1169 = vmatprep.subr.mxu0 %v1041
        %1170 = vmatpush1.msra.mxu0 %v1040
        %1171 = vmatprep.subr.mxu0 %v1043
        %1172 = vmatpush1.msra.mxu0 %v1042
        %1173 = vmatprep.subr.mxu0 0.0
        %1174 = vmatpush1.msra.mxu0 0.0
        %1175 = vmatprep.subr.mxu0 0.0
        %1176 = vmatpush1.msra.mxu0 0.0
        %1177 = vmatprep.subr.mxu0 0.0
        %1178 = vmatpush1.msra.mxu0 0.0
        %1179 = vmatprep.subr.mxu0 0.0
        %1180 = vmatpush1.msra.mxu0 0.0
        %1181 = vmatprep.subr.mxu0 0.0
        %1182 = vmatpush1.msra.mxu0 0.0
        %1183 = vmatprep.subr.mxu0 0.0
        %1184 = vmatpush1.msra.mxu0 0.0
        %1185 = vmatprep.subr.mxu0 0.0
        %1186 = vmatpush1.msra.mxu0 0.0
        %1187 = vmatprep.subr.mxu0 0.0
        %1188 = vmatpush1.msra.mxu0 0.0
        %1189 = vmatprep.subr.mxu0 0.0
        %1190 = vmatpush1.msra.mxu0 0.0
        %1191 = vmatprep.subr.mxu0 0.0
        %1192 = vmatpush1.msra.mxu0 0.0
        %1193 = vmatprep.subr.mxu0 0.0
        %1194 = vmatpush1.msra.mxu0 0.0
        %1195 = vmatprep.subr.mxu0 0.0
        %1196 = vmatpush1.msra.mxu0 0.0
        %1197 = vmatprep.subr.mxu0 0.0
        %1198 = vmatpush1.msra.mxu0 0.0
        %1199 = vmatprep.subr.mxu0 0.0
        %1200 = vmatpush1.msra.mxu0 0.0
        %1201 = vmatprep.subr.mxu0 0.0
        %1202 = vmatpush1.msra.mxu0 0.0
        %1203 = vmatprep.subr.mxu0 0.0
        %1204 = vmatpush1.msra.mxu0 0.0
        %1205 = vmatprep.subr.mxu0 0.0
        %1206 = vmatpush1.msra.mxu0 0.0
        %1207 = vmatprep.subr.mxu0 0.0
        %1208 = vmatpush1.msra.mxu0 0.0
        %1209 = vmatprep.subr.mxu0 0.0
        %1210 = vmatpush1.msra.mxu0 0.0
        %1211 = vmatprep.subr.mxu0 0.0
        %1212 = vmatpush1.msra.mxu0 0.0
        %1213 = vmatprep.subr.mxu0 0.0
        %1214 = vmatpush1.msra.mxu0 0.0
        %1215 = vmatprep.subr.mxu0 0.0
        %1216 = vmatpush1.msra.mxu0 0.0
        %1217 = vmatprep.subr.mxu0 0.0
        %1218 = vmatpush1.msra.mxu0 0.0
        %1219 = vmatprep.subr.mxu0 0.0
        %1220 = vmatpush1.msra.mxu0 0.0
        %1221 = vmatprep.mubr.f32.mxu0 0.0
        %1222 = vmatmul.mubr.f32.gmra.mrb[0].mxu0 %v1146
        %v1223 = vpop.f32.mrb[0].mxu0
        %v1224 = vadd.f32 0.0, %v1223
        %v1225 = vpop.f32.mrb[0].mxu0
        %v1226 = vadd.f32 0.0, %v1225
        %1227 = vmatprep.mubr.f32.mxu0 0.0
        %1228 = vmatmul.mubr.f32.gmra.mrb[0].mxu0 %v1149
        %v1229 = vpop.f32.mrb[0].mxu0
        %v1230 = vadd.f32 0.0, %v1229
        %v1231 = vpop.f32.mrb[0].mxu0
        %v1232 = vadd.f32 0.0, %v1231
        %1233 = vmatprep.mubr.f32.mxu0 0.0
        %1234 = vmatmul.mubr.f32.gmra.mrb[0].mxu0 %v1152
        %v1235 = vpop.f32.mrb[0].mxu0
        %v1236 = vadd.f32 0.0, %v1235
        %v1237 = vpop.f32.mrb[0].mxu0
        %v1238 = vadd.f32 0.0, %v1237
        %1239 = vmatprep.mubr.f32.mxu0 0.0
        %1240 = vmatmul.mubr.f32.gmra.mrb[0].mxu0 %v1155
        %v1241 = vpop.f32.mrb[0].mxu0
        %v1242 = vadd.f32 0.0, %v1241
        %v1243 = vpop.f32.mrb[0].mxu0
        %v1244 = vadd.f32 0.0, %v1243
        %1245 = vdwg.mxu0
        %v1246 = vlaneseq
        %v1247 = vand.u32 %v1246, 127
        %v1248 = vadd.s32 %v1247, 128
        %vm1249 = vcmp.lt.s32.totalorder %v1247, 0
        %v1250 = vsub.s32 0, %v1247
        %v1251 = vsel %vm1249, %v1250, %v1247
        %v1252 = vshrl.u32 %v1251, 4
        %v1253 = vand.u32 %v1251, 15
        %v1254 = vsub.s32 0, %v1253
        %v1255 = vsel %vm1249, %v1254, %v1253
        %vm1256 = vcmp.lt.s32.totalorder %v1248, 0
        %v1257 = vsub.s32 0, %v1248
        %v1258 = vsel %vm1256, %v1257, %v1248
        %v1259 = vshrl.u32 %v1258, 4
        %v1260 = vand.u32 %v1258, 15
        %v1261 = vsub.s32 0, %v1260
        %v1262 = vsel %vm1256, %v1261, %v1260
        %vm1263 = vcmp.ne.s32.totalorder %v1255, 0
        %vm1264 = vcmp.ne.s32.totalorder %v1262, 0
        %vm1265 = vcmp.lt.s32.totalorder %v1255, 0
        %vm1266 = vcmp.lt.s32.totalorder %v1262, 0
        %vm1267 = vmand %vm1265, %vm1263
        %vm1268 = vmand %vm1266, %vm1264
        %v1269 = vadd.s32 %v1255, 16
        %v1270 = vadd.s32 %v1262, 16
        %v1271 = vsel %vm1267, %v1269, %v1255
        %v1272 = vsel %vm1268, %v1270, %v1262
        %vm1273 = vcmp.lt.s32.totalorder %v1271, 15
        %vm1274 = vcmp.lt.s32.totalorder %v1272, 15
        %vm1275 = vcmp.ge.s32.totalorder %v1271, 1
        %vm1276 = vcmp.ge.s32.totalorder %v1272, 1
        %v1277 = vsel %vm1273, 1, 0
        %v1278 = vsel %vm1274, 1, 0
        %vm1279 = vcmp.eq.s32.totalorder %v1277, 1
        %vm1280 = vcmp.eq.s32.totalorder %v1278, 1
        %v1281 = vsel %vm1279, %v1123, 0.0
        %v1282 = vsel %vm1280, %v1125, 0.0
        %v1283 = vsel %vm1279, %v1129, 0.0
        %v1284 = vsel %vm1280, %v1131, 0.0
        %v1285 = vsel %vm1279, %v1135, 0.0
        %v1286 = vsel %vm1280, %v1137, 0.0
        %v1287 = vsel %vm1279, %v1141, 0.0
        %v1288 = vsel %vm1280, %v1143, 0.0
        %v1289 = vsel %vm1275, 1, 0
        %v1290 = vsel %vm1276, 1, 0
        %vm1291 = vcmp.eq.s32.totalorder %v1289, 1
        %vm1292 = vcmp.eq.s32.totalorder %v1290, 1
        %v1293 = vsel %vm1291, %v1123, 0.0
        %v1294 = vsel %vm1292, %v1125, 0.0
        %v1295 = vsel %vm1291, %v1129, 0.0
        %v1296 = vsel %vm1292, %v1131, 0.0
        %v1297 = vsel %vm1291, %v1135, 0.0
        %v1298 = vsel %vm1292, %v1137, 0.0
        %v1299 = vsel %vm1291, %v1141, 0.0
        %v1300 = vsel %vm1292, %v1143, 0.0
        %1309 = vrot.lane.b32.xlu0 %v1281, 17
        %v1310 = vpop.permute.xlu0 %1309
        %1311 = vrot.lane.b32.xlu0 %v1282, 17
        %v1312 = vpop.permute.xlu0 %1311
        %1313 = vrot.lane.b32.xlu0 %v1283, 17
        %v1314 = vpop.permute.xlu0 %1313
        %1315 = vrot.lane.b32.xlu0 %v1284, 17
        %v1316 = vpop.permute.xlu0 %1315
        %1317 = vrot.lane.b32.xlu0 %v1285, 17
        %v1318 = vpop.permute.xlu0 %1317
        %1319 = vrot.lane.b32.xlu0 %v1286, 17
        %v1320 = vpop.permute.xlu0 %1319
        %1321 = vrot.lane.b32.xlu0 %v1287, 17
        %v1322 = vpop.permute.xlu0 %1321
        %1323 = vrot.lane.b32.xlu0 %v1288, 17
        %v1324 = vpop.permute.xlu0 %1323
        %vm1325 = vcmask 138240
        %v1326 = vsel %vm1325, %v1310, %v1312
        %v1327 = vsel %vm1325, %v1314, %v1316
        %v1328 = vsel %vm1325, %v1318, %v1320
        %v1329 = vsel %vm1325, %v1322, %v1324
        %v1338 = vsel %vm1325, 0.0, %v1310
        %v1339 = vsel %vm1325, 0.0, %v1314
        %v1340 = vsel %vm1325, 0.0, %v1318
        %v1341 = vsel %vm1325, 0.0, %v1322
        %1350 = vrot.lane.b32.xlu0 %v1123, 16
        %v1351 = vpop.permute.xlu0 %1350
        %1352 = vrot.lane.b32.xlu0 %v1125, 16
        %v1353 = vpop.permute.xlu0 %1352
        %1354 = vrot.lane.b32.xlu0 %v1129, 16
        %v1355 = vpop.permute.xlu0 %1354
        %1356 = vrot.lane.b32.xlu0 %v1131, 16
        %v1357 = vpop.permute.xlu0 %1356
        %1358 = vrot.lane.b32.xlu0 %v1135, 16
        %v1359 = vpop.permute.xlu0 %1358
        %1360 = vrot.lane.b32.xlu0 %v1137, 16
        %v1361 = vpop.permute.xlu0 %1360
        %1362 = vrot.lane.b32.xlu0 %v1141, 16
        %v1363 = vpop.permute.xlu0 %1362
        %1364 = vrot.lane.b32.xlu0 %v1143, 16
        %v1365 = vpop.permute.xlu0 %1364
        %vm1366 = vcmask 130048
        %v1367 = vsel %vm1366, %v1351, %v1353
        %v1368 = vsel %vm1366, %v1355, %v1357
        %v1369 = vsel %vm1366, %v1359, %v1361
        %v1370 = vsel %vm1366, %v1363, %v1365
        %v1379 = vsel %vm1366, 0.0, %v1351
        %v1380 = vsel %vm1366, 0.0, %v1355
        %v1381 = vsel %vm1366, 0.0, %v1359
        %v1382 = vsel %vm1366, 0.0, %v1363
        %1391 = vrot.lane.b32.xlu0 %v1293, 15
        %v1392 = vpop.permute.xlu0 %1391
        %1393 = vrot.lane.b32.xlu0 %v1294, 15
        %v1394 = vpop.permute.xlu0 %1393
        %1395 = vrot.lane.b32.xlu0 %v1295, 15
        %v1396 = vpop.permute.xlu0 %1395
        %1397 = vrot.lane.b32.xlu0 %v1296, 15
        %v1398 = vpop.permute.xlu0 %1397
        %1399 = vrot.lane.b32.xlu0 %v1297, 15
        %v1400 = vpop.permute.xlu0 %1399
        %1401 = vrot.lane.b32.xlu0 %v1298, 15
        %v1402 = vpop.permute.xlu0 %1401
        %1403 = vrot.lane.b32.xlu0 %v1299, 15
        %v1404 = vpop.permute.xlu0 %1403
        %1405 = vrot.lane.b32.xlu0 %v1300, 15
        %v1406 = vpop.permute.xlu0 %1405
        %vm1407 = vcmask 121856
        %v1408 = vsel %vm1407, %v1392, %v1394
        %v1409 = vsel %vm1407, %v1396, %v1398
        %v1410 = vsel %vm1407, %v1400, %v1402
        %v1411 = vsel %vm1407, %v1404, %v1406
        %v1420 = vsel %vm1407, 0.0, %v1392
        %v1421 = vsel %vm1407, 0.0, %v1396
        %v1422 = vsel %vm1407, 0.0, %v1400
        %v1423 = vsel %vm1407, 0.0, %v1404
        %1424 = vrot.lane.b32.xlu0 %v1281, 1
        %v1425 = vpop.permute.xlu0 %1424
        %1426 = vrot.lane.b32.xlu0 %v1282, 1
        %v1427 = vpop.permute.xlu0 %1426
        %1428 = vrot.lane.b32.xlu0 %v1283, 1
        %v1429 = vpop.permute.xlu0 %1428
        %1430 = vrot.lane.b32.xlu0 %v1284, 1
        %v1431 = vpop.permute.xlu0 %1430
        %1432 = vrot.lane.b32.xlu0 %v1285, 1
        %v1433 = vpop.permute.xlu0 %1432
        %1434 = vrot.lane.b32.xlu0 %v1286, 1
        %v1435 = vpop.permute.xlu0 %1434
        %1436 = vrot.lane.b32.xlu0 %v1287, 1
        %v1437 = vpop.permute.xlu0 %1436
        %1438 = vrot.lane.b32.xlu0 %v1288, 1
        %v1439 = vpop.permute.xlu0 %1438
        %vm1440 = vcmask 7168
        %v1441 = vsel %vm1440, %v1425, %v1427
        %v1442 = vsel %vm1440, %v1429, %v1431
        %v1443 = vsel %vm1440, %v1433, %v1435
        %v1444 = vsel %vm1440, %v1437, %v1439
        %v1453 = vsel %vm1440, 0.0, %v1425
        %v1454 = vsel %vm1440, 0.0, %v1429
        %v1455 = vsel %vm1440, 0.0, %v1433
        %v1456 = vsel %vm1440, 0.0, %v1437
        %1457 = vrot.lane.b32.xlu0 %v1293, 127
        %v1458 = vpop.permute.xlu0 %1457
        %1459 = vrot.lane.b32.xlu0 %v1294, 127
        %v1460 = vpop.permute.xlu0 %1459
        %1461 = vrot.lane.b32.xlu0 %v1295, 127
        %v1462 = vpop.permute.xlu0 %1461
        %1463 = vrot.lane.b32.xlu0 %v1296, 127
        %v1464 = vpop.permute.xlu0 %1463
        %1465 = vrot.lane.b32.xlu0 %v1297, 127
        %v1466 = vpop.permute.xlu0 %1465
        %1467 = vrot.lane.b32.xlu0 %v1298, 127
        %v1468 = vpop.permute.xlu0 %1467
        %1469 = vrot.lane.b32.xlu0 %v1299, 127
        %v1470 = vpop.permute.xlu0 %1469
        %1471 = vrot.lane.b32.xlu0 %v1300, 127
        %v1472 = vpop.permute.xlu0 %1471
        %vm1473 = vcmask 1039360
        %v1474 = vsel %vm1473, %v1458, %v1460
        %v1475 = vsel %vm1473, %v1462, %v1464
        %v1476 = vsel %vm1473, %v1466, %v1468
        %v1477 = vsel %vm1473, %v1470, %v1472
        %v1486 = vsel %vm1473, %v1460, 0.0
        %v1487 = vsel %vm1473, %v1464, 0.0
        %v1488 = vsel %vm1473, %v1468, 0.0
        %v1489 = vsel %vm1473, %v1472, 0.0
        %1490 = vrot.lane.b32.xlu0 %v1281, 113
        %v1491 = vpop.permute.xlu0 %1490
        %1492 = vrot.lane.b32.xlu0 %v1282, 113
        %v1493 = vpop.permute.xlu0 %1492
        %1494 = vrot.lane.b32.xlu0 %v1283, 113
        %v1495 = vpop.permute.xlu0 %1494
        %1496 = vrot.lane.b32.xlu0 %v1284, 113
        %v1497 = vpop.permute.xlu0 %1496
        %1498 = vrot.lane.b32.xlu0 %v1285, 113
        %v1499 = vpop.permute.xlu0 %1498
        %1500 = vrot.lane.b32.xlu0 %v1286, 113
        %v1501 = vpop.permute.xlu0 %1500
        %1502 = vrot.lane.b32.xlu0 %v1287, 113
        %v1503 = vpop.permute.xlu0 %1502
        %1504 = vrot.lane.b32.xlu0 %v1288, 113
        %v1505 = vpop.permute.xlu0 %1504
        %vm1506 = vcmask 924672
        %v1507 = vsel %vm1506, %v1491, %v1493
        %v1508 = vsel %vm1506, %v1495, %v1497
        %v1509 = vsel %vm1506, %v1499, %v1501
        %v1510 = vsel %vm1506, %v1503, %v1505
        %v1519 = vsel %vm1506, %v1493, 0.0
        %v1520 = vsel %vm1506, %v1497, 0.0
        %v1521 = vsel %vm1506, %v1501, 0.0
        %v1522 = vsel %vm1506, %v1505, 0.0
        %1523 = vrot.lane.b32.xlu0 %v1123, 112
        %v1524 = vpop.permute.xlu0 %1523
        %1525 = vrot.lane.b32.xlu0 %v1125, 112
        %v1526 = vpop.permute.xlu0 %1525
        %1527 = vrot.lane.b32.xlu0 %v1129, 112
        %v1528 = vpop.permute.xlu0 %1527
        %1529 = vrot.lane.b32.xlu0 %v1131, 112
        %v1530 = vpop.permute.xlu0 %1529
        %1531 = vrot.lane.b32.xlu0 %v1135, 112
        %v1532 = vpop.permute.xlu0 %1531
        %1533 = vrot.lane.b32.xlu0 %v1137, 112
        %v1534 = vpop.permute.xlu0 %1533
        %1535 = vrot.lane.b32.xlu0 %v1141, 112
        %v1536 = vpop.permute.xlu0 %1535
        %1537 = vrot.lane.b32.xlu0 %v1143, 112
        %v1538 = vpop.permute.xlu0 %1537
        %vm1539 = vcmask 916480
        %v1540 = vsel %vm1539, %v1524, %v1526
        %v1541 = vsel %vm1539, %v1528, %v1530
        %v1542 = vsel %vm1539, %v1532, %v1534
        %v1543 = vsel %vm1539, %v1536, %v1538
        %v1552 = vsel %vm1539, %v1526, 0.0
        %v1553 = vsel %vm1539, %v1530, 0.0
        %v1554 = vsel %vm1539, %v1534, 0.0
        %v1555 = vsel %vm1539, %v1538, 0.0
        %1556 = vrot.lane.b32.xlu0 %v1293, 111
        %v1557 = vpop.permute.xlu0 %1556
        %1558 = vrot.lane.b32.xlu0 %v1294, 111
        %v1559 = vpop.permute.xlu0 %1558
        %1560 = vrot.lane.b32.xlu0 %v1295, 111
        %v1561 = vpop.permute.xlu0 %1560
        %1562 = vrot.lane.b32.xlu0 %v1296, 111
        %v1563 = vpop.permute.xlu0 %1562
        %1564 = vrot.lane.b32.xlu0 %v1297, 111
        %v1565 = vpop.permute.xlu0 %1564
        %1566 = vrot.lane.b32.xlu0 %v1298, 111
        %v1567 = vpop.permute.xlu0 %1566
        %1568 = vrot.lane.b32.xlu0 %v1299, 111
        %v1569 = vpop.permute.xlu0 %1568
        %1570 = vrot.lane.b32.xlu0 %v1300, 111
        %v1571 = vpop.permute.xlu0 %1570
        %vm1572 = vcmask 908288
        %v1573 = vsel %vm1572, %v1557, %v1559
        %v1574 = vsel %vm1572, %v1561, %v1563
        %v1575 = vsel %vm1572, %v1565, %v1567
        %v1576 = vsel %vm1572, %v1569, %v1571
        %v1585 = vsel %vm1572, %v1559, 0.0
        %v1586 = vsel %vm1572, %v1563, 0.0
        %v1587 = vsel %vm1572, %v1567, 0.0
        %v1588 = vsel %vm1572, %v1571, 0.0
        %v1589 = vpack.c.bf16 %v1339, %v1338
        %v1590 = vpack.c.bf16 %v1327, %v1326
        %v1591 = vpack.c.bf16 %v1341, %v1340
        %v1592 = vpack.c.bf16 %v1329, %v1328
        %v1593 = vpack.c.bf16 %v1380, %v1379
        %v1594 = vpack.c.bf16 %v1368, %v1367
        %v1595 = vpack.c.bf16 %v1382, %v1381
        %v1596 = vpack.c.bf16 %v1370, %v1369
        %v1597 = vpack.c.bf16 %v1421, %v1420
        %v1598 = vpack.c.bf16 %v1409, %v1408
        %v1599 = vpack.c.bf16 %v1423, %v1422
        %v1600 = vpack.c.bf16 %v1411, %v1410
        %v1601 = vpack.c.bf16 %v1454, %v1453
        %v1602 = vpack.c.bf16 %v1442, %v1441
        %v1603 = vpack.c.bf16 %v1456, %v1455
        %v1604 = vpack.c.bf16 %v1444, %v1443
        %v1605 = vpack.c.bf16 %v1129, %v1123
        %v1606 = vpack.c.bf16 %v1131, %v1125
        %v1607 = vpack.c.bf16 %v1141, %v1135
        %v1608 = vpack.c.bf16 %v1143, %v1137
        %v1609 = vpack.c.bf16 %v1475, %v1474
        %v1610 = vpack.c.bf16 %v1487, %v1486
        %v1611 = vpack.c.bf16 %v1477, %v1476
        %v1612 = vpack.c.bf16 %v1489, %v1488
        %v1613 = vpack.c.bf16 %v1508, %v1507
        %v1614 = vpack.c.bf16 %v1520, %v1519
        %v1615 = vpack.c.bf16 %v1510, %v1509
        %v1616 = vpack.c.bf16 %v1522, %v1521
        %v1617 = vpack.c.bf16 %v1541, %v1540
        %v1618 = vpack.c.bf16 %v1553, %v1552
        %v1619 = vpack.c.bf16 %v1543, %v1542
        %v1620 = vpack.c.bf16 %v1555, %v1554
        %v1621 = vpack.c.bf16 %v1574, %v1573
        %v1622 = vpack.c.bf16 %v1586, %v1585
        %v1623 = vpack.c.bf16 %v1576, %v1575
        %v1624 = vpack.c.bf16 %v1588, %v1587
        %v1625 = vld [vmem:[#allocation5] sm:$0xff]
        %v1626 = vld [vmem:[#allocation5 + $0x8] sm:$0xf]
        %v1627 = vld [vmem:[#allocation5 + $0xc] sm:$0xff]
        %v1628 = vld [vmem:[#allocation5 + $0x14] sm:$0xf]
        %v1629 = vld [vmem:[#allocation5 + $0x18] sm:$0xff]
        %v1630 = vld [vmem:[#allocation5 + $0x20] sm:$0xf]
        %v1631 = vld [vmem:[#allocation5 + $0x24] sm:$0xff]
        %v1632 = vld [vmem:[#allocation5 + $0x2c] sm:$0xf]
        %v1641 = vunpack.c.l.b16 %v1625
        %v1642 = vunpack.c.h.b16 %v1625
        %v1643 = vunpack.c.l.b16 %v1626
        %v1644 = vunpack.c.l.b16 %v1627
        %v1645 = vunpack.c.h.b16 %v1627
        %v1646 = vunpack.c.l.b16 %v1628
        %v1647 = vunpack.c.l.b16 %v1629
        %v1648 = vunpack.c.h.b16 %v1629
        %v1649 = vunpack.c.l.b16 %v1630
        %v1650 = vunpack.c.l.b16 %v1631
        %v1651 = vunpack.c.h.b16 %v1631
        %v1652 = vunpack.c.l.b16 %v1632
        %v1653 = vpack.c.b16 %v1644, %v1641
        %v1654 = vpack.c.b16 %v1645, %v1642
        %v1655 = vpack.c.b16 %v1646, %v1643
        %v1656 = vpack.c.b16 %v1650, %v1647
        %v1657 = vpack.c.b16 %v1651, %v1648
        %v1658 = vpack.c.b16 %v1652, %v1649
        %v1664 = vsel %vm745, %v1655, 0
        %v1667 = vsel %vm745, %v1658, 0
        %1669 = vmatprep.subr.bf16.mxu0 %v1590
        %1670 = vmatpush1.bf16.msra.mxu0 %v1589
        %1671 = vmatprep.subr.bf16.mxu0 %v1592
        %1672 = vmatpush1.bf16.msra.mxu0 %v1591
        %1673 = vmatprep.subr.bf16.mxu0 %v1594
        %1674 = vmatpush1.bf16.msra.mxu0 %v1593
        %1675 = vmatprep.subr.bf16.mxu0 %v1596
        %1676 = vmatpush1.bf16.msra.mxu0 %v1595
        %1677 = vmatprep.subr.bf16.mxu0 %v1598
        %1678 = vmatpush1.bf16.msra.mxu0 %v1597
        %1679 = vmatprep.subr.bf16.mxu0 %v1600
        %1680 = vmatpush1.bf16.msra.mxu0 %v1599
        %1681 = vmatprep.subr.bf16.mxu0 %v1602
        %1682 = vmatpush1.bf16.msra.mxu0 %v1601
        %1683 = vmatprep.subr.bf16.mxu0 %v1604
        %1684 = vmatpush1.bf16.msra.mxu0 %v1603
        %1685 = vmatprep.subr.bf16.mxu0 %v1606
        %1686 = vmatpush1.bf16.msra.mxu0 %v1605
        %1687 = vmatprep.subr.bf16.mxu0 %v1608
        %1688 = vmatpush1.bf16.msra.mxu0 %v1607
        %1689 = vmatprep.subr.bf16.mxu0 %v1610
        %1690 = vmatpush1.bf16.msra.mxu0 %v1609
        %1691 = vmatprep.subr.bf16.mxu0 %v1612
        %1692 = vmatpush1.bf16.msra.mxu0 %v1611
        %1693 = vmatprep.subr.bf16.mxu0 %v1614
        %1694 = vmatpush1.bf16.msra.mxu0 %v1613
        %1695 = vmatprep.subr.bf16.mxu0 %v1616
        %1696 = vmatpush1.bf16.msra.mxu0 %v1615
        %1697 = vmatprep.subr.bf16.mxu0 %v1618
        %1698 = vmatpush1.bf16.msra.mxu0 %v1617
        %1699 = vmatprep.subr.bf16.mxu0 %v1620
        %1700 = vmatpush1.bf16.msra.mxu0 %v1619
        %1701 = vmatprep.mubr.bf16.mxu0 %v1654
        %1702 = vmatmul.mubr.bf16.gmra.mrb[0].mxu0 %v1653
        %v1703 = vpop.f32.mrb[0].mxu0
        %v1704 = vadd.f32 0.0, %v1703
        %v1705 = vpop.f32.mrb[0].mxu0
        %v1706 = vadd.f32 0.0, %v1705
        %v1707 = vpop.f32.mrb[0].mxu0
        %v1708 = vadd.f32 0.0, %v1707
        %v1709 = vpop.f32.mrb[0].mxu0
        %v1710 = vadd.f32 0.0, %v1709
        %1711 = vmatprep.mubr.bf16.mxu0 %v1657
        %1712 = vmatmul.mubr.bf16.gmra.mrb[0].mxu0 %v1656
        %v1713 = vpop.f32.mrb[0].mxu0
        %v1714 = vadd.f32 0.0, %v1713
        %v1715 = vpop.f32.mrb[0].mxu0
        %v1716 = vadd.f32 0.0, %v1715
        %v1717 = vpop.f32.mrb[0].mxu0
        %v1718 = vadd.f32 0.0, %v1717
        %v1719 = vpop.f32.mrb[0].mxu0
        %v1720 = vadd.f32 0.0, %v1719
        %1721 = vdwg.mxu0
        %1722 = vmatprep.subr.bf16.mxu0 %v1622
        %1723 = vmatpush1.bf16.msra.mxu0 %v1621
        %1724 = vmatprep.subr.bf16.mxu0 %v1624
        %1725 = vmatpush1.bf16.msra.mxu0 %v1623
        %1726 = vmatprep.subr.bf16.mxu0 0
        %1727 = vmatpush1.bf16.msra.mxu0 0
        %1728 = vmatprep.subr.bf16.mxu0 0
        %1729 = vmatpush1.bf16.msra.mxu0 0
        %1730 = vmatprep.subr.bf16.mxu0 0
        %1731 = vmatpush1.bf16.msra.mxu0 0
        %1732 = vmatprep.subr.bf16.mxu0 0
        %1733 = vmatpush1.bf16.msra.mxu0 0
        %1734 = vmatprep.subr.bf16.mxu0 0
        %1735 = vmatpush1.bf16.msra.mxu0 0
        %1736 = vmatprep.subr.bf16.mxu0 0
        %1737 = vmatpush1.bf16.msra.mxu0 0
        %1738 = vmatprep.subr.bf16.mxu0 0
        %1739 = vmatpush1.bf16.msra.mxu0 0
        %1740 = vmatprep.subr.bf16.mxu0 0
        %1741 = vmatpush1.bf16.msra.mxu0 0
        %1742 = vmatprep.subr.bf16.mxu0 0
        %1743 = vmatpush1.bf16.msra.mxu0 0
        %1744 = vmatprep.subr.bf16.mxu0 0
        %1745 = vmatpush1.bf16.msra.mxu0 0
        %1746 = vmatprep.subr.bf16.mxu0 0
        %1747 = vmatpush1.bf16.msra.mxu0 0
        %1748 = vmatprep.subr.bf16.mxu0 0
        %1749 = vmatpush1.bf16.msra.mxu0 0
        %1750 = vmatprep.subr.bf16.mxu0 0
        %1751 = vmatpush1.bf16.msra.mxu0 0
        %1752 = vmatprep.subr.bf16.mxu0 0
        %1753 = vmatpush1.bf16.msra.mxu0 0
        %1754 = vmatprep.mubr.bf16.mxu0 0
        %1755 = vmatmul.mubr.bf16.gmra.mrb[0].mxu0 %v1664
        %v1756 = vpop.f32.mrb[0].mxu0
        %v1757 = vadd.f32 %v1704, %v1756
        %v1758 = vpop.f32.mrb[0].mxu0
        %v1759 = vadd.f32 %v1706, %v1758
        %v1760 = vpop.f32.mrb[0].mxu0
        %v1761 = vadd.f32 %v1708, %v1760
        %v1762 = vpop.f32.mrb[0].mxu0
        %v1763 = vadd.f32 %v1710, %v1762
        %1764 = vmatprep.mubr.bf16.mxu0 0
        %1765 = vmatmul.mubr.bf16.gmra.mrb[0].mxu0 %v1667
        %v1766 = vpop.f32.mrb[0].mxu0
        %v1767 = vadd.f32 %v1714, %v1766
        %v1768 = vpop.f32.mrb[0].mxu0
        %v1769 = vadd.f32 %v1716, %v1768
        %v1770 = vpop.f32.mrb[0].mxu0
        %v1771 = vadd.f32 %v1718, %v1770
        %v1772 = vpop.f32.mrb[0].mxu0
        %v1773 = vadd.f32 %v1720, %v1772
        %1774 = vdwg.mxu0
        %v1775 = vmul.f32 %v1757, %v1224
        %v1776 = vmul.f32 %v1759, %v1226
        %v1777 = vmul.f32 %v1761, %v1230
        %v1778 = vmul.f32 %v1763, %v1232
        %v1779 = vmul.f32 %v1767, %v1236
        %v1780 = vmul.f32 %v1769, %v1238
        %v1781 = vmul.f32 %v1771, %v1242
        %v1782 = vmul.f32 %v1773, %v1244
        %v1783 = vmax.f32 %v1775, 0.0
        %v1784 = vmax.f32 %v1776, 0.0
        %v1785 = vmax.f32 %v1777, 0.0
        %v1786 = vmax.f32 %v1778, 0.0
        %v1787 = vmax.f32 %v1779, 0.0
        %v1788 = vmax.f32 %v1780, 0.0
        %v1789 = vmax.f32 %v1781, 0.0
        %v1790 = vmax.f32 %v1782, 0.0
        %vm1791 = vcmp.ne.f32.partialorder %v1775, %v1775
        %vm1792 = vcmp.ne.f32.partialorder %v1776, %v1776
        %vm1793 = vcmp.ne.f32.partialorder %v1777, %v1777
        %vm1794 = vcmp.ne.f32.partialorder %v1778, %v1778
        %vm1795 = vcmp.ne.f32.partialorder %v1779, %v1779
        %vm1796 = vcmp.ne.f32.partialorder %v1780, %v1780
        %vm1797 = vcmp.ne.f32.partialorder %v1781, %v1781
        %vm1798 = vcmp.ne.f32.partialorder %v1782, %v1782
        %v1799 = vadd.f32 %v1775, 0.0
        %v1800 = vadd.f32 %v1776, 0.0
        %v1801 = vadd.f32 %v1777, 0.0
        %v1802 = vadd.f32 %v1778, 0.0
        %v1803 = vadd.f32 %v1779, 0.0
        %v1804 = vadd.f32 %v1780, 0.0
        %v1805 = vadd.f32 %v1781, 0.0
        %v1806 = vadd.f32 %v1782, 0.0
        %v1807 = vand.u32 2147483647, %v1775
        %v1808 = vand.u32 2147483647, %v1776
        %v1809 = vand.u32 2147483647, %v1777
        %v1810 = vand.u32 2147483647, %v1778
        %v1811 = vand.u32 2147483647, %v1779
        %v1812 = vand.u32 2147483647, %v1780
        %v1813 = vand.u32 2147483647, %v1781
        %v1814 = vand.u32 2147483647, %v1782
        %v1815 = vsub.f32 0.0, %v1807
        %v1816 = vsub.f32 0.0, %v1808
        %v1817 = vsub.f32 0.0, %v1809
        %v1818 = vsub.f32 0.0, %v1810
        %v1819 = vsub.f32 0.0, %v1811
        %v1820 = vsub.f32 0.0, %v1812
        %v1821 = vsub.f32 0.0, %v1813
        %v1822 = vsub.f32 0.0, %v1814
        %v1823 = vmul.f32 %v1815, 1.442695
        %v1824 = vpow.pop %v1823
        %v1825 = vmul.f32 %v1816, 1.442695
        %v1826 = vpow.pop %v1825
        %v1827 = vmul.f32 %v1817, 1.442695
        %v1828 = vpow.pop %v1827
        %v1829 = vmul.f32 %v1818, 1.442695
        %v1830 = vpow.pop %v1829
        %v1831 = vmul.f32 %v1819, 1.442695
        %v1832 = vpow.pop %v1831
        %v1833 = vmul.f32 %v1820, 1.442695
        %v1834 = vpow.pop %v1833
        %v1835 = vmul.f32 %v1821, 1.442695
        %v1836 = vpow.pop %v1835
        %v1837 = vmul.f32 %v1822, 1.442695
        %v1838 = vpow.pop %v1837
        %v1839 = vadd.f32 %v1824, 1.0
        %v1840 = vlog2.pop %v1839
        %v1841 = vmul.f32 %v1840, 0.6931472
        %v1842 = vmul.f32 -0.5, %v1824
        %v1843 = vadd.f32 %v1842, 1.0
        %v1844 = vmul.f32 %v1843, %v1824
        %v1845 = vand.u32 2147483647, %v1824
        %vm1846 = vcmp.lt.f32.partialorder %v1845, 0.0004427343
        %v1847 = vsel %vm1846, %v1844, %v1841
        %v1848 = vadd.f32 %v1826, 1.0
        %v1849 = vlog2.pop %v1848
        %v1850 = vmul.f32 %v1849, 0.6931472
        %v1851 = vmul.f32 -0.5, %v1826
        %v1852 = vadd.f32 %v1851, 1.0
        %v1853 = vmul.f32 %v1852, %v1826
        %v1854 = vand.u32 2147483647, %v1826
        %vm1855 = vcmp.lt.f32.partialorder %v1854, 0.0004427343
        %v1856 = vsel %vm1855, %v1853, %v1850
        %v1857 = vadd.f32 %v1828, 1.0
        %v1858 = vlog2.pop %v1857
        %v1859 = vmul.f32 %v1858, 0.6931472
        %v1860 = vmul.f32 -0.5, %v1828
        %v1861 = vadd.f32 %v1860, 1.0
        %v1862 = vmul.f32 %v1861, %v1828
        %v1863 = vand.u32 2147483647, %v1828
        %vm1864 = vcmp.lt.f32.partialorder %v1863, 0.0004427343
        %v1865 = vsel %vm1864, %v1862, %v1859
        %v1866 = vadd.f32 %v1830, 1.0
        %v1867 = vlog2.pop %v1866
        %v1868 = vmul.f32 %v1867, 0.6931472
        %v1869 = vmul.f32 -0.5, %v1830
        %v1870 = vadd.f32 %v1869, 1.0
        %v1871 = vmul.f32 %v1870, %v1830
        %v1872 = vand.u32 2147483647, %v1830
        %vm1873 = vcmp.lt.f32.partialorder %v1872, 0.0004427343
        %v1874 = vsel %vm1873, %v1871, %v1868
        %v1875 = vadd.f32 %v1832, 1.0
        %v1876 = vlog2.pop %v1875
        %v1877 = vmul.f32 %v1876, 0.6931472
        %v1878 = vmul.f32 -0.5, %v1832
        %v1879 = vadd.f32 %v1878, 1.0
        %v1880 = vmul.f32 %v1879, %v1832
        %v1881 = vand.u32 2147483647, %v1832
        %vm1882 = vcmp.lt.f32.partialorder %v1881, 0.0004427343
        %v1883 = vsel %vm1882, %v1880, %v1877
        %v1884 = vadd.f32 %v1834, 1.0
        %v1885 = vlog2.pop %v1884
        %v1886 = vmul.f32 %v1885, 0.6931472
        %v1887 = vmul.f32 -0.5, %v1834
        %v1888 = vadd.f32 %v1887, 1.0
        %v1889 = vmul.f32 %v1888, %v1834
        %v1890 = vand.u32 2147483647, %v1834
        %vm1891 = vcmp.lt.f32.partialorder %v1890, 0.0004427343
        %v1892 = vsel %vm1891, %v1889, %v1886
        %v1893 = vadd.f32 %v1836, 1.0
        %v1894 = vlog2.pop %v1893
        %v1895 = vmul.f32 %v1894, 0.6931472
        %v1896 = vmul.f32 -0.5, %v1836
        %v1897 = vadd.f32 %v1896, 1.0
        %v1898 = vmul.f32 %v1897, %v1836
        %v1899 = vand.u32 2147483647, %v1836
        %vm1900 = vcmp.lt.f32.partialorder %v1899, 0.0004427343
        %v1901 = vsel %vm1900, %v1898, %v1895
        %v1902 = vadd.f32 %v1838, 1.0
        %v1903 = vlog2.pop %v1902
        %v1904 = vmul.f32 %v1903, 0.6931472
        %v1905 = vmul.f32 -0.5, %v1838
        %v1906 = vadd.f32 %v1905, 1.0
        %v1907 = vmul.f32 %v1906, %v1838
        %v1908 = vand.u32 2147483647, %v1838
        %vm1909 = vcmp.lt.f32.partialorder %v1908, 0.0004427343
        %v1910 = vsel %vm1909, %v1907, %v1904
        %v1911 = vadd.f32 %v1783, %v1847
        %v1912 = vadd.f32 %v1784, %v1856
        %v1913 = vadd.f32 %v1785, %v1865
        %v1914 = vadd.f32 %v1786, %v1874
        %v1915 = vadd.f32 %v1787, %v1883
        %v1916 = vadd.f32 %v1788, %v1892
        %v1917 = vadd.f32 %v1789, %v1901
        %v1918 = vadd.f32 %v1790, %v1910
        %v1919 = vsel %vm1791, %v1799, %v1911
        %v1920 = vsel %vm1792, %v1800, %v1912
        %v1921 = vsel %vm1793, %v1801, %v1913
        %v1922 = vsel %vm1794, %v1802, %v1914
        %v1923 = vsel %vm1795, %v1803, %v1915
        %v1924 = vsel %vm1796, %v1804, %v1916
        %v1925 = vsel %vm1797, %v1805, %v1917
        %v1926 = vsel %vm1798, %v1806, %v1918
        %v1927 = vsub.f32 %v503, %v1919
        %v1928 = vsub.f32 %v504, %v1920
        %v1929 = vsub.f32 %v505, %v1921
        %v1930 = vsub.f32 %v506, %v1922
        %v1931 = vsub.f32 %v507, %v1923
        %v1932 = vsub.f32 %v508, %v1924
        %v1933 = vsub.f32 %v509, %v1925
        %v1934 = vsub.f32 %v510, %v1926
        %v1935 = vmax.f32 %v1927, 0.0
        %v1936 = vmax.f32 %v1928, 0.0
        %v1937 = vmax.f32 %v1929, 0.0
        %v1938 = vmax.f32 %v1930, 0.0
        %v1939 = vmax.f32 %v1931, 0.0
        %v1940 = vmax.f32 %v1932, 0.0
        %v1941 = vmax.f32 %v1933, 0.0
        %v1942 = vmax.f32 %v1934, 0.0
        %vm1943 = vcmp.ne.f32.partialorder %v1927, %v1927
        %vm1944 = vcmp.ne.f32.partialorder %v1928, %v1928
        %vm1945 = vcmp.ne.f32.partialorder %v1929, %v1929
        %vm1946 = vcmp.ne.f32.partialorder %v1930, %v1930
        %vm1947 = vcmp.ne.f32.partialorder %v1931, %v1931
        %vm1948 = vcmp.ne.f32.partialorder %v1932, %v1932
        %vm1949 = vcmp.ne.f32.partialorder %v1933, %v1933
        %vm1950 = vcmp.ne.f32.partialorder %v1934, %v1934
        %v1951 = vadd.f32 %v1927, 0.0
        %v1952 = vadd.f32 %v1928, 0.0
        %v1953 = vadd.f32 %v1929, 0.0
        %v1954 = vadd.f32 %v1930, 0.0
        %v1955 = vadd.f32 %v1931, 0.0
        %v1956 = vadd.f32 %v1932, 0.0
        %v1957 = vadd.f32 %v1933, 0.0
        %v1958 = vadd.f32 %v1934, 0.0
        %v1959 = vand.u32 2147483647, %v1927
        %v1960 = vand.u32 2147483647, %v1928
        %v1961 = vand.u32 2147483647, %v1929
        %v1962 = vand.u32 2147483647, %v1930
        %v1963 = vand.u32 2147483647, %v1931
        %v1964 = vand.u32 2147483647, %v1932
        %v1965 = vand.u32 2147483647, %v1933
        %v1966 = vand.u32 2147483647, %v1934
        %v1967 = vsub.f32 0.0, %v1959
        %v1968 = vsub.f32 0.0, %v1960
        %v1969 = vsub.f32 0.0, %v1961
        %v1970 = vsub.f32 0.0, %v1962
        %v1971 = vsub.f32 0.0, %v1963
        %v1972 = vsub.f32 0.0, %v1964
        %v1973 = vsub.f32 0.0, %v1965
        %v1974 = vsub.f32 0.0, %v1966
        %v1975 = vmul.f32 %v1967, 1.442695
        %v1976 = vpow.pop %v1975
        %v1977 = vmul.f32 %v1968, 1.442695
        %v1978 = vpow.pop %v1977
        %v1979 = vmul.f32 %v1969, 1.442695
        %v1980 = vpow.pop %v1979
        %v1981 = vmul.f32 %v1970, 1.442695
        %v1982 = vpow.pop %v1981
        %v1983 = vmul.f32 %v1971, 1.442695
        %v1984 = vpow.pop %v1983
        %v1985 = vmul.f32 %v1972, 1.442695
        %v1986 = vpow.pop %v1985
        %v1987 = vmul.f32 %v1973, 1.442695
        %v1988 = vpow.pop %v1987
        %v1989 = vmul.f32 %v1974, 1.442695
        %v1990 = vpow.pop %v1989
        %v1991 = vadd.f32 %v1976, 1.0
        %v1992 = vlog2.pop %v1991
        %v1993 = vmul.f32 %v1992, 0.6931472
        %v1994 = vmul.f32 -0.5, %v1976
        %v1995 = vadd.f32 %v1994, 1.0
        %v1996 = vmul.f32 %v1995, %v1976
        %v1997 = vand.u32 2147483647, %v1976
        %vm1998 = vcmp.lt.f32.partialorder %v1997, 0.0004427343
        %v1999 = vsel %vm1998, %v1996, %v1993
        %v2000 = vadd.f32 %v1978, 1.0
        %v2001 = vlog2.pop %v2000
        %v2002 = vmul.f32 %v2001, 0.6931472
        %v2003 = vmul.f32 -0.5, %v1978
        %v2004 = vadd.f32 %v2003, 1.0
        %v2005 = vmul.f32 %v2004, %v1978
        %v2006 = vand.u32 2147483647, %v1978
        %vm2007 = vcmp.lt.f32.partialorder %v2006, 0.0004427343
        %v2008 = vsel %vm2007, %v2005, %v2002
        %v2009 = vadd.f32 %v1980, 1.0
        %v2010 = vlog2.pop %v2009
        %v2011 = vmul.f32 %v2010, 0.6931472
        %v2012 = vmul.f32 -0.5, %v1980
        %v2013 = vadd.f32 %v2012, 1.0
        %v2014 = vmul.f32 %v2013, %v1980
        %v2015 = vand.u32 2147483647, %v1980
        %vm2016 = vcmp.lt.f32.partialorder %v2015, 0.0004427343
        %v2017 = vsel %vm2016, %v2014, %v2011
        %v2018 = vadd.f32 %v1982, 1.0
        %v2019 = vlog2.pop %v2018
        %v2020 = vmul.f32 %v2019, 0.6931472
        %v2021 = vmul.f32 -0.5, %v1982
        %v2022 = vadd.f32 %v2021, 1.0
        %v2023 = vmul.f32 %v2022, %v1982
        %v2024 = vand.u32 2147483647, %v1982
        %vm2025 = vcmp.lt.f32.partialorder %v2024, 0.0004427343
        %v2026 = vsel %vm2025, %v2023, %v2020
        %v2027 = vadd.f32 %v1984, 1.0
        %v2028 = vlog2.pop %v2027
        %v2029 = vmul.f32 %v2028, 0.6931472
        %v2030 = vmul.f32 -0.5, %v1984
        %v2031 = vadd.f32 %v2030, 1.0
        %v2032 = vmul.f32 %v2031, %v1984
        %v2033 = vand.u32 2147483647, %v1984
        %vm2034 = vcmp.lt.f32.partialorder %v2033, 0.0004427343
        %v2035 = vsel %vm2034, %v2032, %v2029
        %v2036 = vadd.f32 %v1986, 1.0
        %v2037 = vlog2.pop %v2036
        %v2038 = vmul.f32 %v2037, 0.6931472
        %v2039 = vmul.f32 -0.5, %v1986
        %v2040 = vadd.f32 %v2039, 1.0
        %v2041 = vmul.f32 %v2040, %v1986
        %v2042 = vand.u32 2147483647, %v1986
        %vm2043 = vcmp.lt.f32.partialorder %v2042, 0.0004427343
        %v2044 = vsel %vm2043, %v2041, %v2038
        %v2045 = vadd.f32 %v1988, 1.0
        %v2046 = vlog2.pop %v2045
        %v2047 = vmul.f32 %v2046, 0.6931472
        %v2048 = vmul.f32 -0.5, %v1988
        %v2049 = vadd.f32 %v2048, 1.0
        %v2050 = vmul.f32 %v2049, %v1988
        %v2051 = vand.u32 2147483647, %v1988
        %vm2052 = vcmp.lt.f32.partialorder %v2051, 0.0004427343
        %v2053 = vsel %vm2052, %v2050, %v2047
        %v2054 = vadd.f32 %v1990, 1.0
        %v2055 = vlog2.pop %v2054
        %v2056 = vmul.f32 %v2055, 0.6931472
        %v2057 = vmul.f32 -0.5, %v1990
        %v2058 = vadd.f32 %v2057, 1.0
        %v2059 = vmul.f32 %v2058, %v1990
        %v2060 = vand.u32 2147483647, %v1990
        %vm2061 = vcmp.lt.f32.partialorder %v2060, 0.0004427343
        %v2062 = vsel %vm2061, %v2059, %v2056
        %v2063 = vadd.f32 %v1935, %v1999
        %v2064 = vadd.f32 %v1936, %v2008
        %v2065 = vadd.f32 %v1937, %v2017
        %v2066 = vadd.f32 %v1938, %v2026
        %v2067 = vadd.f32 %v1939, %v2035
        %v2068 = vadd.f32 %v1940, %v2044
        %v2069 = vadd.f32 %v1941, %v2053
        %v2070 = vadd.f32 %v1942, %v2062
        %v2071 = vsel %vm1943, %v1951, %v2063
        %v2072 = vsel %vm1944, %v1952, %v2064
        %v2073 = vsel %vm1945, %v1953, %v2065
        %v2074 = vsel %vm1946, %v1954, %v2066
        %v2075 = vsel %vm1947, %v1955, %v2067
        %v2076 = vsel %vm1948, %v1956, %v2068
        %v2077 = vsel %vm1949, %v1957, %v2069
        %v2078 = vsel %vm1950, %v1958, %v2070
        %v2079 = vsel %vm1279, %v2071, 0.0
        %v2080 = vsel %vm1280, %v2072, 0.0
        %v2081 = vsel %vm1279, %v2073, 0.0
        %v2082 = vsel %vm1280, %v2074, 0.0
        %v2083 = vsel %vm1279, %v2075, 0.0
        %v2084 = vsel %vm1280, %v2076, 0.0
        %v2085 = vsel %vm1279, %v2077, 0.0
        %v2086 = vsel %vm1280, %v2078, 0.0
        %v2087 = vsel %vm1291, %v2071, 0.0
        %v2088 = vsel %vm1292, %v2072, 0.0
        %v2089 = vsel %vm1291, %v2073, 0.0
        %v2090 = vsel %vm1292, %v2074, 0.0
        %v2091 = vsel %vm1291, %v2075, 0.0
        %v2092 = vsel %vm1292, %v2076, 0.0
        %v2093 = vsel %vm1291, %v2077, 0.0
        %v2094 = vsel %vm1292, %v2078, 0.0
        %2103 = vrot.lane.b32.xlu0 %v2079, 17
        %v2104 = vpop.permute.xlu0 %2103
        %2105 = vrot.lane.b32.xlu0 %v2080, 17
        %v2106 = vpop.permute.xlu0 %2105
        %2107 = vrot.lane.b32.xlu0 %v2081, 17
        %v2108 = vpop.permute.xlu0 %2107
        %2109 = vrot.lane.b32.xlu0 %v2082, 17
        %v2110 = vpop.permute.xlu0 %2109
        %2111 = vrot.lane.b32.xlu0 %v2083, 17
        %v2112 = vpop.permute.xlu0 %2111
        %2113 = vrot.lane.b32.xlu0 %v2084, 17
        %v2114 = vpop.permute.xlu0 %2113
        %2115 = vrot.lane.b32.xlu0 %v2085, 17
        %v2116 = vpop.permute.xlu0 %2115
        %2117 = vrot.lane.b32.xlu0 %v2086, 17
        %v2118 = vpop.permute.xlu0 %2117
        %v2119 = vsel %vm1325, %v2104, %v2106
        %v2120 = vsel %vm1325, %v2108, %v2110
        %v2121 = vsel %vm1325, %v2112, %v2114
        %v2122 = vsel %vm1325, %v2116, %v2118
        %v2131 = vsel %vm1325, 0.0, %v2104
        %v2132 = vsel %vm1325, 0.0, %v2108
        %v2133 = vsel %vm1325, 0.0, %v2112
        %v2134 = vsel %vm1325, 0.0, %v2116
        %2143 = vrot.lane.b32.xlu0 %v2071, 16
        %v2144 = vpop.permute.xlu0 %2143
        %2145 = vrot.lane.b32.xlu0 %v2072, 16
        %v2146 = vpop.permute.xlu0 %2145
        %2147 = vrot.lane.b32.xlu0 %v2073, 16
        %v2148 = vpop.permute.xlu0 %2147
        %2149 = vrot.lane.b32.xlu0 %v2074, 16
        %v2150 = vpop.permute.xlu0 %2149
        %2151 = vrot.lane.b32.xlu0 %v2075, 16
        %v2152 = vpop.permute.xlu0 %2151
        %2153 = vrot.lane.b32.xlu0 %v2076, 16
        %v2154 = vpop.permute.xlu0 %2153
        %2155 = vrot.lane.b32.xlu0 %v2077, 16
        %v2156 = vpop.permute.xlu0 %2155
        %2157 = vrot.lane.b32.xlu0 %v2078, 16
        %v2158 = vpop.permute.xlu0 %2157
        %v2159 = vsel %vm1366, %v2144, %v2146
        %v2160 = vsel %vm1366, %v2148, %v2150
        %v2161 = vsel %vm1366, %v2152, %v2154
        %v2162 = vsel %vm1366, %v2156, %v2158
        %v2171 = vsel %vm1366, 0.0, %v2144
        %v2172 = vsel %vm1366, 0.0, %v2148
        %v2173 = vsel %vm1366, 0.0, %v2152
        %v2174 = vsel %vm1366, 0.0, %v2156
        %2183 = vrot.lane.b32.xlu0 %v2087, 15
        %v2184 = vpop.permute.xlu0 %2183
        %2185 = vrot.lane.b32.xlu0 %v2088, 15
        %v2186 = vpop.permute.xlu0 %2185
        %2187 = vrot.lane.b32.xlu0 %v2089, 15
        %v2188 = vpop.permute.xlu0 %2187
        %2189 = vrot.lane.b32.xlu0 %v2090, 15
        %v2190 = vpop.permute.xlu0 %2189
        %2191 = vrot.lane.b32.xlu0 %v2091, 15
        %v2192 = vpop.permute.xlu0 %2191
        %2193 = vrot.lane.b32.xlu0 %v2092, 15
        %v2194 = vpop.permute.xlu0 %2193
        %2195 = vrot.lane.b32.xlu0 %v2093, 15
        %v2196 = vpop.permute.xlu0 %2195
        %2197 = vrot.lane.b32.xlu0 %v2094, 15
        %v2198 = vpop.permute.xlu0 %2197
        %v2199 = vsel %vm1407, %v2184, %v2186
        %v2200 = vsel %vm1407, %v2188, %v2190
        %v2201 = vsel %vm1407, %v2192, %v2194
        %v2202 = vsel %vm1407, %v2196, %v2198
        %v2211 = vsel %vm1407, 0.0, %v2184
        %v2212 = vsel %vm1407, 0.0, %v2188
        %v2213 = vsel %vm1407, 0.0, %v2192
        %v2214 = vsel %vm1407, 0.0, %v2196
        %2215 = vrot.lane.b32.xlu0 %v2079, 1
        %v2216 = vpop.permute.xlu0 %2215
        %2217 = vrot.lane.b32.xlu0 %v2080, 1
        %v2218 = vpop.permute.xlu0 %2217
        %2219 = vrot.lane.b32.xlu0 %v2081, 1
        %v2220 = vpop.permute.xlu0 %2219
        %2221 = vrot.lane.b32.xlu0 %v2082, 1
        %v2222 = vpop.permute.xlu0 %2221
        %2223 = vrot.lane.b32.xlu0 %v2083, 1
        %v2224 = vpop.permute.xlu0 %2223
        %2225 = vrot.lane.b32.xlu0 %v2084, 1
        %v2226 = vpop.permute.xlu0 %2225
        %2227 = vrot.lane.b32.xlu0 %v2085, 1
        %v2228 = vpop.permute.xlu0 %2227
        %2229 = vrot.lane.b32.xlu0 %v2086, 1
        %v2230 = vpop.permute.xlu0 %2229
        %v2231 = vsel %vm1440, %v2216, %v2218
        %v2232 = vsel %vm1440, %v2220, %v2222
        %v2233 = vsel %vm1440, %v2224, %v2226
        %v2234 = vsel %vm1440, %v2228, %v2230
        %v2243 = vsel %vm1440, 0.0, %v2216
        %v2244 = vsel %vm1440, 0.0, %v2220
        %v2245 = vsel %vm1440, 0.0, %v2224
        %v2246 = vsel %vm1440, 0.0, %v2228
        %2247 = vrot.lane.b32.xlu0 %v2087, 127
        %v2248 = vpop.permute.xlu0 %2247
        %2249 = vrot.lane.b32.xlu0 %v2088, 127
        %v2250 = vpop.permute.xlu0 %2249
        %2251 = vrot.lane.b32.xlu0 %v2089, 127
        %v2252 = vpop.permute.xlu0 %2251
        %2253 = vrot.lane.b32.xlu0 %v2090, 127
        %v2254 = vpop.permute.xlu0 %2253
        %2255 = vrot.lane.b32.xlu0 %v2091, 127
        %v2256 = vpop.permute.xlu0 %2255
        %2257 = vrot.lane.b32.xlu0 %v2092, 127
        %v2258 = vpop.permute.xlu0 %2257
        %2259 = vrot.lane.b32.xlu0 %v2093, 127
        %v2260 = vpop.permute.xlu0 %2259
        %2261 = vrot.lane.b32.xlu0 %v2094, 127
        %v2262 = vpop.permute.xlu0 %2261
        %v2263 = vsel %vm1473, %v2248, %v2250
        %v2264 = vsel %vm1473, %v2252, %v2254
        %v2265 = vsel %vm1473, %v2256, %v2258
        %v2266 = vsel %vm1473, %v2260, %v2262
        %v2275 = vsel %vm1473, %v2250, 0.0
        %v2276 = vsel %vm1473, %v2254, 0.0
        %v2277 = vsel %vm1473, %v2258, 0.0
        %v2278 = vsel %vm1473, %v2262, 0.0
        %2279 = vrot.lane.b32.xlu0 %v2079, 113
        %v2280 = vpop.permute.xlu0 %2279
        %2281 = vrot.lane.b32.xlu0 %v2080, 113
        %v2282 = vpop.permute.xlu0 %2281
        %2283 = vrot.lane.b32.xlu0 %v2081, 113
        %v2284 = vpop.permute.xlu0 %2283
        %2285 = vrot.lane.b32.xlu0 %v2082, 113
        %v2286 = vpop.permute.xlu0 %2285
        %2287 = vrot.lane.b32.xlu0 %v2083, 113
        %v2288 = vpop.permute.xlu0 %2287
        %2289 = vrot.lane.b32.xlu0 %v2084, 113
        %v2290 = vpop.permute.xlu0 %2289
        %2291 = vrot.lane.b32.xlu0 %v2085, 113
        %v2292 = vpop.permute.xlu0 %2291
        %2293 = vrot.lane.b32.xlu0 %v2086, 113
        %v2294 = vpop.permute.xlu0 %2293
        %v2295 = vsel %vm1506, %v2280, %v2282
        %v2296 = vsel %vm1506, %v2284, %v2286
        %v2297 = vsel %vm1506, %v2288, %v2290
        %v2298 = vsel %vm1506, %v2292, %v2294
        %v2307 = vsel %vm1506, %v2282, 0.0
        %v2308 = vsel %vm1506, %v2286, 0.0
        %v2309 = vsel %vm1506, %v2290, 0.0
        %v2310 = vsel %vm1506, %v2294, 0.0
        %2311 = vrot.lane.b32.xlu0 %v2071, 112
        %v2312 = vpop.permute.xlu0 %2311
        %2313 = vrot.lane.b32.xlu0 %v2072, 112
        %v2314 = vpop.permute.xlu0 %2313
        %2315 = vrot.lane.b32.xlu0 %v2073, 112
        %v2316 = vpop.permute.xlu0 %2315
        %2317 = vrot.lane.b32.xlu0 %v2074, 112
        %v2318 = vpop.permute.xlu0 %2317
        %2319 = vrot.lane.b32.xlu0 %v2075, 112
        %v2320 = vpop.permute.xlu0 %2319
        %2321 = vrot.lane.b32.xlu0 %v2076, 112
        %v2322 = vpop.permute.xlu0 %2321
        %2323 = vrot.lane.b32.xlu0 %v2077, 112
        %v2324 = vpop.permute.xlu0 %2323
        %2325 = vrot.lane.b32.xlu0 %v2078, 112
        %v2326 = vpop.permute.xlu0 %2325
        %v2327 = vsel %vm1539, %v2312, %v2314
        %v2328 = vsel %vm1539, %v2316, %v2318
        %v2329 = vsel %vm1539, %v2320, %v2322
        %v2330 = vsel %vm1539, %v2324, %v2326
        %v2339 = vsel %vm1539, %v2314, 0.0
        %v2340 = vsel %vm1539, %v2318, 0.0
        %v2341 = vsel %vm1539, %v2322, 0.0
        %v2342 = vsel %vm1539, %v2326, 0.0
        %2343 = vrot.lane.b32.xlu0 %v2087, 111
        %v2344 = vpop.permute.xlu0 %2343
        %2345 = vrot.lane.b32.xlu0 %v2088, 111
        %v2346 = vpop.permute.xlu0 %2345
        %2347 = vrot.lane.b32.xlu0 %v2089, 111
        %v2348 = vpop.permute.xlu0 %2347
        %2349 = vrot.lane.b32.xlu0 %v2090, 111
        %v2350 = vpop.permute.xlu0 %2349
        %2351 = vrot.lane.b32.xlu0 %v2091, 111
        %v2352 = vpop.permute.xlu0 %2351
        %2353 = vrot.lane.b32.xlu0 %v2092, 111
        %v2354 = vpop.permute.xlu0 %2353
        %2355 = vrot.lane.b32.xlu0 %v2093, 111
        %v2356 = vpop.permute.xlu0 %2355
        %2357 = vrot.lane.b32.xlu0 %v2094, 111
        %v2358 = vpop.permute.xlu0 %2357
        %v2359 = vsel %vm1572, %v2344, %v2346
        %v2360 = vsel %vm1572, %v2348, %v2350
        %v2361 = vsel %vm1572, %v2352, %v2354
        %v2362 = vsel %vm1572, %v2356, %v2358
        %v2371 = vsel %vm1572, %v2346, 0.0
        %v2372 = vsel %vm1572, %v2350, 0.0
        %v2373 = vsel %vm1572, %v2354, 0.0
        %v2374 = vsel %vm1572, %v2358, 0.0
        %v2375 = vpack.c.bf16 %v2132, %v2131
        %v2376 = vpack.c.bf16 %v2120, %v2119
        %v2377 = vpack.c.bf16 %v2134, %v2133
        %v2378 = vpack.c.bf16 %v2122, %v2121
        %v2379 = vpack.c.bf16 %v2172, %v2171
        %v2380 = vpack.c.bf16 %v2160, %v2159
        %v2381 = vpack.c.bf16 %v2174, %v2173
        %v2382 = vpack.c.bf16 %v2162, %v2161
        %v2383 = vpack.c.bf16 %v2212, %v2211
        %v2384 = vpack.c.bf16 %v2200, %v2199
        %v2385 = vpack.c.bf16 %v2214, %v2213
        %v2386 = vpack.c.bf16 %v2202, %v2201
        %v2387 = vpack.c.bf16 %v2244, %v2243
        %v2388 = vpack.c.bf16 %v2232, %v2231
        %v2389 = vpack.c.bf16 %v2246, %v2245
        %v2390 = vpack.c.bf16 %v2234, %v2233
        %v2391 = vpack.c.bf16 %v2073, %v2071
        %v2392 = vpack.c.bf16 %v2074, %v2072
        %v2393 = vpack.c.bf16 %v2077, %v2075
        %v2394 = vpack.c.bf16 %v2078, %v2076
        %v2395 = vpack.c.bf16 %v2264, %v2263
        %v2396 = vpack.c.bf16 %v2276, %v2275
        %v2397 = vpack.c.bf16 %v2266, %v2265
        %v2398 = vpack.c.bf16 %v2278, %v2277
        %v2399 = vpack.c.bf16 %v2296, %v2295
        %v2400 = vpack.c.bf16 %v2308, %v2307
        %v2401 = vpack.c.bf16 %v2298, %v2297
        %v2402 = vpack.c.bf16 %v2310, %v2309
        %v2403 = vpack.c.bf16 %v2328, %v2327
        %v2404 = vpack.c.bf16 %v2340, %v2339
        %v2405 = vpack.c.bf16 %v2330, %v2329
        %v2406 = vpack.c.bf16 %v2342, %v2341
        %v2407 = vpack.c.bf16 %v2360, %v2359
        %v2408 = vpack.c.bf16 %v2372, %v2371
        %v2409 = vpack.c.bf16 %v2362, %v2361
        %v2410 = vpack.c.bf16 %v2374, %v2373
        %v2411 = vld [vmem:[#allocation7] sm:$0xff]
        %v2412 = vld [vmem:[#allocation7 + $0x8] sm:$0xf]
        %v2413 = vld [vmem:[#allocation7 + $0xc] sm:$0xff]
        %v2414 = vld [vmem:[#allocation7 + $0x14] sm:$0xf]
        %v2415 = vld [vmem:[#allocation7 + $0x18] sm:$0xff]
        %v2416 = vld [vmem:[#allocation7 + $0x20] sm:$0xf]
        %v2417 = vld [vmem:[#allocation7 + $0x24] sm:$0xff]
        %v2418 = vld [vmem:[#allocation7 + $0x2c] sm:$0xf]
        %v2427 = vunpack.c.l.b16 %v2411
        %v2428 = vunpack.c.h.b16 %v2411
        %v2429 = vunpack.c.l.b16 %v2412
        %v2430 = vunpack.c.l.b16 %v2413
        %v2431 = vunpack.c.h.b16 %v2413
        %v2432 = vunpack.c.l.b16 %v2414
        %v2433 = vunpack.c.l.b16 %v2415
        %v2434 = vunpack.c.h.b16 %v2415
        %v2435 = vunpack.c.l.b16 %v2416
        %v2436 = vunpack.c.l.b16 %v2417
        %v2437 = vunpack.c.h.b16 %v2417
        %v2438 = vunpack.c.l.b16 %v2418
        %v2439 = vpack.c.b16 %v2430, %v2427
        %v2440 = vpack.c.b16 %v2431, %v2428
        %v2441 = vpack.c.b16 %v2432, %v2429
        %v2442 = vpack.c.b16 %v2436, %v2433
        %v2443 = vpack.c.b16 %v2437, %v2434
        %v2444 = vpack.c.b16 %v2438, %v2435
        %v2450 = vsel %vm745, %v2441, 0
        %v2453 = vsel %vm745, %v2444, 0
        %2455 = vmatprep.subr.bf16.mxu0 %v2376
        %2456 = vmatpush1.bf16.msra.mxu0 %v2375
        %2457 = vmatprep.subr.bf16.mxu0 %v2378
        %2458 = vmatpush1.bf16.msra.mxu0 %v2377
        %2459 = vmatprep.subr.bf16.mxu0 %v2380
        %2460 = vmatpush1.bf16.msra.mxu0 %v2379
        %2461 = vmatprep.subr.bf16.mxu0 %v2382
        %2462 = vmatpush1.bf16.msra.mxu0 %v2381
        %2463 = vmatprep.subr.bf16.mxu0 %v2384
        %2464 = vmatpush1.bf16.msra.mxu0 %v2383
        %2465 = vmatprep.subr.bf16.mxu0 %v2386
        %2466 = vmatpush1.bf16.msra.mxu0 %v2385
        %2467 = vmatprep.subr.bf16.mxu0 %v2388
        %2468 = vmatpush1.bf16.msra.mxu0 %v2387
        %2469 = vmatprep.subr.bf16.mxu0 %v2390
        %2470 = vmatpush1.bf16.msra.mxu0 %v2389
        %2471 = vmatprep.subr.bf16.mxu0 %v2392
        %2472 = vmatpush1.bf16.msra.mxu0 %v2391
        %2473 = vmatprep.subr.bf16.mxu0 %v2394
        %2474 = vmatpush1.bf16.msra.mxu0 %v2393
        %2475 = vmatprep.subr.bf16.mxu0 %v2396
        %2476 = vmatpush1.bf16.msra.mxu0 %v2395
        %2477 = vmatprep.subr.bf16.mxu0 %v2398
        %2478 = vmatpush1.bf16.msra.mxu0 %v2397
        %2479 = vmatprep.subr.bf16.mxu0 %v2400
        %2480 = vmatpush1.bf16.msra.mxu0 %v2399
        %2481 = vmatprep.subr.bf16.mxu0 %v2402
        %2482 = vmatpush1.bf16.msra.mxu0 %v2401
        %2483 = vmatprep.subr.bf16.mxu0 %v2404
        %2484 = vmatpush1.bf16.msra.mxu0 %v2403
        %2485 = vmatprep.subr.bf16.mxu0 %v2406
        %2486 = vmatpush1.bf16.msra.mxu0 %v2405
        %2487 = vmatprep.mubr.bf16.mxu0 %v2440
        %2488 = vmatmul.mubr.bf16.gmra.mrb[0].mxu0 %v2439
        %v2489 = vpop.f32.mrb[0].mxu0
        %v2490 = vadd.f32 0.0, %v2489
        %v2491 = vpop.f32.mrb[0].mxu0
        %v2492 = vadd.f32 0.0, %v2491
        %v2493 = vpop.f32.mrb[0].mxu0
        %v2494 = vadd.f32 0.0, %v2493
        %v2495 = vpop.f32.mrb[0].mxu0
        %v2496 = vadd.f32 0.0, %v2495
        %2497 = vmatprep.mubr.bf16.mxu0 %v2443
        %2498 = vmatmul.mubr.bf16.gmra.mrb[0].mxu0 %v2442
        %v2499 = vpop.f32.mrb[0].mxu0
        %v2500 = vadd.f32 0.0, %v2499
        %v2501 = vpop.f32.mrb[0].mxu0
        %v2502 = vadd.f32 0.0, %v2501
        %v2503 = vpop.f32.mrb[0].mxu0
        %v2504 = vadd.f32 0.0, %v2503
        %v2505 = vpop.f32.mrb[0].mxu0
        %v2506 = vadd.f32 0.0, %v2505
        %2507 = vdwg.mxu0
        %2508 = vmatprep.subr.bf16.mxu0 %v2408
        %2509 = vmatpush1.bf16.msra.mxu0 %v2407
        %2510 = vmatprep.subr.bf16.mxu0 %v2410
        %2511 = vmatpush1.bf16.msra.mxu0 %v2409
        %2512 = vmatprep.subr.bf16.mxu0 0
        %2513 = vmatpush1.bf16.msra.mxu0 0
        %2514 = vmatprep.subr.bf16.mxu0 0
        %2515 = vmatpush1.bf16.msra.mxu0 0
        %2516 = vmatprep.subr.bf16.mxu0 0
        %2517 = vmatpush1.bf16.msra.mxu0 0
        %2518 = vmatprep.subr.bf16.mxu0 0
        %2519 = vmatpush1.bf16.msra.mxu0 0
        %2520 = vmatprep.subr.bf16.mxu0 0
        %2521 = vmatpush1.bf16.msra.mxu0 0
        %2522 = vmatprep.subr.bf16.mxu0 0
        %2523 = vmatpush1.bf16.msra.mxu0 0
        %2524 = vmatprep.subr.bf16.mxu0 0
        %2525 = vmatpush1.bf16.msra.mxu0 0
        %2526 = vmatprep.subr.bf16.mxu0 0
        %2527 = vmatpush1.bf16.msra.mxu0 0
        %2528 = vmatprep.subr.bf16.mxu0 0
        %2529 = vmatpush1.bf16.msra.mxu0 0
        %2530 = vmatprep.subr.bf16.mxu0 0
        %2531 = vmatpush1.bf16.msra.mxu0 0
        %2532 = vmatprep.subr.bf16.mxu0 0
        %2533 = vmatpush1.bf16.msra.mxu0 0
        %2534 = vmatprep.subr.bf16.mxu0 0
        %2535 = vmatpush1.bf16.msra.mxu0 0
        %2536 = vmatprep.subr.bf16.mxu0 0
        %2537 = vmatpush1.bf16.msra.mxu0 0
        %2538 = vmatprep.subr.bf16.mxu0 0
        %2539 = vmatpush1.bf16.msra.mxu0 0
        %2540 = vmatprep.mubr.bf16.mxu0 0
        %2541 = vmatmul.mubr.bf16.gmra.mrb[0].mxu0 %v2450
        %v2542 = vpop.f32.mrb[0].mxu0
        %v2543 = vadd.f32 %v2490, %v2542
        %v2544 = vpop.f32.mrb[0].mxu0
        %v2545 = vadd.f32 %v2492, %v2544
        %v2546 = vpop.f32.mrb[0].mxu0
        %v2547 = vadd.f32 %v2494, %v2546
        %v2548 = vpop.f32.mrb[0].mxu0
        %v2549 = vadd.f32 %v2496, %v2548
        %2550 = vmatprep.mubr.bf16.mxu0 0
        %2551 = vmatmul.mubr.bf16.gmra.mrb[0].mxu0 %v2453
        %v2552 = vpop.f32.mrb[0].mxu0
        %v2553 = vadd.f32 %v2500, %v2552
        %v2554 = vpop.f32.mrb[0].mxu0
        %v2555 = vadd.f32 %v2502, %v2554
        %v2556 = vpop.f32.mrb[0].mxu0
        %v2557 = vadd.f32 %v2504, %v2556
        %v2558 = vpop.f32.mrb[0].mxu0
        %v2559 = vadd.f32 %v2506, %v2558
        %2560 = vdwg.mxu0
        %v2561 = vld [vmem:[%s7] sm:$0xf]
        %v2562 = vld [vmem:[%s7 + $0x4] sm:$0xf]
        %v2563 = vld [vmem:[%s7 + $0x8] sm:$0xf]
        %v2564 = vld [vmem:[%s7 + $0xc] sm:$0xf]
        %2565 = vset.pattern.permute.xlu0 2
        %2566 = vperm.xlu0 %2565, %v499
        %v2567 = vpop.permute.xlu0 %2566
        %2569 = vset.pattern.permute.xlu0 2
        %2570 = vperm.xlu0 %2569, %v500
        %v2571 = vpop.permute.xlu0 %2570
        %2573 = vset.pattern.permute.xlu0 2
        %2574 = vperm.xlu0 %2573, %v501
        %v2575 = vpop.permute.xlu0 %2574
        %2577 = vset.pattern.permute.xlu0 2
        %2578 = vperm.xlu0 %2577, %v502
        %v2579 = vpop.permute.xlu0 %2578
        %v2585 = vunpack.c.l.b16 %v2561
        %v2586 = vunpack.c.l.b16 %v2562
        %v2587 = vunpack.c.l.b16 %v2563
        %v2588 = vunpack.c.l.b16 %v2564
        %v2589 = vpack.c.b16 %v2586, %v2585
        %v2590 = vpack.c.b16 %v2588, %v2587
        %v2592 = vsel %vm745, %v2589, 0
        %v2595 = vsel %vm745, %v2590, 0
        %2597 = vmatprep.subr.bf16.mxu0 %v2392
        %2598 = vmatpush1.bf16.msra.mxu0 %v2391
        %2599 = vmatprep.subr.bf16.mxu0 %v2394
        %2600 = vmatpush1.bf16.msra.mxu0 %v2393
        %2601 = vmatprep.subr.bf16.mxu0 0
        %2602 = vmatpush1.bf16.msra.mxu0 0
        %2603 = vmatprep.subr.bf16.mxu0 0
        %2604 = vmatpush1.bf16.msra.mxu0 0
        %2605 = vmatprep.subr.bf16.mxu0 0
        %2606 = vmatpush1.bf16.msra.mxu0 0
        %2607 = vmatprep.subr.bf16.mxu0 0
        %2608 = vmatpush1.bf16.msra.mxu0 0
        %2609 = vmatprep.subr.bf16.mxu0 0
        %2610 = vmatpush1.bf16.msra.mxu0 0
        %2611 = vmatprep.subr.bf16.mxu0 0
        %2612 = vmatpush1.bf16.msra.mxu0 0
        %2613 = vmatprep.subr.bf16.mxu0 0
        %2614 = vmatpush1.bf16.msra.mxu0 0
        %2615 = vmatprep.subr.bf16.mxu0 0
        %2616 = vmatpush1.bf16.msra.mxu0 0
        %2617 = vmatprep.subr.bf16.mxu0 0
        %2618 = vmatpush1.bf16.msra.mxu0 0
        %2619 = vmatprep.subr.bf16.mxu0 0
        %2620 = vmatpush1.bf16.msra.mxu0 0
        %2621 = vmatprep.subr.bf16.mxu0 0
        %2622 = vmatpush1.bf16.msra.mxu0 0
        %2623 = vmatprep.subr.bf16.mxu0 0
        %2624 = vmatpush1.bf16.msra.mxu0 0
        %2625 = vmatprep.subr.bf16.mxu0 0
        %2626 = vmatpush1.bf16.msra.mxu0 0
        %2627 = vmatprep.subr.bf16.mxu0 0
        %2628 = vmatpush1.bf16.msra.mxu0 0
        %2629 = vmatprep.mubr.bf16.mxu0 0
        %2630 = vmatmul.mubr.bf16.gmra.mrb[0].mxu0 %v2592
        %v2631 = vpop.f32.mrb[0].mxu0
        %v2632 = vadd.f32 %v2567, %v2631
        %v2633 = vpop.f32.mrb[0].mxu0
        %v2634 = vadd.f32 %v2567, %v2633
        %v2635 = vpop.f32.mrb[0].mxu0
        %v2636 = vadd.f32 %v2571, %v2635
        %v2637 = vpop.f32.mrb[0].mxu0
        %v2638 = vadd.f32 %v2571, %v2637
        %2639 = vmatprep.mubr.bf16.mxu0 0
        %2640 = vmatmul.mubr.bf16.gmra.mrb[0].mxu0 %v2595
        %v2641 = vpop.f32.mrb[0].mxu0
        %v2642 = vadd.f32 %v2575, %v2641
        %v2643 = vpop.f32.mrb[0].mxu0
        %v2644 = vadd.f32 %v2575, %v2643
        %v2645 = vpop.f32.mrb[0].mxu0
        %v2646 = vadd.f32 %v2579, %v2645
        %v2647 = vpop.f32.mrb[0].mxu0
        %v2648 = vadd.f32 %v2579, %v2647
        %2649 = vdwg.mxu0
        %v2650 = vxor.u32 %v2632, 2147483648
        %v2651 = vxor.u32 %v2634, 2147483648
        %v2652 = vxor.u32 %v2636, 2147483648
        %v2653 = vxor.u32 %v2638, 2147483648
        %v2654 = vxor.u32 %v2642, 2147483648
        %v2655 = vxor.u32 %v2644, 2147483648
        %v2656 = vxor.u32 %v2646, 2147483648
        %v2657 = vxor.u32 %v2648, 2147483648
        %v2658 = vmul.f32 %v2650, 1.442695
        %v2659 = vpow.pop %v2658
        %v2660 = vmul.f32 %v2651, 1.442695
        %v2661 = vpow.pop %v2660
        %v2662 = vmul.f32 %v2652, 1.442695
        %v2663 = vpow.pop %v2662
        %v2664 = vmul.f32 %v2653, 1.442695
        %v2665 = vpow.pop %v2664
        %v2666 = vmul.f32 %v2654, 1.442695
        %v2667 = vpow.pop %v2666
        %v2668 = vmul.f32 %v2655, 1.442695
        %v2669 = vpow.pop %v2668
        %v2670 = vmul.f32 %v2656, 1.442695
        %v2671 = vpow.pop %v2670
        %v2672 = vmul.f32 %v2657, 1.442695
        %v2673 = vpow.pop %v2672
        %v2674 = vadd.f32 %v2659, 1.0
        %v2675 = vadd.f32 %v2661, 1.0
        %v2676 = vadd.f32 %v2663, 1.0
        %v2677 = vadd.f32 %v2665, 1.0
        %v2678 = vadd.f32 %v2667, 1.0
        %v2679 = vadd.f32 %v2669, 1.0
        %v2680 = vadd.f32 %v2671, 1.0
        %v2681 = vadd.f32 %v2673, 1.0
        %v2682 = vrcp.pop %v2674
        %v2683 = vmul.f32 1.0, %v2682
        %v2684 = vrcp.pop %v2675
        %v2685 = vmul.f32 1.0, %v2684
        %v2686 = vrcp.pop %v2676
        %v2687 = vmul.f32 1.0, %v2686
        %v2688 = vrcp.pop %v2677
        %v2689 = vmul.f32 1.0, %v2688
        %v2690 = vrcp.pop %v2678
        %v2691 = vmul.f32 1.0, %v2690
        %v2692 = vrcp.pop %v2679
        %v2693 = vmul.f32 1.0, %v2692
        %v2694 = vrcp.pop %v2680
        %v2695 = vmul.f32 1.0, %v2694
        %v2696 = vrcp.pop %v2681
        %v2697 = vmul.f32 1.0, %v2696
        %v2698 = vadd.f32 %v2071, %v2543
        %v2699 = vadd.f32 %v2072, %v2545
        %v2700 = vadd.f32 %v2073, %v2547
        %v2701 = vadd.f32 %v2074, %v2549
        %v2702 = vadd.f32 %v2075, %v2553
        %v2703 = vadd.f32 %v2076, %v2555
        %v2704 = vadd.f32 %v2077, %v2557
        %v2705 = vadd.f32 %v2078, %v2559
        %2706 = vset.pattern.permute.xlu0 6
        %2707 = vperm.xlu0 %2706, %v499
        %v2708 = vpop.permute.xlu0 %2707
        %2710 = vset.pattern.permute.xlu0 6
        %2711 = vperm.xlu0 %2710, %v500
        %v2712 = vpop.permute.xlu0 %2711
        %2714 = vset.pattern.permute.xlu0 6
        %2715 = vperm.xlu0 %2714, %v501
        %v2716 = vpop.permute.xlu0 %2715
        %2718 = vset.pattern.permute.xlu0 6
        %2719 = vperm.xlu0 %2718, %v502
        %v2720 = vpop.permute.xlu0 %2719
        %v2722 = vmul.f32 %v2708, %v2698
        %v2723 = vmul.f32 %v2708, %v2699
        %v2724 = vmul.f32 %v2712, %v2700
        %v2725 = vmul.f32 %v2712, %v2701
        %v2726 = vmul.f32 %v2716, %v2702
        %v2727 = vmul.f32 %v2716, %v2703
        %v2728 = vmul.f32 %v2720, %v2704
        %v2729 = vmul.f32 %v2720, %v2705
        %2730 = vset.pattern.permute.xlu0 5
        %2731 = vperm.xlu0 %2730, %v499
        %v2732 = vpop.permute.xlu0 %2731
        %2734 = vset.pattern.permute.xlu0 5
        %2735 = vperm.xlu0 %2734, %v500
        %v2736 = vpop.permute.xlu0 %2735
        %2738 = vset.pattern.permute.xlu0 5
        %2739 = vperm.xlu0 %2738, %v501
        %v2740 = vpop.permute.xlu0 %2739
        %2742 = vset.pattern.permute.xlu0 5
        %2743 = vperm.xlu0 %2742, %v502
        %v2744 = vpop.permute.xlu0 %2743
        %v2746 = vmul.f32 %v2732, %v2071
        %v2747 = vmul.f32 %v2732, %v2072
        %v2748 = vmul.f32 %v2736, %v2073
        %v2749 = vmul.f32 %v2736, %v2074
        %v2750 = vmul.f32 %v2740, %v2075
        %v2751 = vmul.f32 %v2740, %v2076
        %v2752 = vmul.f32 %v2744, %v2077
        %v2753 = vmul.f32 %v2744, %v2078
        %v2754 = vmul.f32 %v2746, %v2543
        %v2755 = vmul.f32 %v2747, %v2545
        %v2756 = vmul.f32 %v2748, %v2547
        %v2757 = vmul.f32 %v2749, %v2549
        %v2758 = vmul.f32 %v2750, %v2553
        %v2759 = vmul.f32 %v2751, %v2555
        %v2760 = vmul.f32 %v2752, %v2557
        %v2761 = vmul.f32 %v2753, %v2559
        %v2762 = vadd.f32 %v2722, %v2754
        %v2763 = vadd.f32 %v2723, %v2755
        %v2764 = vadd.f32 %v2724, %v2756
        %v2765 = vadd.f32 %v2725, %v2757
        %v2766 = vadd.f32 %v2726, %v2758
        %v2767 = vadd.f32 %v2727, %v2759
        %v2768 = vadd.f32 %v2728, %v2760
        %v2769 = vadd.f32 %v2729, %v2761
        %v2770 = vmax.f32 %v2762, 0.0
        %v2771 = vmax.f32 %v2763, 0.0
        %v2772 = vmax.f32 %v2764, 0.0
        %v2773 = vmax.f32 %v2765, 0.0
        %v2774 = vmax.f32 %v2766, 0.0
        %v2775 = vmax.f32 %v2767, 0.0
        %v2776 = vmax.f32 %v2768, 0.0
        %v2777 = vmax.f32 %v2769, 0.0
        %vm2778 = vcmp.ne.f32.partialorder %v2762, %v2762
        %vm2779 = vcmp.ne.f32.partialorder %v2763, %v2763
        %vm2780 = vcmp.ne.f32.partialorder %v2764, %v2764
        %vm2781 = vcmp.ne.f32.partialorder %v2765, %v2765
        %vm2782 = vcmp.ne.f32.partialorder %v2766, %v2766
        %vm2783 = vcmp.ne.f32.partialorder %v2767, %v2767
        %vm2784 = vcmp.ne.f32.partialorder %v2768, %v2768
        %vm2785 = vcmp.ne.f32.partialorder %v2769, %v2769
        %v2786 = vadd.f32 %v2762, 0.0
        %v2787 = vadd.f32 %v2763, 0.0
        %v2788 = vadd.f32 %v2764, 0.0
        %v2789 = vadd.f32 %v2765, 0.0
        %v2790 = vadd.f32 %v2766, 0.0
        %v2791 = vadd.f32 %v2767, 0.0
        %v2792 = vadd.f32 %v2768, 0.0
        %v2793 = vadd.f32 %v2769, 0.0
        %v2794 = vand.u32 2147483647, %v2762
        %v2795 = vand.u32 2147483647, %v2763
        %v2796 = vand.u32 2147483647, %v2764
        %v2797 = vand.u32 2147483647, %v2765
        %v2798 = vand.u32 2147483647, %v2766
        %v2799 = vand.u32 2147483647, %v2767
        %v2800 = vand.u32 2147483647, %v2768
        %v2801 = vand.u32 2147483647, %v2769
        %v2802 = vsub.f32 0.0, %v2794
        %v2803 = vsub.f32 0.0, %v2795
        %v2804 = vsub.f32 0.0, %v2796
        %v2805 = vsub.f32 0.0, %v2797
        %v2806 = vsub.f32 0.0, %v2798
        %v2807 = vsub.f32 0.0, %v2799
        %v2808 = vsub.f32 0.0, %v2800
        %v2809 = vsub.f32 0.0, %v2801
        %v2810 = vmul.f32 %v2802, 1.442695
        %v2811 = vpow.pop %v2810
        %v2812 = vmul.f32 %v2803, 1.442695
        %v2813 = vpow.pop %v2812
        %v2814 = vmul.f32 %v2804, 1.442695
        %v2815 = vpow.pop %v2814
        %v2816 = vmul.f32 %v2805, 1.442695
        %v2817 = vpow.pop %v2816
        %v2818 = vmul.f32 %v2806, 1.442695
        %v2819 = vpow.pop %v2818
        %v2820 = vmul.f32 %v2807, 1.442695
        %v2821 = vpow.pop %v2820
        %v2822 = vmul.f32 %v2808, 1.442695
        %v2823 = vpow.pop %v2822
        %v2824 = vmul.f32 %v2809, 1.442695
        %v2825 = vpow.pop %v2824
        %v2826 = vadd.f32 %v2811, 1.0
        %v2827 = vlog2.pop %v2826
        %v2828 = vmul.f32 %v2827, 0.6931472
        %v2829 = vmul.f32 -0.5, %v2811
        %v2830 = vadd.f32 %v2829, 1.0
        %v2831 = vmul.f32 %v2830, %v2811
        %v2832 = vand.u32 2147483647, %v2811
        %vm2833 = vcmp.lt.f32.partialorder %v2832, 0.0004427343
        %v2834 = vsel %vm2833, %v2831, %v2828
        %v2835 = vadd.f32 %v2813, 1.0
        %v2836 = vlog2.pop %v2835
        %v2837 = vmul.f32 %v2836, 0.6931472
        %v2838 = vmul.f32 -0.5, %v2813
        %v2839 = vadd.f32 %v2838, 1.0
        %v2840 = vmul.f32 %v2839, %v2813
        %v2841 = vand.u32 2147483647, %v2813
        %vm2842 = vcmp.lt.f32.partialorder %v2841, 0.0004427343
        %v2843 = vsel %vm2842, %v2840, %v2837
        %v2844 = vadd.f32 %v2815, 1.0
        %v2845 = vlog2.pop %v2844
        %v2846 = vmul.f32 %v2845, 0.6931472
        %v2847 = vmul.f32 -0.5, %v2815
        %v2848 = vadd.f32 %v2847, 1.0
        %v2849 = vmul.f32 %v2848, %v2815
        %v2850 = vand.u32 2147483647, %v2815
        %vm2851 = vcmp.lt.f32.partialorder %v2850, 0.0004427343
        %v2852 = vsel %vm2851, %v2849, %v2846
        %v2853 = vadd.f32 %v2817, 1.0
        %v2854 = vlog2.pop %v2853
        %v2855 = vmul.f32 %v2854, 0.6931472
        %v2856 = vmul.f32 -0.5, %v2817
        %v2857 = vadd.f32 %v2856, 1.0
        %v2858 = vmul.f32 %v2857, %v2817
        %v2859 = vand.u32 2147483647, %v2817
        %vm2860 = vcmp.lt.f32.partialorder %v2859, 0.0004427343
        %v2861 = vsel %vm2860, %v2858, %v2855
        %v2862 = vadd.f32 %v2819, 1.0
        %v2863 = vlog2.pop %v2862
        %v2864 = vmul.f32 %v2863, 0.6931472
        %v2865 = vmul.f32 -0.5, %v2819
        %v2866 = vadd.f32 %v2865, 1.0
        %v2867 = vmul.f32 %v2866, %v2819
        %v2868 = vand.u32 2147483647, %v2819
        %vm2869 = vcmp.lt.f32.partialorder %v2868, 0.0004427343
        %v2870 = vsel %vm2869, %v2867, %v2864
        %v2871 = vadd.f32 %v2821, 1.0
        %v2872 = vlog2.pop %v2871
        %v2873 = vmul.f32 %v2872, 0.6931472
        %v2874 = vmul.f32 -0.5, %v2821
        %v2875 = vadd.f32 %v2874, 1.0
        %v2876 = vmul.f32 %v2875, %v2821
        %v2877 = vand.u32 2147483647, %v2821
        %vm2878 = vcmp.lt.f32.partialorder %v2877, 0.0004427343
        %v2879 = vsel %vm2878, %v2876, %v2873
        %v2880 = vadd.f32 %v2823, 1.0
        %v2881 = vlog2.pop %v2880
        %v2882 = vmul.f32 %v2881, 0.6931472
        %v2883 = vmul.f32 -0.5, %v2823
        %v2884 = vadd.f32 %v2883, 1.0
        %v2885 = vmul.f32 %v2884, %v2823
        %v2886 = vand.u32 2147483647, %v2823
        %vm2887 = vcmp.lt.f32.partialorder %v2886, 0.0004427343
        %v2888 = vsel %vm2887, %v2885, %v2882
        %v2889 = vadd.f32 %v2825, 1.0
        %v2890 = vlog2.pop %v2889
        %v2891 = vmul.f32 %v2890, 0.6931472
        %v2892 = vmul.f32 -0.5, %v2825
        %v2893 = vadd.f32 %v2892, 1.0
        %v2894 = vmul.f32 %v2893, %v2825
        %v2895 = vand.u32 2147483647, %v2825
        %vm2896 = vcmp.lt.f32.partialorder %v2895, 0.0004427343
        %v2897 = vsel %vm2896, %v2894, %v2891
        %v2898 = vadd.f32 %v2770, %v2834
        %v2899 = vadd.f32 %v2771, %v2843
        %v2900 = vadd.f32 %v2772, %v2852
        %v2901 = vadd.f32 %v2773, %v2861
        %v2902 = vadd.f32 %v2774, %v2870
        %v2903 = vadd.f32 %v2775, %v2879
        %v2904 = vadd.f32 %v2776, %v2888
        %v2905 = vadd.f32 %v2777, %v2897
        %v2906 = vsel %vm2778, %v2786, %v2898
        %v2907 = vsel %vm2779, %v2787, %v2899
        %v2908 = vsel %vm2780, %v2788, %v2900
        %v2909 = vsel %vm2781, %v2789, %v2901
        %v2910 = vsel %vm2782, %v2790, %v2902
        %v2911 = vsel %vm2783, %v2791, %v2903
        %v2912 = vsel %vm2784, %v2792, %v2904
        %v2913 = vsel %vm2785, %v2793, %v2905
        %v2914 = vsub.f32 1.0, %v2683
        %v2915 = vsub.f32 1.0, %v2685
        %v2916 = vsub.f32 1.0, %v2687
        %v2917 = vsub.f32 1.0, %v2689
        %v2918 = vsub.f32 1.0, %v2691
        %v2919 = vsub.f32 1.0, %v2693
        %v2920 = vsub.f32 1.0, %v2695
        %v2921 = vsub.f32 1.0, %v2697
        %v2922 = vmul.f32 %v2914, %v503
        %v2923 = vmul.f32 %v2915, %v504
        %v2924 = vmul.f32 %v2916, %v505
        %v2925 = vmul.f32 %v2917, %v506
        %v2926 = vmul.f32 %v2918, %v507
        %v2927 = vmul.f32 %v2919, %v508
        %v2928 = vmul.f32 %v2920, %v509
        %v2929 = vmul.f32 %v2921, %v510
        %v2930 = vmul.f32 %v2683, %v2906
        %v2931 = vmul.f32 %v2685, %v2907
        %v2932 = vmul.f32 %v2687, %v2908
        %v2933 = vmul.f32 %v2689, %v2909
        %v2934 = vmul.f32 %v2691, %v2910
        %v2935 = vmul.f32 %v2693, %v2911
        %v2936 = vmul.f32 %v2695, %v2912
        %v2937 = vmul.f32 %v2697, %v2913
        %v2938 = vadd.f32 %v2922, %v2930
        %v2939 = vadd.f32 %v2923, %v2931
        %v2940 = vadd.f32 %v2924, %v2932
        %v2941 = vadd.f32 %v2925, %v2933
        %v2942 = vadd.f32 %v2926, %v2934
        %v2943 = vadd.f32 %v2927, %v2935
        %v2944 = vadd.f32 %v2928, %v2936
        %v2945 = vadd.f32 %v2929, %v2937
        %2946 = vst [vmem:[%s492] sm:$0xff] %v2938
        %2947 = vst [vmem:[%s492 + $0x8] sm:$0xff] %v2939
        %2948 = vst [vmem:[%s492 + $0x10] sm:$0xff] %v2940
        %2949 = vst [vmem:[%s492 + $0x18] sm:$0xff] %v2941
        %2950 = vst [vmem:[%s492 + $0x20] sm:$0xff] %v2942
        %2951 = vst [vmem:[%s492 + $0x28] sm:$0xff] %v2943
        %2952 = vst [vmem:[%s492 + $0x30] sm:$0xff] %v2944
        %2953 = vst [vmem:[%s492 + $0x38] sm:$0xff] %v2945
        %s2954 = sand.u32 %s280, 1
        %s2955 = scalar_lea.sflag [#allocation4], %s2954
        %s2956 = sand.u32 %s280, 1
        %s2957 = smul.addr %s2956, 64
        %s2958 = scalar_lea.vmem [#allocation13], %s2957
        // Predicated region
        $region89: #{tpu_custom_call.1} parent=63 // pred_check
          %p2959 = pneg %p290
        $region90: #{tpu_custom_call.1} parent=63 // pred_check_branch
          %2961 = sbr.rel (%p2959) target = $region92
        $region91: #{tpu_custom_call.1} parent=63 // pred_region
          %s2963 = ssub.s32 1024, 1024
          %2964 = vsyncadd %s2955, %s2963
          %s2965 = smul.addr %s31, 8
          %s2966 = smul.addr %s2965, 128
          %s2967 = scalar_lea.hbm %s11, %s2966
          %s2968 = sshll.u32 %s2958, 4
          %s2969 = int_to_ptr.vmem [resolvable:$true] %s2968
          %2974 = dma.vmem_to_hbm [thread:$0]  %s2969, 1024, %s2967, %s2955, 256, 256, 16
        $region92: #{tpu_custom_call.1} parent=63 // pred_fallthru
          _
      $region64: #{tpu_custom_call.1} parent=5 // pred_fallthru
        _
      %p2975 = scmp.le.s32.totalorder 2, %s26
      // Predicated region
      $region93: #{tpu_custom_call.1} parent=5 // pred_check
        %p2976 = pneg %p2975
      $region94: #{tpu_custom_call.1} parent=5 // pred_check_branch
        %2978 = sbr.rel (%p2976) target = $region96
      $region95: #{tpu_custom_call.1} parent=5 // pred_region
        %s2979 = ssub.s32 %s26, 2
        // Predicated region
        $region97: #{tpu_custom_call.1} parent=95 // pred_check
          %p2980 = pneg %p296
        $region98: #{tpu_custom_call.1} parent=95 // pred_check_branch
          %2982 = sbr.rel (%p2980) target = $region100
        $region99: #{tpu_custom_call.1} parent=95 // pred_region
          %s2983 = sand.u32 %s281, 1
          %s2984 = scalar_lea.sflag [#allocation4], %s2983
          %s2985 = sand.u32 %s281, 1
          %s2986 = smul.addr %s2985, 64
          %s2987 = scalar_lea.vmem [#allocation13], %s2986
          %2988 = dma.done %s2984, 1024
        $region100: #{tpu_custom_call.1} parent=95 // pred_fallthru
          _
      $region96: #{tpu_custom_call.1} parent=5 // pred_fallthru
        _
    $region6: #{tpu_custom_call.1} parent=1 // loop_footer
      %s30 = sadd.s32 1, %s26
    $region7: #{tpu_custom_call.1} parent=1 // loop_footer_branch
      %25 = sbr.rel target = $region3
    $region8: #{tpu_custom_call.1} parent=1 // loop_exit
      _
    %2989 = vsyncpa [#allocation3], 1
    %s2990 = scalar_lea.sflag [#allocation3], 1
    %2991 = vsyncpa %s2990, 1
    %2992 = vsyncpa [#allocation6], 1
    %2993 = vsyncpa [#allocation9], 1
    %2994 = vsyncpa [#allocation12], 1
    %2995 = vsyncpa [#allocation4], 1
    %s2996 = scalar_lea.sflag [#allocation4], 1
    %2997 = vsyncpa %s2996, 1

</llo_original>
